<compile_context>
chip_gen: v7x
topology: tpu7x:2x2x1
jax: 0.10.0
libtpu: 0.0.40
codegen_flags: <defaults>
</compile_context>

<pallas_src>
import jax
import jax.numpy as jnp
from jax.experimental import pallas as pl
from jax.experimental.pallas import tpu as pltpu


def _stable_sigmoid(x):
    # sigmoid(x) = 0.5*(tanh(x/2)+1): no exp overflow, runs on the EUP.
    return 0.5 * (jnp.tanh(0.5 * x) + 1.0)


def _full_spec(shape):
    n = len(shape)
    return pl.BlockSpec(shape, lambda i, _n=n: (0,) * _n)


# ----------------------------------------------------------------------------
# Fully fused kernel: 2 bidirectional LSTM layers + MLP head + sigmoid.
#
#   x_ref   : (T*B, D)    time-major flattened input
#   wihL    : (Din, 8H)   [W_ih fwd | W_ih bwd], gate order (i, f, g, o)
#   whhL    : (2H, 8H)    block-diagonal [W_hh fwd | W_hh bwd]
#   bL      : (1, 8H)     [b_ih+b_hh fwd | b_ih+b_hh bwd]
#   fw*/fb* : MLP head weights/biases (already transposed vs. torch)
#   out_ref : (B, 1)      sigmoid(logits)
# ----------------------------------------------------------------------------
def _make_fused_kernel(T, B, H):
    H4 = 4 * H

    def kernel(x_ref, wih1_ref, whh1_ref, b1_ref, wih2_ref, whh2_ref, b2_ref,
               fw1, fb1, fw2, fb2, fw3, fb3, fw4, fb4, out_ref):
        # Lane mask selecting the 'g' (cell-candidate) gate columns of a 4H tile.
        col = jax.lax.broadcasted_iota(jnp.int32, (1, H4), 1)
        g_mask = jnp.logical_and(col >= 2 * H, col < 3 * H)

        def gate_act(g):
            # Whole-tile sigmoid and tanh (EUP slot) + one select; no 32-lane
            # transcendental slices.
            return jnp.where(g_mask, jnp.tanh(g), _stable_sigmoid(g))

        def run_layer(inp_flat, wih, whh, bias):
            # Hoisted input projection for both directions at once: (T*B, 8H).
            ip = jnp.dot(inp_flat, wih, preferred_element_type=jnp.float32) + bias
            h_f = jnp.zeros((B, H), jnp.float32)
            c_f = jnp.zeros((B, H), jnp.float32)
            h_b = jnp.zeros((B, H), jnp.float32)
            c_b = jnp.zeros((B, H), jnp.float32)
            outs_f, outs_b = [], []
            for s in range(T):  # static unroll (T is small and known)
                h_cat = jnp.concatenate([h_f, h_b], axis=-1)                   # (B, 2H)
                rec = jnp.dot(h_cat, whh, preferred_element_type=jnp.float32)  # (B, 8H)
                gf = rec[:, :H4] + ip[s * B:(s + 1) * B, :H4]                  # fwd @ time s
                gb = rec[:, H4:] + ip[(T - 1 - s) * B:(T - s) * B, H4:]        # bwd @ time T-1-s
                af = gate_act(gf)
                ab = gate_act(gb)
                # gate layout per direction: [i | f | g | o]
                c_f = af[:, H:2 * H] * c_f + af[:, :H] * af[:, 2 * H:3 * H]
                h_f = af[:, 3 * H:] * jnp.tanh(c_f)
                c_b = ab[:, H:2 * H] * c_b + ab[:, :H] * ab[:, 2 * H:3 * H]
                h_b = ab[:, 3 * H:] * jnp.tanh(c_b)
                outs_f.append(h_f)
                outs_b.append(h_b)
            return outs_f, outs_b

        x = x_ref[...]
        o1f, o1b = run_layer(x, wih1_ref[...], whh1_ref[...], b1_ref[...])
        # Time-aligned bidirectional layer-1 output, flattened to (T*B, 2H);
        # never leaves VMEM.
        l1 = jnp.concatenate(
            [jnp.concatenate([o1f[t], o1b[T - 1 - t]], axis=-1) for t in range(T)],
            axis=0)
        o2f, o2b = run_layer(l1, wih2_ref[...], whh2_ref[...], b2_ref[...])
        # torch: cat([lstm_out[:, -1, :H], lstm_out[:, 0, H:]], dim=1)
        #      == [fwd hidden after its last step | bwd hidden after its last step]
        last = jnp.concatenate([o2f[T - 1], o2b[T - 1]], axis=-1)              # (B, 2H)

        z = jnp.maximum(jnp.dot(last, fw1[...], preferred_element_type=jnp.float32) + fb1[...], 0.0)
        z = jnp.maximum(jnp.dot(z, fw2[...], preferred_element_type=jnp.float32) + fb2[...], 0.0)
        z = jnp.maximum(jnp.dot(z, fw3[...], preferred_element_type=jnp.float32) + fb3[...], 0.0)
        logits = jnp.dot(z, fw4[...], preferred_element_type=jnp.float32) + fb4[...]
        out_ref[...] = _stable_sigmoid(logits)

    return kernel


# ----------------------------------------------------------------------------
# Wrapper: one pallas_call for the whole forward pass.
# ----------------------------------------------------------------------------
def bilstm_classifier_forward(x_btd, params):
    H = params["hidden_dim"]
    B, T, D = x_btd.shape
    x_flat = jnp.transpose(x_btd, (1, 0, 2)).reshape(T * B, D)  # time-major, flattened
    args = (x_flat,) + tuple(params["fused_lstm"]) + tuple(params["fc"])

    out = pl.pallas_call(
        _make_fused_kernel(T, B, H),
        grid=(1,),
        in_specs=[_full_spec(a.shape) for a in args],
        out_specs=_full_spec((B, 1)),
        out_shape=jax.ShapeDtypeStruct((B, 1), jnp.float32),
        compiler_params=pltpu.CompilerParams(dimension_semantics=("arbitrary",)),
    )(*args)
    return out[:, 0]  # squeeze(1)


# ----------------------------------------------------------------------------
# Deterministic parameter initialization (torch-like shapes) + fused packing.
# ----------------------------------------------------------------------------
def init_params(key, input_dim, hidden_dim, lstm_layers, linear_dims):
    n_fc = len(linear_dims)
    keys = jax.random.split(key, lstm_layers * 8 + n_fc * 2)
    ki = [0]

    def nxt():
        k = keys[ki[0]]
        ki[0] += 1
        return k

    def uni(shape, bound):
        return jax.random.uniform(nxt(), shape, jnp.float32, -bound, bound)

    k_lstm = 1.0 / (hidden_dim ** 0.5)
    lstm = []
    in_dim = input_dim
    for _ in range(lstm_layers):
        layer = {
            "wih_f": uni((in_dim, 4 * hidden_dim), k_lstm),
            "whh_f": uni((hidden_dim, 4 * hidden_dim), k_lstm),
            "b_f": uni((1, 4 * hidden_dim), k_lstm) + uni((1, 4 * hidden_dim), k_lstm),
            "wih_b": uni((in_dim, 4 * hidden_dim), k_lstm),
            "whh_b": uni((hidden_dim, 4 * hidden_dim), k_lstm),
            "b_b": uni((1, 4 * hidden_dim), k_lstm) + uni((1, 4 * hidden_dim), k_lstm),
        }
        lstm.append(layer)
        in_dim = 2 * hidden_dim  # bidirectional output feeds the next layer

    # Pack per-layer weights for the fused-direction kernel.
    fused = []
    H = hidden_dim
    for lp in lstm:
        wih_c = jnp.concatenate([lp["wih_f"], lp["wih_b"]], axis=1)       # (Din, 8H)
        b_c = jnp.concatenate([lp["b_f"], lp["b_b"]], axis=1)             # (1, 8H)
        whh_c = jnp.zeros((2 * H, 8 * H), jnp.float32)
        whh_c = whh_c.at[:H, :4 * H].set(lp["whh_f"])
        whh_c = whh_c.at[H:, 4 * H:].set(lp["whh_b"])                     # block diagonal
        fused.extend([wih_c, whh_c, b_c])

    fc = []
    prev = 2 * hidden_dim
    for dim in linear_dims:
        k_fc = 1.0 / (prev ** 0.5)
        fc.append(uni((prev, dim), k_fc))   # weight (transposed vs torch)
        fc.append(uni((1, dim), k_fc))      # bias
        prev = dim

    return {"hidden_dim": hidden_dim, "lstm_layers": lstm_layers,
            "lstm": lstm, "fused_lstm": tuple(fused), "fc": tuple(fc)}


# ----------------------------------------------------------------------------
# Pure-JAX reference (same math) for a correctness check.
# ----------------------------------------------------------------------------
def _ref_lstm_dir(x_tbd, wih, whh, b):
    T, B, _ = x_tbd.shape
    H = whh.shape[0]
    h = jnp.zeros((B, H), jnp.float32)
    c = jnp.zeros((B, H), jnp.float32)
    outs = []
    for t in range(T):
        gates = x_tbd[t] @ wih + h @ whh + b
        i = _stable_sigmoid(gates[:, 0:H])
        f = _stable_sigmoid(gates[:, H:2 * H])
        g = jnp.tanh(gates[:, 2 * H:3 * H])
        o = _stable_sigmoid(gates[:, 3 * H:4 * H])
        c = f * c + i * g
        h = o * jnp.tanh(c)
        outs.append(h)
    return jnp.stack(outs)


def reference_forward(x_btd, params):
    H = params["hidden_dim"]
    x = jnp.transpose(x_btd, (1, 0, 2))
    layer_in = x
    for lp in params["lstm"]:
        out_f = _ref_lstm_dir(layer_in, lp["wih_f"], lp["whh_f"], lp["b_f"])
        out_b = _ref_lstm_dir(layer_in[::-1], lp["wih_b"], lp["whh_b"], lp["b_b"])[::-1]
        layer_in = jnp.concatenate([out_f, out_b], axis=-1)
    last_out = jnp.concatenate([layer_in[-1, :, :H], layer_in[0, :, H:]], axis=1)
    w1, b1, w2, b2, w3, b3, w4, b4 = params["fc"]
    h = jnp.maximum(last_out @ w1 + b1, 0.0)
    h = jnp.maximum(h @ w2 + b2, 0.0)
    h = jnp.maximum(h @ w3 + b3, 0.0)
    return _stable_sigmoid(h @ w4 + b4)[:, 0]


if __name__ == "__main__":
    # Small shapes consistent with the module: batch=2, seq=8, input_dim=64,
    # hidden_dim=32, lstm_layers=2, linear_dims=[32, 16, 8, 1].
    B, T, D, H = 2, 8, 64, 32
    linear_dims = [32, 16, 8, 1]

    key = jax.random.PRNGKey(0)
    kx, kp = jax.random.split(key)
    x = jax.random.normal(kx, (B, T, D), dtype=jnp.float32)
    params = init_params(kp, D, H, 2, linear_dims)

    out = bilstm_classifier_forward(x, params)
    out = jax.block_until_ready(out)
    assert out.shape == (B,), out.shape

    ref = jax.block_until_ready(reference_forward(x, params))
    assert jnp.allclose(out, ref, atol=1e-4), (out, ref)

    print("KERNEL_OK")
</pallas_src>

<mosaic_0001>
module attributes {stable_mosaic.version = 11 : i64} {
  func.func @kernel(%arg0: i32, %arg1: memref<16x64xf32, #tpu.memory_space<vmem>>, %arg2: memref<64x256xf32, #tpu.memory_space<vmem>>, %arg3: memref<64x256xf32, #tpu.memory_space<vmem>>, %arg4: memref<1x256xf32, #tpu.memory_space<vmem>>, %arg5: memref<64x256xf32, #tpu.memory_space<vmem>>, %arg6: memref<64x256xf32, #tpu.memory_space<vmem>>, %arg7: memref<1x256xf32, #tpu.memory_space<vmem>>, %arg8: memref<64x32xf32, #tpu.memory_space<vmem>>, %arg9: memref<1x32xf32, #tpu.memory_space<vmem>>, %arg10: memref<32x16xf32, #tpu.memory_space<vmem>>, %arg11: memref<1x16xf32, #tpu.memory_space<vmem>>, %arg12: memref<16x8xf32, #tpu.memory_space<vmem>>, %arg13: memref<1x8xf32, #tpu.memory_space<vmem>>, %arg14: memref<8x1xf32, #tpu.memory_space<vmem>>, %arg15: memref<1x1xf32, #tpu.memory_space<vmem>>, %arg16: memref<2x1xf32, #tpu.memory_space<vmem>>) attributes {dimension_semantics = [#tpu.dimension_semantics<arbitrary>], iteration_bounds = array<i64: 1>, scalar_prefetch = 0 : i64, scratch_operands = 0 : i64, tpu.core_type = #tpu.core_type<tc>, window_params = [{pipeline_mode = #tpu.pipeline_mode<synchronous>, transform_indices = @transform_0, window_bounds = array<i64: 16, 64>}, {pipeline_mode = #tpu.pipeline_mode<synchronous>, transform_indices = @transform_1, window_bounds = array<i64: 64, 256>}, {pipeline_mode = #tpu.pipeline_mode<synchronous>, transform_indices = @transform_2, window_bounds = array<i64: 64, 256>}, {pipeline_mode = #tpu.pipeline_mode<synchronous>, transform_indices = @transform_3, window_bounds = array<i64: 1, 256>}, {pipeline_mode = #tpu.pipeline_mode<synchronous>, transform_indices = @transform_4, window_bounds = array<i64: 64, 256>}, {pipeline_mode = #tpu.pipeline_mode<synchronous>, transform_indices = @transform_5, window_bounds = array<i64: 64, 256>}, {pipeline_mode = #tpu.pipeline_mode<synchronous>, transform_indices = @transform_6, window_bounds = array<i64: 1, 256>}, {pipeline_mode = #tpu.pipeline_mode<synchronous>, transform_indices = @transform_7, window_bounds = array<i64: 64, 32>}, {pipeline_mode = #tpu.pipeline_mode<synchronous>, transform_indices = @transform_8, window_bounds = array<i64: 1, 32>}, {pipeline_mode = #tpu.pipeline_mode<synchronous>, transform_indices = @transform_9, window_bounds = array<i64: 32, 16>}, {pipeline_mode = #tpu.pipeline_mode<synchronous>, transform_indices = @transform_10, window_bounds = array<i64: 1, 16>}, {pipeline_mode = #tpu.pipeline_mode<synchronous>, transform_indices = @transform_11, window_bounds = array<i64: 16, 8>}, {pipeline_mode = #tpu.pipeline_mode<synchronous>, transform_indices = @transform_12, window_bounds = array<i64: 1, 8>}, {pipeline_mode = #tpu.pipeline_mode<synchronous>, transform_indices = @transform_13, window_bounds = array<i64: 8, 1>}, {pipeline_mode = #tpu.pipeline_mode<synchronous>, transform_indices = @transform_14, window_bounds = array<i64: 1, 1>}, {pipeline_mode = #tpu.pipeline_mode<synchronous>, transform_indices = @transform_15, window_bounds = array<i64: 2, 1>}]} {
    %0 = tpu.iota {dimensions = array<i32: 1>} : vector<1x128xi32>
    %c64_i32 = arith.constant 64 : i32
    %1 = vector.broadcast %c64_i32 : i32 to vector<1x128xi32>
    %2 = arith.cmpi sge, %0, %1 : vector<1x128xi32>
    %c96_i32 = arith.constant 96 : i32
    %3 = vector.broadcast %c96_i32 : i32 to vector<1x128xi32>
    %4 = arith.cmpi slt, %0, %3 : vector<1x128xi32>
    %5 = arith.andi %2, %4 : vector<1x128xi1>
    %c0 = arith.constant 0 : index
    %c0_0 = arith.constant 0 : index
    %6 = vector.load %arg1[%c0, %c0_0] : memref<16x64xf32, #tpu.memory_space<vmem>>, vector<16x64xf32>
    %c0_1 = arith.constant 0 : index
    %c0_2 = arith.constant 0 : index
    %7 = vector.load %arg2[%c0_1, %c0_2] : memref<64x256xf32, #tpu.memory_space<vmem>>, vector<64x256xf32>
    %c0_3 = arith.constant 0 : index
    %c0_4 = arith.constant 0 : index
    %8 = vector.load %arg3[%c0_3, %c0_4] : memref<64x256xf32, #tpu.memory_space<vmem>>, vector<64x256xf32>
    %c0_5 = arith.constant 0 : index
    %c0_6 = arith.constant 0 : index
    %9 = vector.load %arg4[%c0_5, %c0_6] : memref<1x256xf32, #tpu.memory_space<vmem>>, vector<1x256xf32>
    %cst = arith.constant dense<0.000000e+00> : vector<16x256xf32>
    %10 = tpu.matmul %6, %7, %cst {dimension_numbers = #tpu.dot_dimension_numbers<[1], [0], [0], [1], [0, 0, 1, 1], [], []>} : vector<16x64xf32>, vector<64x256xf32>, vector<16x256xf32> -> vector<16x256xf32>
    %11 = vector.broadcast %9 : vector<1x256xf32> to vector<16x256xf32>
    %12 = arith.addf %10, %11 : vector<16x256xf32>
    %cst_7 = arith.constant 0.000000e+00 : f32
    %13 = vector.broadcast %cst_7 : f32 to vector<2x32xf32>
    %cst_8 = arith.constant 0.000000e+00 : f32
    %14 = vector.broadcast %cst_8 : f32 to vector<2x32xf32>
    %cst_9 = arith.constant 0.000000e+00 : f32
    %15 = vector.broadcast %cst_9 : f32 to vector<2x32xf32>
    %cst_10 = arith.constant 0.000000e+00 : f32
    %16 = vector.broadcast %cst_10 : f32 to vector<2x32xf32>
    %17 = tpu.concatenate %13, %15 in 1 : vector<2x32xf32>, vector<2x32xf32> -> vector<2x64xf32>
    %cst_11 = arith.constant dense<0.000000e+00> : vector<2x256xf32>
    %18 = tpu.matmul %17, %8, %cst_11 {dimension_numbers = #tpu.dot_dimension_numbers<[1], [0], [0], [1], [0, 0, 1, 1], [], []>} : vector<2x64xf32>, vector<64x256xf32>, vector<2x256xf32> -> vector<2x256xf32>
    %19 = vector.extract_strided_slice %18 {offsets = [0, 0], sizes = [2, 128], strides = [1, 1]} : vector<2x256xf32> to vector<2x128xf32>
    %20 = vector.extract_strided_slice %12 {offsets = [0, 0], sizes = [2, 128], strides = [1, 1]} : vector<16x256xf32> to vector<2x128xf32>
    %21 = arith.addf %19, %20 : vector<2x128xf32>
    %22 = vector.extract_strided_slice %18 {offsets = [0, 128], sizes = [2, 128], strides = [1, 1]} : vector<2x256xf32> to vector<2x128xf32>
    %23 = vector.extract_strided_slice %12 {offsets = [14, 128], sizes = [2, 128], strides = [1, 1]} : vector<16x256xf32> to vector<2x128xf32>
    %24 = arith.addf %22, %23 : vector<2x128xf32>
    %25 = math.tanh %21 : vector<2x128xf32>
    %cst_12 = arith.constant 5.000000e-01 : f32
    %26 = vector.broadcast %cst_12 : f32 to vector<2x128xf32>
    %27 = arith.mulf %26, %21 : vector<2x128xf32>
    %28 = math.tanh %27 : vector<2x128xf32>
    %cst_13 = arith.constant 1.000000e+00 : f32
    %29 = vector.broadcast %cst_13 : f32 to vector<2x128xf32>
    %30 = arith.addf %28, %29 : vector<2x128xf32>
    %cst_14 = arith.constant 5.000000e-01 : f32
    %31 = vector.broadcast %cst_14 : f32 to vector<2x128xf32>
    %32 = arith.mulf %31, %30 : vector<2x128xf32>
    %33 = vector.shape_cast %5 : vector<1x128xi1> to vector<1x128xi1>
    %34 = vector.broadcast %33 : vector<1x128xi1> to vector<2x128xi1>
    %35 = arith.select %34, %25, %32 : vector<2x128xi1>, vector<2x128xf32>
    %36 = math.tanh %24 : vector<2x128xf32>
    %cst_15 = arith.constant 5.000000e-01 : f32
    %37 = vector.broadcast %cst_15 : f32 to vector<2x128xf32>
    %38 = arith.mulf %37, %24 : vector<2x128xf32>
    %39 = math.tanh %38 : vector<2x128xf32>
    %cst_16 = arith.constant 1.000000e+00 : f32
    %40 = vector.broadcast %cst_16 : f32 to vector<2x128xf32>
    %41 = arith.addf %39, %40 : vector<2x128xf32>
    %cst_17 = arith.constant 5.000000e-01 : f32
    %42 = vector.broadcast %cst_17 : f32 to vector<2x128xf32>
    %43 = arith.mulf %42, %41 : vector<2x128xf32>
    %44 = vector.shape_cast %5 : vector<1x128xi1> to vector<1x128xi1>
    %45 = vector.broadcast %44 : vector<1x128xi1> to vector<2x128xi1>
    %46 = arith.select %45, %36, %43 : vector<2x128xi1>, vector<2x128xf32>
    %47 = vector.extract_strided_slice %35 {offsets = [0, 32], sizes = [2, 32], strides = [1, 1]} : vector<2x128xf32> to vector<2x32xf32>
    %48 = arith.mulf %47, %14 : vector<2x32xf32>
    %49 = vector.extract_strided_slice %35 {offsets = [0, 0], sizes = [2, 32], strides = [1, 1]} : vector<2x128xf32> to vector<2x32xf32>
    %50 = vector.extract_strided_slice %35 {offsets = [0, 64], sizes = [2, 32], strides = [1, 1]} : vector<2x128xf32> to vector<2x32xf32>
    %51 = arith.mulf %49, %50 : vector<2x32xf32>
    %52 = arith.addf %48, %51 : vector<2x32xf32>
    %53 = vector.extract_strided_slice %35 {offsets = [0, 96], sizes = [2, 32], strides = [1, 1]} : vector<2x128xf32> to vector<2x32xf32>
    %54 = math.tanh %52 : vector<2x32xf32>
    %55 = arith.mulf %53, %54 : vector<2x32xf32>
    %56 = vector.extract_strided_slice %46 {offsets = [0, 32], sizes = [2, 32], strides = [1, 1]} : vector<2x128xf32> to vector<2x32xf32>
    %57 = arith.mulf %56, %16 : vector<2x32xf32>
    %58 = vector.extract_strided_slice %46 {offsets = [0, 0], sizes = [2, 32], strides = [1, 1]} : vector<2x128xf32> to vector<2x32xf32>
    %59 = vector.extract_strided_slice %46 {offsets = [0, 64], sizes = [2, 32], strides = [1, 1]} : vector<2x128xf32> to vector<2x32xf32>
    %60 = arith.mulf %58, %59 : vector<2x32xf32>
    %61 = arith.addf %57, %60 : vector<2x32xf32>
    %62 = vector.extract_strided_slice %46 {offsets = [0, 96], sizes = [2, 32], strides = [1, 1]} : vector<2x128xf32> to vector<2x32xf32>
    %63 = math.tanh %61 : vector<2x32xf32>
    %64 = arith.mulf %62, %63 : vector<2x32xf32>
    %65 = tpu.concatenate %55, %64 in 1 : vector<2x32xf32>, vector<2x32xf32> -> vector<2x64xf32>
    %cst_18 = arith.constant dense<0.000000e+00> : vector<2x256xf32>
    %66 = tpu.matmul %65, %8, %cst_18 {dimension_numbers = #tpu.dot_dimension_numbers<[1], [0], [0], [1], [0, 0, 1, 1], [], []>} : vector<2x64xf32>, vector<64x256xf32>, vector<2x256xf32> -> vector<2x256xf32>
    %67 = vector.extract_strided_slice %66 {offsets = [0, 0], sizes = [2, 128], strides = [1, 1]} : vector<2x256xf32> to vector<2x128xf32>
    %68 = vector.extract_strided_slice %12 {offsets = [2, 0], sizes = [2, 128], strides = [1, 1]} : vector<16x256xf32> to vector<2x128xf32>
    %69 = arith.addf %67, %68 : vector<2x128xf32>
    %70 = vector.extract_strided_slice %66 {offsets = [0, 128], sizes = [2, 128], strides = [1, 1]} : vector<2x256xf32> to vector<2x128xf32>
    %71 = vector.extract_strided_slice %12 {offsets = [12, 128], sizes = [2, 128], strides = [1, 1]} : vector<16x256xf32> to vector<2x128xf32>
    %72 = arith.addf %70, %71 : vector<2x128xf32>
    %73 = math.tanh %69 : vector<2x128xf32>
    %cst_19 = arith.constant 5.000000e-01 : f32
    %74 = vector.broadcast %cst_19 : f32 to vector<2x128xf32>
    %75 = arith.mulf %74, %69 : vector<2x128xf32>
    %76 = math.tanh %75 : vector<2x128xf32>
    %cst_20 = arith.constant 1.000000e+00 : f32
    %77 = vector.broadcast %cst_20 : f32 to vector<2x128xf32>
    %78 = arith.addf %76, %77 : vector<2x128xf32>
    %cst_21 = arith.constant 5.000000e-01 : f32
    %79 = vector.broadcast %cst_21 : f32 to vector<2x128xf32>
    %80 = arith.mulf %79, %78 : vector<2x128xf32>
    %81 = vector.shape_cast %5 : vector<1x128xi1> to vector<1x128xi1>
    %82 = vector.broadcast %81 : vector<1x128xi1> to vector<2x128xi1>
    %83 = arith.select %82, %73, %80 : vector<2x128xi1>, vector<2x128xf32>
    %84 = math.tanh %72 : vector<2x128xf32>
    %cst_22 = arith.constant 5.000000e-01 : f32
    %85 = vector.broadcast %cst_22 : f32 to vector<2x128xf32>
    %86 = arith.mulf %85, %72 : vector<2x128xf32>
    %87 = math.tanh %86 : vector<2x128xf32>
    %cst_23 = arith.constant 1.000000e+00 : f32
    %88 = vector.broadcast %cst_23 : f32 to vector<2x128xf32>
    %89 = arith.addf %87, %88 : vector<2x128xf32>
    %cst_24 = arith.constant 5.000000e-01 : f32
    %90 = vector.broadcast %cst_24 : f32 to vector<2x128xf32>
    %91 = arith.mulf %90, %89 : vector<2x128xf32>
    %92 = vector.shape_cast %5 : vector<1x128xi1> to vector<1x128xi1>
    %93 = vector.broadcast %92 : vector<1x128xi1> to vector<2x128xi1>
    %94 = arith.select %93, %84, %91 : vector<2x128xi1>, vector<2x128xf32>
    %95 = vector.extract_strided_slice %83 {offsets = [0, 32], sizes = [2, 32], strides = [1, 1]} : vector<2x128xf32> to vector<2x32xf32>
    %96 = arith.mulf %95, %52 : vector<2x32xf32>
    %97 = vector.extract_strided_slice %83 {offsets = [0, 0], sizes = [2, 32], strides = [1, 1]} : vector<2x128xf32> to vector<2x32xf32>
    %98 = vector.extract_strided_slice %83 {offsets = [0, 64], sizes = [2, 32], strides = [1, 1]} : vector<2x128xf32> to vector<2x32xf32>
    %99 = arith.mulf %97, %98 : vector<2x32xf32>
    %100 = arith.addf %96, %99 : vector<2x32xf32>
    %101 = vector.extract_strided_slice %83 {offsets = [0, 96], sizes = [2, 32], strides = [1, 1]} : vector<2x128xf32> to vector<2x32xf32>
    %102 = math.tanh %100 : vector<2x32xf32>
    %103 = arith.mulf %101, %102 : vector<2x32xf32>
    %104 = vector.extract_strided_slice %94 {offsets = [0, 32], sizes = [2, 32], strides = [1, 1]} : vector<2x128xf32> to vector<2x32xf32>
    %105 = arith.mulf %104, %61 : vector<2x32xf32>
    %106 = vector.extract_strided_slice %94 {offsets = [0, 0], sizes = [2, 32], strides = [1, 1]} : vector<2x128xf32> to vector<2x32xf32>
    %107 = vector.extract_strided_slice %94 {offsets = [0, 64], sizes = [2, 32], strides = [1, 1]} : vector<2x128xf32> to vector<2x32xf32>
    %108 = arith.mulf %106, %107 : vector<2x32xf32>
    %109 = arith.addf %105, %108 : vector<2x32xf32>
    %110 = vector.extract_strided_slice %94 {offsets = [0, 96], sizes = [2, 32], strides = [1, 1]} : vector<2x128xf32> to vector<2x32xf32>
    %111 = math.tanh %109 : vector<2x32xf32>
    %112 = arith.mulf %110, %111 : vector<2x32xf32>
    %113 = tpu.concatenate %103, %112 in 1 : vector<2x32xf32>, vector<2x32xf32> -> vector<2x64xf32>
    %cst_25 = arith.constant dense<0.000000e+00> : vector<2x256xf32>
    %114 = tpu.matmul %113, %8, %cst_25 {dimension_numbers = #tpu.dot_dimension_numbers<[1], [0], [0], [1], [0, 0, 1, 1], [], []>} : vector<2x64xf32>, vector<64x256xf32>, vector<2x256xf32> -> vector<2x256xf32>
    %115 = vector.extract_strided_slice %114 {offsets = [0, 0], sizes = [2, 128], strides = [1, 1]} : vector<2x256xf32> to vector<2x128xf32>
    %116 = vector.extract_strided_slice %12 {offsets = [4, 0], sizes = [2, 128], strides = [1, 1]} : vector<16x256xf32> to vector<2x128xf32>
    %117 = arith.addf %115, %116 : vector<2x128xf32>
    %118 = vector.extract_strided_slice %114 {offsets = [0, 128], sizes = [2, 128], strides = [1, 1]} : vector<2x256xf32> to vector<2x128xf32>
    %119 = vector.extract_strided_slice %12 {offsets = [10, 128], sizes = [2, 128], strides = [1, 1]} : vector<16x256xf32> to vector<2x128xf32>
    %120 = arith.addf %118, %119 : vector<2x128xf32>
    %121 = math.tanh %117 : vector<2x128xf32>
    %cst_26 = arith.constant 5.000000e-01 : f32
    %122 = vector.broadcast %cst_26 : f32 to vector<2x128xf32>
    %123 = arith.mulf %122, %117 : vector<2x128xf32>
    %124 = math.tanh %123 : vector<2x128xf32>
    %cst_27 = arith.constant 1.000000e+00 : f32
    %125 = vector.broadcast %cst_27 : f32 to vector<2x128xf32>
    %126 = arith.addf %124, %125 : vector<2x128xf32>
    %cst_28 = arith.constant 5.000000e-01 : f32
    %127 = vector.broadcast %cst_28 : f32 to vector<2x128xf32>
    %128 = arith.mulf %127, %126 : vector<2x128xf32>
    %129 = vector.shape_cast %5 : vector<1x128xi1> to vector<1x128xi1>
    %130 = vector.broadcast %129 : vector<1x128xi1> to vector<2x128xi1>
    %131 = arith.select %130, %121, %128 : vector<2x128xi1>, vector<2x128xf32>
    %132 = math.tanh %120 : vector<2x128xf32>
    %cst_29 = arith.constant 5.000000e-01 : f32
    %133 = vector.broadcast %cst_29 : f32 to vector<2x128xf32>
    %134 = arith.mulf %133, %120 : vector<2x128xf32>
    %135 = math.tanh %134 : vector<2x128xf32>
    %cst_30 = arith.constant 1.000000e+00 : f32
    %136 = vector.broadcast %cst_30 : f32 to vector<2x128xf32>
    %137 = arith.addf %135, %136 : vector<2x128xf32>
    %cst_31 = arith.constant 5.000000e-01 : f32
    %138 = vector.broadcast %cst_31 : f32 to vector<2x128xf32>
    %139 = arith.mulf %138, %137 : vector<2x128xf32>
    %140 = vector.shape_cast %5 : vector<1x128xi1> to vector<1x128xi1>
    %141 = vector.broadcast %140 : vector<1x128xi1> to vector<2x128xi1>
    %142 = arith.select %141, %132, %139 : vector<2x128xi1>, vector<2x128xf32>
    %143 = vector.extract_strided_slice %131 {offsets = [0, 32], sizes = [2, 32], strides = [1, 1]} : vector<2x128xf32> to vector<2x32xf32>
    %144 = arith.mulf %143, %100 : vector<2x32xf32>
    %145 = vector.extract_strided_slice %131 {offsets = [0, 0], sizes = [2, 32], strides = [1, 1]} : vector<2x128xf32> to vector<2x32xf32>
    %146 = vector.extract_strided_slice %131 {offsets = [0, 64], sizes = [2, 32], strides = [1, 1]} : vector<2x128xf32> to vector<2x32xf32>
    %147 = arith.mulf %145, %146 : vector<2x32xf32>
    %148 = arith.addf %144, %147 : vector<2x32xf32>
    %149 = vector.extract_strided_slice %131 {offsets = [0, 96], sizes = [2, 32], strides = [1, 1]} : vector<2x128xf32> to vector<2x32xf32>
    %150 = math.tanh %148 : vector<2x32xf32>
    %151 = arith.mulf %149, %150 : vector<2x32xf32>
    %152 = vector.extract_strided_slice %142 {offsets = [0, 32], sizes = [2, 32], strides = [1, 1]} : vector<2x128xf32> to vector<2x32xf32>
    %153 = arith.mulf %152, %109 : vector<2x32xf32>
    %154 = vector.extract_strided_slice %142 {offsets = [0, 0], sizes = [2, 32], strides = [1, 1]} : vector<2x128xf32> to vector<2x32xf32>
    %155 = vector.extract_strided_slice %142 {offsets = [0, 64], sizes = [2, 32], strides = [1, 1]} : vector<2x128xf32> to vector<2x32xf32>
    %156 = arith.mulf %154, %155 : vector<2x32xf32>
    %157 = arith.addf %153, %156 : vector<2x32xf32>
    %158 = vector.extract_strided_slice %142 {offsets = [0, 96], sizes = [2, 32], strides = [1, 1]} : vector<2x128xf32> to vector<2x32xf32>
    %159 = math.tanh %157 : vector<2x32xf32>
    %160 = arith.mulf %158, %159 : vector<2x32xf32>
    %161 = tpu.concatenate %151, %160 in 1 : vector<2x32xf32>, vector<2x32xf32> -> vector<2x64xf32>
    %cst_32 = arith.constant dense<0.000000e+00> : vector<2x256xf32>
    %162 = tpu.matmul %161, %8, %cst_32 {dimension_numbers = #tpu.dot_dimension_numbers<[1], [0], [0], [1], [0, 0, 1, 1], [], []>} : vector<2x64xf32>, vector<64x256xf32>, vector<2x256xf32> -> vector<2x256xf32>
    %163 = vector.extract_strided_slice %162 {offsets = [0, 0], sizes = [2, 128], strides = [1, 1]} : vector<2x256xf32> to vector<2x128xf32>
    %164 = vector.extract_strided_slice %12 {offsets = [6, 0], sizes = [2, 128], strides = [1, 1]} : vector<16x256xf32> to vector<2x128xf32>
    %165 = arith.addf %163, %164 : vector<2x128xf32>
    %166 = vector.extract_strided_slice %162 {offsets = [0, 128], sizes = [2, 128], strides = [1, 1]} : vector<2x256xf32> to vector<2x128xf32>
    %167 = vector.extract_strided_slice %12 {offsets = [8, 128], sizes = [2, 128], strides = [1, 1]} : vector<16x256xf32> to vector<2x128xf32>
    %168 = arith.addf %166, %167 : vector<2x128xf32>
    %169 = math.tanh %165 : vector<2x128xf32>
    %cst_33 = arith.constant 5.000000e-01 : f32
    %170 = vector.broadcast %cst_33 : f32 to vector<2x128xf32>
    %171 = arith.mulf %170, %165 : vector<2x128xf32>
    %172 = math.tanh %171 : vector<2x128xf32>
    %cst_34 = arith.constant 1.000000e+00 : f32
    %173 = vector.broadcast %cst_34 : f32 to vector<2x128xf32>
    %174 = arith.addf %172, %173 : vector<2x128xf32>
    %cst_35 = arith.constant 5.000000e-01 : f32
    %175 = vector.broadcast %cst_35 : f32 to vector<2x128xf32>
    %176 = arith.mulf %175, %174 : vector<2x128xf32>
    %177 = vector.shape_cast %5 : vector<1x128xi1> to vector<1x128xi1>
    %178 = vector.broadcast %177 : vector<1x128xi1> to vector<2x128xi1>
    %179 = arith.select %178, %169, %176 : vector<2x128xi1>, vector<2x128xf32>
    %180 = math.tanh %168 : vector<2x128xf32>
    %cst_36 = arith.constant 5.000000e-01 : f32
    %181 = vector.broadcast %cst_36 : f32 to vector<2x128xf32>
    %182 = arith.mulf %181, %168 : vector<2x128xf32>
    %183 = math.tanh %182 : vector<2x128xf32>
    %cst_37 = arith.constant 1.000000e+00 : f32
    %184 = vector.broadcast %cst_37 : f32 to vector<2x128xf32>
    %185 = arith.addf %183, %184 : vector<2x128xf32>
    %cst_38 = arith.constant 5.000000e-01 : f32
    %186 = vector.broadcast %cst_38 : f32 to vector<2x128xf32>
    %187 = arith.mulf %186, %185 : vector<2x128xf32>
    %188 = vector.shape_cast %5 : vector<1x128xi1> to vector<1x128xi1>
    %189 = vector.broadcast %188 : vector<1x128xi1> to vector<2x128xi1>
    %190 = arith.select %189, %180, %187 : vector<2x128xi1>, vector<2x128xf32>
    %191 = vector.extract_strided_slice %179 {offsets = [0, 32], sizes = [2, 32], strides = [1, 1]} : vector<2x128xf32> to vector<2x32xf32>
    %192 = arith.mulf %191, %148 : vector<2x32xf32>
    %193 = vector.extract_strided_slice %179 {offsets = [0, 0], sizes = [2, 32], strides = [1, 1]} : vector<2x128xf32> to vector<2x32xf32>
    %194 = vector.extract_strided_slice %179 {offsets = [0, 64], sizes = [2, 32], strides = [1, 1]} : vector<2x128xf32> to vector<2x32xf32>
    %195 = arith.mulf %193, %194 : vector<2x32xf32>
    %196 = arith.addf %192, %195 : vector<2x32xf32>
    %197 = vector.extract_strided_slice %179 {offsets = [0, 96], sizes = [2, 32], strides = [1, 1]} : vector<2x128xf32> to vector<2x32xf32>
    %198 = math.tanh %196 : vector<2x32xf32>
    %199 = arith.mulf %197, %198 : vector<2x32xf32>
    %200 = vector.extract_strided_slice %190 {offsets = [0, 32], sizes = [2, 32], strides = [1, 1]} : vector<2x128xf32> to vector<2x32xf32>
    %201 = arith.mulf %200, %157 : vector<2x32xf32>
    %202 = vector.extract_strided_slice %190 {offsets = [0, 0], sizes = [2, 32], strides = [1, 1]} : vector<2x128xf32> to vector<2x32xf32>
    %203 = vector.extract_strided_slice %190 {offsets = [0, 64], sizes = [2, 32], strides = [1, 1]} : vector<2x128xf32> to vector<2x32xf32>
    %204 = arith.mulf %202, %203 : vector<2x32xf32>
    %205 = arith.addf %201, %204 : vector<2x32xf32>
    %206 = vector.extract_strided_slice %190 {offsets = [0, 96], sizes = [2, 32], strides = [1, 1]} : vector<2x128xf32> to vector<2x32xf32>
    %207 = math.tanh %205 : vector<2x32xf32>
    %208 = arith.mulf %206, %207 : vector<2x32xf32>
    %209 = tpu.concatenate %199, %208 in 1 : vector<2x32xf32>, vector<2x32xf32> -> vector<2x64xf32>
    %cst_39 = arith.constant dense<0.000000e+00> : vector<2x256xf32>
    %210 = tpu.matmul %209, %8, %cst_39 {dimension_numbers = #tpu.dot_dimension_numbers<[1], [0], [0], [1], [0, 0, 1, 1], [], []>} : vector<2x64xf32>, vector<64x256xf32>, vector<2x256xf32> -> vector<2x256xf32>
    %211 = vector.extract_strided_slice %210 {offsets = [0, 0], sizes = [2, 128], strides = [1, 1]} : vector<2x256xf32> to vector<2x128xf32>
    %212 = vector.extract_strided_slice %12 {offsets = [8, 0], sizes = [2, 128], strides = [1, 1]} : vector<16x256xf32> to vector<2x128xf32>
    %213 = arith.addf %211, %212 : vector<2x128xf32>
    %214 = vector.extract_strided_slice %210 {offsets = [0, 128], sizes = [2, 128], strides = [1, 1]} : vector<2x256xf32> to vector<2x128xf32>
    %215 = vector.extract_strided_slice %12 {offsets = [6, 128], sizes = [2, 128], strides = [1, 1]} : vector<16x256xf32> to vector<2x128xf32>
    %216 = arith.addf %214, %215 : vector<2x128xf32>
    %217 = math.tanh %213 : vector<2x128xf32>
    %cst_40 = arith.constant 5.000000e-01 : f32
    %218 = vector.broadcast %cst_40 : f32 to vector<2x128xf32>
    %219 = arith.mulf %218, %213 : vector<2x128xf32>
    %220 = math.tanh %219 : vector<2x128xf32>
    %cst_41 = arith.constant 1.000000e+00 : f32
    %221 = vector.broadcast %cst_41 : f32 to vector<2x128xf32>
    %222 = arith.addf %220, %221 : vector<2x128xf32>
    %cst_42 = arith.constant 5.000000e-01 : f32
    %223 = vector.broadcast %cst_42 : f32 to vector<2x128xf32>
    %224 = arith.mulf %223, %222 : vector<2x128xf32>
    %225 = vector.shape_cast %5 : vector<1x128xi1> to vector<1x128xi1>
    %226 = vector.broadcast %225 : vector<1x128xi1> to vector<2x128xi1>
    %227 = arith.select %226, %217, %224 : vector<2x128xi1>, vector<2x128xf32>
    %228 = math.tanh %216 : vector<2x128xf32>
    %cst_43 = arith.constant 5.000000e-01 : f32
    %229 = vector.broadcast %cst_43 : f32 to vector<2x128xf32>
    %230 = arith.mulf %229, %216 : vector<2x128xf32>
    %231 = math.tanh %230 : vector<2x128xf32>
    %cst_44 = arith.constant 1.000000e+00 : f32
    %232 = vector.broadcast %cst_44 : f32 to vector<2x128xf32>
    %233 = arith.addf %231, %232 : vector<2x128xf32>
    %cst_45 = arith.constant 5.000000e-01 : f32
    %234 = vector.broadcast %cst_45 : f32 to vector<2x128xf32>
    %235 = arith.mulf %234, %233 : vector<2x128xf32>
    %236 = vector.shape_cast %5 : vector<1x128xi1> to vector<1x128xi1>
    %237 = vector.broadcast %236 : vector<1x128xi1> to vector<2x128xi1>
    %238 = arith.select %237, %228, %235 : vector<2x128xi1>, vector<2x128xf32>
    %239 = vector.extract_strided_slice %227 {offsets = [0, 32], sizes = [2, 32], strides = [1, 1]} : vector<2x128xf32> to vector<2x32xf32>
    %240 = arith.mulf %239, %196 : vector<2x32xf32>
    %241 = vector.extract_strided_slice %227 {offsets = [0, 0], sizes = [2, 32], strides = [1, 1]} : vector<2x128xf32> to vector<2x32xf32>
    %242 = vector.extract_strided_slice %227 {offsets = [0, 64], sizes = [2, 32], strides = [1, 1]} : vector<2x128xf32> to vector<2x32xf32>
    %243 = arith.mulf %241, %242 : vector<2x32xf32>
    %244 = arith.addf %240, %243 : vector<2x32xf32>
    %245 = vector.extract_strided_slice %227 {offsets = [0, 96], sizes = [2, 32], strides = [1, 1]} : vector<2x128xf32> to vector<2x32xf32>
    %246 = math.tanh %244 : vector<2x32xf32>
    %247 = arith.mulf %245, %246 : vector<2x32xf32>
    %248 = vector.extract_strided_slice %238 {offsets = [0, 32], sizes = [2, 32], strides = [1, 1]} : vector<2x128xf32> to vector<2x32xf32>
    %249 = arith.mulf %248, %205 : vector<2x32xf32>
    %250 = vector.extract_strided_slice %238 {offsets = [0, 0], sizes = [2, 32], strides = [1, 1]} : vector<2x128xf32> to vector<2x32xf32>
    %251 = vector.extract_strided_slice %238 {offsets = [0, 64], sizes = [2, 32], strides = [1, 1]} : vector<2x128xf32> to vector<2x32xf32>
    %252 = arith.mulf %250, %251 : vector<2x32xf32>
    %253 = arith.addf %249, %252 : vector<2x32xf32>
    %254 = vector.extract_strided_slice %238 {offsets = [0, 96], sizes = [2, 32], strides = [1, 1]} : vector<2x128xf32> to vector<2x32xf32>
    %255 = math.tanh %253 : vector<2x32xf32>
    %256 = arith.mulf %254, %255 : vector<2x32xf32>
    %257 = tpu.concatenate %247, %256 in 1 : vector<2x32xf32>, vector<2x32xf32> -> vector<2x64xf32>
    %cst_46 = arith.constant dense<0.000000e+00> : vector<2x256xf32>
    %258 = tpu.matmul %257, %8, %cst_46 {dimension_numbers = #tpu.dot_dimension_numbers<[1], [0], [0], [1], [0, 0, 1, 1], [], []>} : vector<2x64xf32>, vector<64x256xf32>, vector<2x256xf32> -> vector<2x256xf32>
    %259 = vector.extract_strided_slice %258 {offsets = [0, 0], sizes = [2, 128], strides = [1, 1]} : vector<2x256xf32> to vector<2x128xf32>
    %260 = vector.extract_strided_slice %12 {offsets = [10, 0], sizes = [2, 128], strides = [1, 1]} : vector<16x256xf32> to vector<2x128xf32>
    %261 = arith.addf %259, %260 : vector<2x128xf32>
    %262 = vector.extract_strided_slice %258 {offsets = [0, 128], sizes = [2, 128], strides = [1, 1]} : vector<2x256xf32> to vector<2x128xf32>
    %263 = vector.extract_strided_slice %12 {offsets = [4, 128], sizes = [2, 128], strides = [1, 1]} : vector<16x256xf32> to vector<2x128xf32>
    %264 = arith.addf %262, %263 : vector<2x128xf32>
    %265 = math.tanh %261 : vector<2x128xf32>
    %cst_47 = arith.constant 5.000000e-01 : f32
    %266 = vector.broadcast %cst_47 : f32 to vector<2x128xf32>
    %267 = arith.mulf %266, %261 : vector<2x128xf32>
    %268 = math.tanh %267 : vector<2x128xf32>
    %cst_48 = arith.constant 1.000000e+00 : f32
    %269 = vector.broadcast %cst_48 : f32 to vector<2x128xf32>
    %270 = arith.addf %268, %269 : vector<2x128xf32>
    %cst_49 = arith.constant 5.000000e-01 : f32
    %271 = vector.broadcast %cst_49 : f32 to vector<2x128xf32>
    %272 = arith.mulf %271, %270 : vector<2x128xf32>
    %273 = vector.shape_cast %5 : vector<1x128xi1> to vector<1x128xi1>
    %274 = vector.broadcast %273 : vector<1x128xi1> to vector<2x128xi1>
    %275 = arith.select %274, %265, %272 : vector<2x128xi1>, vector<2x128xf32>
    %276 = math.tanh %264 : vector<2x128xf32>
    %cst_50 = arith.constant 5.000000e-01 : f32
    %277 = vector.broadcast %cst_50 : f32 to vector<2x128xf32>
    %278 = arith.mulf %277, %264 : vector<2x128xf32>
    %279 = math.tanh %278 : vector<2x128xf32>
    %cst_51 = arith.constant 1.000000e+00 : f32
    %280 = vector.broadcast %cst_51 : f32 to vector<2x128xf32>
    %281 = arith.addf %279, %280 : vector<2x128xf32>
    %cst_52 = arith.constant 5.000000e-01 : f32
    %282 = vector.broadcast %cst_52 : f32 to vector<2x128xf32>
    %283 = arith.mulf %282, %281 : vector<2x128xf32>
    %284 = vector.shape_cast %5 : vector<1x128xi1> to vector<1x128xi1>
    %285 = vector.broadcast %284 : vector<1x128xi1> to vector<2x128xi1>
    %286 = arith.select %285, %276, %283 : vector<2x128xi1>, vector<2x128xf32>
    %287 = vector.extract_strided_slice %275 {offsets = [0, 32], sizes = [2, 32], strides = [1, 1]} : vector<2x128xf32> to vector<2x32xf32>
    %288 = arith.mulf %287, %244 : vector<2x32xf32>
    %289 = vector.extract_strided_slice %275 {offsets = [0, 0], sizes = [2, 32], strides = [1, 1]} : vector<2x128xf32> to vector<2x32xf32>
    %290 = vector.extract_strided_slice %275 {offsets = [0, 64], sizes = [2, 32], strides = [1, 1]} : vector<2x128xf32> to vector<2x32xf32>
    %291 = arith.mulf %289, %290 : vector<2x32xf32>
    %292 = arith.addf %288, %291 : vector<2x32xf32>
    %293 = vector.extract_strided_slice %275 {offsets = [0, 96], sizes = [2, 32], strides = [1, 1]} : vector<2x128xf32> to vector<2x32xf32>
    %294 = math.tanh %292 : vector<2x32xf32>
    %295 = arith.mulf %293, %294 : vector<2x32xf32>
    %296 = vector.extract_strided_slice %286 {offsets = [0, 32], sizes = [2, 32], strides = [1, 1]} : vector<2x128xf32> to vector<2x32xf32>
    %297 = arith.mulf %296, %253 : vector<2x32xf32>
    %298 = vector.extract_strided_slice %286 {offsets = [0, 0], sizes = [2, 32], strides = [1, 1]} : vector<2x128xf32> to vector<2x32xf32>
    %299 = vector.extract_strided_slice %286 {offsets = [0, 64], sizes = [2, 32], strides = [1, 1]} : vector<2x128xf32> to vector<2x32xf32>
    %300 = arith.mulf %298, %299 : vector<2x32xf32>
    %301 = arith.addf %297, %300 : vector<2x32xf32>
    %302 = vector.extract_strided_slice %286 {offsets = [0, 96], sizes = [2, 32], strides = [1, 1]} : vector<2x128xf32> to vector<2x32xf32>
    %303 = math.tanh %301 : vector<2x32xf32>
    %304 = arith.mulf %302, %303 : vector<2x32xf32>
    %305 = tpu.concatenate %295, %304 in 1 : vector<2x32xf32>, vector<2x32xf32> -> vector<2x64xf32>
    %cst_53 = arith.constant dense<0.000000e+00> : vector<2x256xf32>
    %306 = tpu.matmul %305, %8, %cst_53 {dimension_numbers = #tpu.dot_dimension_numbers<[1], [0], [0], [1], [0, 0, 1, 1], [], []>} : vector<2x64xf32>, vector<64x256xf32>, vector<2x256xf32> -> vector<2x256xf32>
    %307 = vector.extract_strided_slice %306 {offsets = [0, 0], sizes = [2, 128], strides = [1, 1]} : vector<2x256xf32> to vector<2x128xf32>
    %308 = vector.extract_strided_slice %12 {offsets = [12, 0], sizes = [2, 128], strides = [1, 1]} : vector<16x256xf32> to vector<2x128xf32>
    %309 = arith.addf %307, %308 : vector<2x128xf32>
    %310 = vector.extract_strided_slice %306 {offsets = [0, 128], sizes = [2, 128], strides = [1, 1]} : vector<2x256xf32> to vector<2x128xf32>
    %311 = vector.extract_strided_slice %12 {offsets = [2, 128], sizes = [2, 128], strides = [1, 1]} : vector<16x256xf32> to vector<2x128xf32>
    %312 = arith.addf %310, %311 : vector<2x128xf32>
    %313 = math.tanh %309 : vector<2x128xf32>
    %cst_54 = arith.constant 5.000000e-01 : f32
    %314 = vector.broadcast %cst_54 : f32 to vector<2x128xf32>
    %315 = arith.mulf %314, %309 : vector<2x128xf32>
    %316 = math.tanh %315 : vector<2x128xf32>
    %cst_55 = arith.constant 1.000000e+00 : f32
    %317 = vector.broadcast %cst_55 : f32 to vector<2x128xf32>
    %318 = arith.addf %316, %317 : vector<2x128xf32>
    %cst_56 = arith.constant 5.000000e-01 : f32
    %319 = vector.broadcast %cst_56 : f32 to vector<2x128xf32>
    %320 = arith.mulf %319, %318 : vector<2x128xf32>
    %321 = vector.shape_cast %5 : vector<1x128xi1> to vector<1x128xi1>
    %322 = vector.broadcast %321 : vector<1x128xi1> to vector<2x128xi1>
    %323 = arith.select %322, %313, %320 : vector<2x128xi1>, vector<2x128xf32>
    %324 = math.tanh %312 : vector<2x128xf32>
    %cst_57 = arith.constant 5.000000e-01 : f32
    %325 = vector.broadcast %cst_57 : f32 to vector<2x128xf32>
    %326 = arith.mulf %325, %312 : vector<2x128xf32>
    %327 = math.tanh %326 : vector<2x128xf32>
    %cst_58 = arith.constant 1.000000e+00 : f32
    %328 = vector.broadcast %cst_58 : f32 to vector<2x128xf32>
    %329 = arith.addf %327, %328 : vector<2x128xf32>
    %cst_59 = arith.constant 5.000000e-01 : f32
    %330 = vector.broadcast %cst_59 : f32 to vector<2x128xf32>
    %331 = arith.mulf %330, %329 : vector<2x128xf32>
    %332 = vector.shape_cast %5 : vector<1x128xi1> to vector<1x128xi1>
    %333 = vector.broadcast %332 : vector<1x128xi1> to vector<2x128xi1>
    %334 = arith.select %333, %324, %331 : vector<2x128xi1>, vector<2x128xf32>
    %335 = vector.extract_strided_slice %323 {offsets = [0, 32], sizes = [2, 32], strides = [1, 1]} : vector<2x128xf32> to vector<2x32xf32>
    %336 = arith.mulf %335, %292 : vector<2x32xf32>
    %337 = vector.extract_strided_slice %323 {offsets = [0, 0], sizes = [2, 32], strides = [1, 1]} : vector<2x128xf32> to vector<2x32xf32>
    %338 = vector.extract_strided_slice %323 {offsets = [0, 64], sizes = [2, 32], strides = [1, 1]} : vector<2x128xf32> to vector<2x32xf32>
    %339 = arith.mulf %337, %338 : vector<2x32xf32>
    %340 = arith.addf %336, %339 : vector<2x32xf32>
    %341 = vector.extract_strided_slice %323 {offsets = [0, 96], sizes = [2, 32], strides = [1, 1]} : vector<2x128xf32> to vector<2x32xf32>
    %342 = math.tanh %340 : vector<2x32xf32>
    %343 = arith.mulf %341, %342 : vector<2x32xf32>
    %344 = vector.extract_strided_slice %334 {offsets = [0, 32], sizes = [2, 32], strides = [1, 1]} : vector<2x128xf32> to vector<2x32xf32>
    %345 = arith.mulf %344, %301 : vector<2x32xf32>
    %346 = vector.extract_strided_slice %334 {offsets = [0, 0], sizes = [2, 32], strides = [1, 1]} : vector<2x128xf32> to vector<2x32xf32>
    %347 = vector.extract_strided_slice %334 {offsets = [0, 64], sizes = [2, 32], strides = [1, 1]} : vector<2x128xf32> to vector<2x32xf32>
    %348 = arith.mulf %346, %347 : vector<2x32xf32>
    %349 = arith.addf %345, %348 : vector<2x32xf32>
    %350 = vector.extract_strided_slice %334 {offsets = [0, 96], sizes = [2, 32], strides = [1, 1]} : vector<2x128xf32> to vector<2x32xf32>
    %351 = math.tanh %349 : vector<2x32xf32>
    %352 = arith.mulf %350, %351 : vector<2x32xf32>
    %353 = tpu.concatenate %343, %352 in 1 : vector<2x32xf32>, vector<2x32xf32> -> vector<2x64xf32>
    %cst_60 = arith.constant dense<0.000000e+00> : vector<2x256xf32>
    %354 = tpu.matmul %353, %8, %cst_60 {dimension_numbers = #tpu.dot_dimension_numbers<[1], [0], [0], [1], [0, 0, 1, 1], [], []>} : vector<2x64xf32>, vector<64x256xf32>, vector<2x256xf32> -> vector<2x256xf32>
    %355 = vector.extract_strided_slice %354 {offsets = [0, 0], sizes = [2, 128], strides = [1, 1]} : vector<2x256xf32> to vector<2x128xf32>
    %356 = vector.extract_strided_slice %12 {offsets = [14, 0], sizes = [2, 128], strides = [1, 1]} : vector<16x256xf32> to vector<2x128xf32>
    %357 = arith.addf %355, %356 : vector<2x128xf32>
    %358 = vector.extract_strided_slice %354 {offsets = [0, 128], sizes = [2, 128], strides = [1, 1]} : vector<2x256xf32> to vector<2x128xf32>
    %359 = vector.extract_strided_slice %12 {offsets = [0, 128], sizes = [2, 128], strides = [1, 1]} : vector<16x256xf32> to vector<2x128xf32>
    %360 = arith.addf %358, %359 : vector<2x128xf32>
    %361 = math.tanh %357 : vector<2x128xf32>
    %cst_61 = arith.constant 5.000000e-01 : f32
    %362 = vector.broadcast %cst_61 : f32 to vector<2x128xf32>
    %363 = arith.mulf %362, %357 : vector<2x128xf32>
    %364 = math.tanh %363 : vector<2x128xf32>
    %cst_62 = arith.constant 1.000000e+00 : f32
    %365 = vector.broadcast %cst_62 : f32 to vector<2x128xf32>
    %366 = arith.addf %364, %365 : vector<2x128xf32>
    %cst_63 = arith.constant 5.000000e-01 : f32
    %367 = vector.broadcast %cst_63 : f32 to vector<2x128xf32>
    %368 = arith.mulf %367, %366 : vector<2x128xf32>
    %369 = vector.shape_cast %5 : vector<1x128xi1> to vector<1x128xi1>
    %370 = vector.broadcast %369 : vector<1x128xi1> to vector<2x128xi1>
    %371 = arith.select %370, %361, %368 : vector<2x128xi1>, vector<2x128xf32>
    %372 = math.tanh %360 : vector<2x128xf32>
    %cst_64 = arith.constant 5.000000e-01 : f32
    %373 = vector.broadcast %cst_64 : f32 to vector<2x128xf32>
    %374 = arith.mulf %373, %360 : vector<2x128xf32>
    %375 = math.tanh %374 : vector<2x128xf32>
    %cst_65 = arith.constant 1.000000e+00 : f32
    %376 = vector.broadcast %cst_65 : f32 to vector<2x128xf32>
    %377 = arith.addf %375, %376 : vector<2x128xf32>
    %cst_66 = arith.constant 5.000000e-01 : f32
    %378 = vector.broadcast %cst_66 : f32 to vector<2x128xf32>
    %379 = arith.mulf %378, %377 : vector<2x128xf32>
    %380 = vector.shape_cast %5 : vector<1x128xi1> to vector<1x128xi1>
    %381 = vector.broadcast %380 : vector<1x128xi1> to vector<2x128xi1>
    %382 = arith.select %381, %372, %379 : vector<2x128xi1>, vector<2x128xf32>
    %383 = vector.extract_strided_slice %371 {offsets = [0, 32], sizes = [2, 32], strides = [1, 1]} : vector<2x128xf32> to vector<2x32xf32>
    %384 = arith.mulf %383, %340 : vector<2x32xf32>
    %385 = vector.extract_strided_slice %371 {offsets = [0, 0], sizes = [2, 32], strides = [1, 1]} : vector<2x128xf32> to vector<2x32xf32>
    %386 = vector.extract_strided_slice %371 {offsets = [0, 64], sizes = [2, 32], strides = [1, 1]} : vector<2x128xf32> to vector<2x32xf32>
    %387 = arith.mulf %385, %386 : vector<2x32xf32>
    %388 = arith.addf %384, %387 : vector<2x32xf32>
    %389 = vector.extract_strided_slice %371 {offsets = [0, 96], sizes = [2, 32], strides = [1, 1]} : vector<2x128xf32> to vector<2x32xf32>
    %390 = math.tanh %388 : vector<2x32xf32>
    %391 = arith.mulf %389, %390 : vector<2x32xf32>
    %392 = vector.extract_strided_slice %382 {offsets = [0, 32], sizes = [2, 32], strides = [1, 1]} : vector<2x128xf32> to vector<2x32xf32>
    %393 = arith.mulf %392, %349 : vector<2x32xf32>
    %394 = vector.extract_strided_slice %382 {offsets = [0, 0], sizes = [2, 32], strides = [1, 1]} : vector<2x128xf32> to vector<2x32xf32>
    %395 = vector.extract_strided_slice %382 {offsets = [0, 64], sizes = [2, 32], strides = [1, 1]} : vector<2x128xf32> to vector<2x32xf32>
    %396 = arith.mulf %394, %395 : vector<2x32xf32>
    %397 = arith.addf %393, %396 : vector<2x32xf32>
    %398 = vector.extract_strided_slice %382 {offsets = [0, 96], sizes = [2, 32], strides = [1, 1]} : vector<2x128xf32> to vector<2x32xf32>
    %399 = math.tanh %397 : vector<2x32xf32>
    %400 = arith.mulf %398, %399 : vector<2x32xf32>
    %401 = tpu.concatenate %55, %400 in 1 : vector<2x32xf32>, vector<2x32xf32> -> vector<2x64xf32>
    %402 = tpu.concatenate %103, %352 in 1 : vector<2x32xf32>, vector<2x32xf32> -> vector<2x64xf32>
    %403 = tpu.concatenate %151, %304 in 1 : vector<2x32xf32>, vector<2x32xf32> -> vector<2x64xf32>
    %404 = tpu.concatenate %199, %256 in 1 : vector<2x32xf32>, vector<2x32xf32> -> vector<2x64xf32>
    %405 = tpu.concatenate %247, %208 in 1 : vector<2x32xf32>, vector<2x32xf32> -> vector<2x64xf32>
    %406 = tpu.concatenate %295, %160 in 1 : vector<2x32xf32>, vector<2x32xf32> -> vector<2x64xf32>
    %407 = tpu.concatenate %343, %112 in 1 : vector<2x32xf32>, vector<2x32xf32> -> vector<2x64xf32>
    %408 = tpu.concatenate %391, %64 in 1 : vector<2x32xf32>, vector<2x32xf32> -> vector<2x64xf32>
    %409 = tpu.concatenate %401, %402, %403, %404, %405, %406, %407, %408 in 0 : vector<2x64xf32>, vector<2x64xf32>, vector<2x64xf32>, vector<2x64xf32>, vector<2x64xf32>, vector<2x64xf32>, vector<2x64xf32>, vector<2x64xf32> -> vector<16x64xf32>
    %c0_67 = arith.constant 0 : index
    %c0_68 = arith.constant 0 : index
    %410 = vector.load %arg5[%c0_67, %c0_68] : memref<64x256xf32, #tpu.memory_space<vmem>>, vector<64x256xf32>
    %c0_69 = arith.constant 0 : index
    %c0_70 = arith.constant 0 : index
    %411 = vector.load %arg6[%c0_69, %c0_70] : memref<64x256xf32, #tpu.memory_space<vmem>>, vector<64x256xf32>
    %c0_71 = arith.constant 0 : index
    %c0_72 = arith.constant 0 : index
    %412 = vector.load %arg7[%c0_71, %c0_72] : memref<1x256xf32, #tpu.memory_space<vmem>>, vector<1x256xf32>
    %cst_73 = arith.constant dense<0.000000e+00> : vector<16x256xf32>
    %413 = tpu.matmul %409, %410, %cst_73 {dimension_numbers = #tpu.dot_dimension_numbers<[1], [0], [0], [1], [0, 0, 1, 1], [], []>} : vector<16x64xf32>, vector<64x256xf32>, vector<16x256xf32> -> vector<16x256xf32>
    %414 = vector.broadcast %412 : vector<1x256xf32> to vector<16x256xf32>
    %415 = arith.addf %413, %414 : vector<16x256xf32>
    %cst_74 = arith.constant 0.000000e+00 : f32
    %416 = vector.broadcast %cst_74 : f32 to vector<2x32xf32>
    %cst_75 = arith.constant 0.000000e+00 : f32
    %417 = vector.broadcast %cst_75 : f32 to vector<2x32xf32>
    %cst_76 = arith.constant 0.000000e+00 : f32
    %418 = vector.broadcast %cst_76 : f32 to vector<2x32xf32>
    %cst_77 = arith.constant 0.000000e+00 : f32
    %419 = vector.broadcast %cst_77 : f32 to vector<2x32xf32>
    %420 = tpu.concatenate %416, %418 in 1 : vector<2x32xf32>, vector<2x32xf32> -> vector<2x64xf32>
    %cst_78 = arith.constant dense<0.000000e+00> : vector<2x256xf32>
    %421 = tpu.matmul %420, %411, %cst_78 {dimension_numbers = #tpu.dot_dimension_numbers<[1], [0], [0], [1], [0, 0, 1, 1], [], []>} : vector<2x64xf32>, vector<64x256xf32>, vector<2x256xf32> -> vector<2x256xf32>
    %422 = vector.extract_strided_slice %421 {offsets = [0, 0], sizes = [2, 128], strides = [1, 1]} : vector<2x256xf32> to vector<2x128xf32>
    %423 = vector.extract_strided_slice %415 {offsets = [0, 0], sizes = [2, 128], strides = [1, 1]} : vector<16x256xf32> to vector<2x128xf32>
    %424 = arith.addf %422, %423 : vector<2x128xf32>
    %425 = vector.extract_strided_slice %421 {offsets = [0, 128], sizes = [2, 128], strides = [1, 1]} : vector<2x256xf32> to vector<2x128xf32>
    %426 = vector.extract_strided_slice %415 {offsets = [14, 128], sizes = [2, 128], strides = [1, 1]} : vector<16x256xf32> to vector<2x128xf32>
    %427 = arith.addf %425, %426 : vector<2x128xf32>
    %428 = math.tanh %424 : vector<2x128xf32>
    %cst_79 = arith.constant 5.000000e-01 : f32
    %429 = vector.broadcast %cst_79 : f32 to vector<2x128xf32>
    %430 = arith.mulf %429, %424 : vector<2x128xf32>
    %431 = math.tanh %430 : vector<2x128xf32>
    %cst_80 = arith.constant 1.000000e+00 : f32
    %432 = vector.broadcast %cst_80 : f32 to vector<2x128xf32>
    %433 = arith.addf %431, %432 : vector<2x128xf32>
    %cst_81 = arith.constant 5.000000e-01 : f32
    %434 = vector.broadcast %cst_81 : f32 to vector<2x128xf32>
    %435 = arith.mulf %434, %433 : vector<2x128xf32>
    %436 = vector.shape_cast %5 : vector<1x128xi1> to vector<1x128xi1>
    %437 = vector.broadcast %436 : vector<1x128xi1> to vector<2x128xi1>
    %438 = arith.select %437, %428, %435 : vector<2x128xi1>, vector<2x128xf32>
    %439 = math.tanh %427 : vector<2x128xf32>
    %cst_82 = arith.constant 5.000000e-01 : f32
    %440 = vector.broadcast %cst_82 : f32 to vector<2x128xf32>
    %441 = arith.mulf %440, %427 : vector<2x128xf32>
    %442 = math.tanh %441 : vector<2x128xf32>
    %cst_83 = arith.constant 1.000000e+00 : f32
    %443 = vector.broadcast %cst_83 : f32 to vector<2x128xf32>
    %444 = arith.addf %442, %443 : vector<2x128xf32>
    %cst_84 = arith.constant 5.000000e-01 : f32
    %445 = vector.broadcast %cst_84 : f32 to vector<2x128xf32>
    %446 = arith.mulf %445, %444 : vector<2x128xf32>
    %447 = vector.shape_cast %5 : vector<1x128xi1> to vector<1x128xi1>
    %448 = vector.broadcast %447 : vector<1x128xi1> to vector<2x128xi1>
    %449 = arith.select %448, %439, %446 : vector<2x128xi1>, vector<2x128xf32>
    %450 = vector.extract_strided_slice %438 {offsets = [0, 32], sizes = [2, 32], strides = [1, 1]} : vector<2x128xf32> to vector<2x32xf32>
    %451 = arith.mulf %450, %417 : vector<2x32xf32>
    %452 = vector.extract_strided_slice %438 {offsets = [0, 0], sizes = [2, 32], strides = [1, 1]} : vector<2x128xf32> to vector<2x32xf32>
    %453 = vector.extract_strided_slice %438 {offsets = [0, 64], sizes = [2, 32], strides = [1, 1]} : vector<2x128xf32> to vector<2x32xf32>
    %454 = arith.mulf %452, %453 : vector<2x32xf32>
    %455 = arith.addf %451, %454 : vector<2x32xf32>
    %456 = vector.extract_strided_slice %438 {offsets = [0, 96], sizes = [2, 32], strides = [1, 1]} : vector<2x128xf32> to vector<2x32xf32>
    %457 = math.tanh %455 : vector<2x32xf32>
    %458 = arith.mulf %456, %457 : vector<2x32xf32>
    %459 = vector.extract_strided_slice %449 {offsets = [0, 32], sizes = [2, 32], strides = [1, 1]} : vector<2x128xf32> to vector<2x32xf32>
    %460 = arith.mulf %459, %419 : vector<2x32xf32>
    %461 = vector.extract_strided_slice %449 {offsets = [0, 0], sizes = [2, 32], strides = [1, 1]} : vector<2x128xf32> to vector<2x32xf32>
    %462 = vector.extract_strided_slice %449 {offsets = [0, 64], sizes = [2, 32], strides = [1, 1]} : vector<2x128xf32> to vector<2x32xf32>
    %463 = arith.mulf %461, %462 : vector<2x32xf32>
    %464 = arith.addf %460, %463 : vector<2x32xf32>
    %465 = vector.extract_strided_slice %449 {offsets = [0, 96], sizes = [2, 32], strides = [1, 1]} : vector<2x128xf32> to vector<2x32xf32>
    %466 = math.tanh %464 : vector<2x32xf32>
    %467 = arith.mulf %465, %466 : vector<2x32xf32>
    %468 = tpu.concatenate %458, %467 in 1 : vector<2x32xf32>, vector<2x32xf32> -> vector<2x64xf32>
    %cst_85 = arith.constant dense<0.000000e+00> : vector<2x256xf32>
    %469 = tpu.matmul %468, %411, %cst_85 {dimension_numbers = #tpu.dot_dimension_numbers<[1], [0], [0], [1], [0, 0, 1, 1], [], []>} : vector<2x64xf32>, vector<64x256xf32>, vector<2x256xf32> -> vector<2x256xf32>
    %470 = vector.extract_strided_slice %469 {offsets = [0, 0], sizes = [2, 128], strides = [1, 1]} : vector<2x256xf32> to vector<2x128xf32>
    %471 = vector.extract_strided_slice %415 {offsets = [2, 0], sizes = [2, 128], strides = [1, 1]} : vector<16x256xf32> to vector<2x128xf32>
    %472 = arith.addf %470, %471 : vector<2x128xf32>
    %473 = vector.extract_strided_slice %469 {offsets = [0, 128], sizes = [2, 128], strides = [1, 1]} : vector<2x256xf32> to vector<2x128xf32>
    %474 = vector.extract_strided_slice %415 {offsets = [12, 128], sizes = [2, 128], strides = [1, 1]} : vector<16x256xf32> to vector<2x128xf32>
    %475 = arith.addf %473, %474 : vector<2x128xf32>
    %476 = math.tanh %472 : vector<2x128xf32>
    %cst_86 = arith.constant 5.000000e-01 : f32
    %477 = vector.broadcast %cst_86 : f32 to vector<2x128xf32>
    %478 = arith.mulf %477, %472 : vector<2x128xf32>
    %479 = math.tanh %478 : vector<2x128xf32>
    %cst_87 = arith.constant 1.000000e+00 : f32
    %480 = vector.broadcast %cst_87 : f32 to vector<2x128xf32>
    %481 = arith.addf %479, %480 : vector<2x128xf32>
    %cst_88 = arith.constant 5.000000e-01 : f32
    %482 = vector.broadcast %cst_88 : f32 to vector<2x128xf32>
    %483 = arith.mulf %482, %481 : vector<2x128xf32>
    %484 = vector.shape_cast %5 : vector<1x128xi1> to vector<1x128xi1>
    %485 = vector.broadcast %484 : vector<1x128xi1> to vector<2x128xi1>
    %486 = arith.select %485, %476, %483 : vector<2x128xi1>, vector<2x128xf32>
    %487 = math.tanh %475 : vector<2x128xf32>
    %cst_89 = arith.constant 5.000000e-01 : f32
    %488 = vector.broadcast %cst_89 : f32 to vector<2x128xf32>
    %489 = arith.mulf %488, %475 : vector<2x128xf32>
    %490 = math.tanh %489 : vector<2x128xf32>
    %cst_90 = arith.constant 1.000000e+00 : f32
    %491 = vector.broadcast %cst_90 : f32 to vector<2x128xf32>
    %492 = arith.addf %490, %491 : vector<2x128xf32>
    %cst_91 = arith.constant 5.000000e-01 : f32
    %493 = vector.broadcast %cst_91 : f32 to vector<2x128xf32>
    %494 = arith.mulf %493, %492 : vector<2x128xf32>
    %495 = vector.shape_cast %5 : vector<1x128xi1> to vector<1x128xi1>
    %496 = vector.broadcast %495 : vector<1x128xi1> to vector<2x128xi1>
    %497 = arith.select %496, %487, %494 : vector<2x128xi1>, vector<2x128xf32>
    %498 = vector.extract_strided_slice %486 {offsets = [0, 32], sizes = [2, 32], strides = [1, 1]} : vector<2x128xf32> to vector<2x32xf32>
    %499 = arith.mulf %498, %455 : vector<2x32xf32>
    %500 = vector.extract_strided_slice %486 {offsets = [0, 0], sizes = [2, 32], strides = [1, 1]} : vector<2x128xf32> to vector<2x32xf32>
    %501 = vector.extract_strided_slice %486 {offsets = [0, 64], sizes = [2, 32], strides = [1, 1]} : vector<2x128xf32> to vector<2x32xf32>
    %502 = arith.mulf %500, %501 : vector<2x32xf32>
    %503 = arith.addf %499, %502 : vector<2x32xf32>
    %504 = vector.extract_strided_slice %486 {offsets = [0, 96], sizes = [2, 32], strides = [1, 1]} : vector<2x128xf32> to vector<2x32xf32>
    %505 = math.tanh %503 : vector<2x32xf32>
    %506 = arith.mulf %504, %505 : vector<2x32xf32>
    %507 = vector.extract_strided_slice %497 {offsets = [0, 32], sizes = [2, 32], strides = [1, 1]} : vector<2x128xf32> to vector<2x32xf32>
    %508 = arith.mulf %507, %464 : vector<2x32xf32>
    %509 = vector.extract_strided_slice %497 {offsets = [0, 0], sizes = [2, 32], strides = [1, 1]} : vector<2x128xf32> to vector<2x32xf32>
    %510 = vector.extract_strided_slice %497 {offsets = [0, 64], sizes = [2, 32], strides = [1, 1]} : vector<2x128xf32> to vector<2x32xf32>
    %511 = arith.mulf %509, %510 : vector<2x32xf32>
    %512 = arith.addf %508, %511 : vector<2x32xf32>
    %513 = vector.extract_strided_slice %497 {offsets = [0, 96], sizes = [2, 32], strides = [1, 1]} : vector<2x128xf32> to vector<2x32xf32>
    %514 = math.tanh %512 : vector<2x32xf32>
    %515 = arith.mulf %513, %514 : vector<2x32xf32>
    %516 = tpu.concatenate %506, %515 in 1 : vector<2x32xf32>, vector<2x32xf32> -> vector<2x64xf32>
    %cst_92 = arith.constant dense<0.000000e+00> : vector<2x256xf32>
    %517 = tpu.matmul %516, %411, %cst_92 {dimension_numbers = #tpu.dot_dimension_numbers<[1], [0], [0], [1], [0, 0, 1, 1], [], []>} : vector<2x64xf32>, vector<64x256xf32>, vector<2x256xf32> -> vector<2x256xf32>
    %518 = vector.extract_strided_slice %517 {offsets = [0, 0], sizes = [2, 128], strides = [1, 1]} : vector<2x256xf32> to vector<2x128xf32>
    %519 = vector.extract_strided_slice %415 {offsets = [4, 0], sizes = [2, 128], strides = [1, 1]} : vector<16x256xf32> to vector<2x128xf32>
    %520 = arith.addf %518, %519 : vector<2x128xf32>
    %521 = vector.extract_strided_slice %517 {offsets = [0, 128], sizes = [2, 128], strides = [1, 1]} : vector<2x256xf32> to vector<2x128xf32>
    %522 = vector.extract_strided_slice %415 {offsets = [10, 128], sizes = [2, 128], strides = [1, 1]} : vector<16x256xf32> to vector<2x128xf32>
    %523 = arith.addf %521, %522 : vector<2x128xf32>
    %524 = math.tanh %520 : vector<2x128xf32>
    %cst_93 = arith.constant 5.000000e-01 : f32
    %525 = vector.broadcast %cst_93 : f32 to vector<2x128xf32>
    %526 = arith.mulf %525, %520 : vector<2x128xf32>
    %527 = math.tanh %526 : vector<2x128xf32>
    %cst_94 = arith.constant 1.000000e+00 : f32
    %528 = vector.broadcast %cst_94 : f32 to vector<2x128xf32>
    %529 = arith.addf %527, %528 : vector<2x128xf32>
    %cst_95 = arith.constant 5.000000e-01 : f32
    %530 = vector.broadcast %cst_95 : f32 to vector<2x128xf32>
    %531 = arith.mulf %530, %529 : vector<2x128xf32>
    %532 = vector.shape_cast %5 : vector<1x128xi1> to vector<1x128xi1>
    %533 = vector.broadcast %532 : vector<1x128xi1> to vector<2x128xi1>
    %534 = arith.select %533, %524, %531 : vector<2x128xi1>, vector<2x128xf32>
    %535 = math.tanh %523 : vector<2x128xf32>
    %cst_96 = arith.constant 5.000000e-01 : f32
    %536 = vector.broadcast %cst_96 : f32 to vector<2x128xf32>
    %537 = arith.mulf %536, %523 : vector<2x128xf32>
    %538 = math.tanh %537 : vector<2x128xf32>
    %cst_97 = arith.constant 1.000000e+00 : f32
    %539 = vector.broadcast %cst_97 : f32 to vector<2x128xf32>
    %540 = arith.addf %538, %539 : vector<2x128xf32>
    %cst_98 = arith.constant 5.000000e-01 : f32
    %541 = vector.broadcast %cst_98 : f32 to vector<2x128xf32>
    %542 = arith.mulf %541, %540 : vector<2x128xf32>
    %543 = vector.shape_cast %5 : vector<1x128xi1> to vector<1x128xi1>
    %544 = vector.broadcast %543 : vector<1x128xi1> to vector<2x128xi1>
    %545 = arith.select %544, %535, %542 : vector<2x128xi1>, vector<2x128xf32>
    %546 = vector.extract_strided_slice %534 {offsets = [0, 32], sizes = [2, 32], strides = [1, 1]} : vector<2x128xf32> to vector<2x32xf32>
    %547 = arith.mulf %546, %503 : vector<2x32xf32>
    %548 = vector.extract_strided_slice %534 {offsets = [0, 0], sizes = [2, 32], strides = [1, 1]} : vector<2x128xf32> to vector<2x32xf32>
    %549 = vector.extract_strided_slice %534 {offsets = [0, 64], sizes = [2, 32], strides = [1, 1]} : vector<2x128xf32> to vector<2x32xf32>
    %550 = arith.mulf %548, %549 : vector<2x32xf32>
    %551 = arith.addf %547, %550 : vector<2x32xf32>
    %552 = vector.extract_strided_slice %534 {offsets = [0, 96], sizes = [2, 32], strides = [1, 1]} : vector<2x128xf32> to vector<2x32xf32>
    %553 = math.tanh %551 : vector<2x32xf32>
    %554 = arith.mulf %552, %553 : vector<2x32xf32>
    %555 = vector.extract_strided_slice %545 {offsets = [0, 32], sizes = [2, 32], strides = [1, 1]} : vector<2x128xf32> to vector<2x32xf32>
    %556 = arith.mulf %555, %512 : vector<2x32xf32>
    %557 = vector.extract_strided_slice %545 {offsets = [0, 0], sizes = [2, 32], strides = [1, 1]} : vector<2x128xf32> to vector<2x32xf32>
    %558 = vector.extract_strided_slice %545 {offsets = [0, 64], sizes = [2, 32], strides = [1, 1]} : vector<2x128xf32> to vector<2x32xf32>
    %559 = arith.mulf %557, %558 : vector<2x32xf32>
    %560 = arith.addf %556, %559 : vector<2x32xf32>
    %561 = vector.extract_strided_slice %545 {offsets = [0, 96], sizes = [2, 32], strides = [1, 1]} : vector<2x128xf32> to vector<2x32xf32>
    %562 = math.tanh %560 : vector<2x32xf32>
    %563 = arith.mulf %561, %562 : vector<2x32xf32>
    %564 = tpu.concatenate %554, %563 in 1 : vector<2x32xf32>, vector<2x32xf32> -> vector<2x64xf32>
    %cst_99 = arith.constant dense<0.000000e+00> : vector<2x256xf32>
    %565 = tpu.matmul %564, %411, %cst_99 {dimension_numbers = #tpu.dot_dimension_numbers<[1], [0], [0], [1], [0, 0, 1, 1], [], []>} : vector<2x64xf32>, vector<64x256xf32>, vector<2x256xf32> -> vector<2x256xf32>
    %566 = vector.extract_strided_slice %565 {offsets = [0, 0], sizes = [2, 128], strides = [1, 1]} : vector<2x256xf32> to vector<2x128xf32>
    %567 = vector.extract_strided_slice %415 {offsets = [6, 0], sizes = [2, 128], strides = [1, 1]} : vector<16x256xf32> to vector<2x128xf32>
    %568 = arith.addf %566, %567 : vector<2x128xf32>
    %569 = vector.extract_strided_slice %565 {offsets = [0, 128], sizes = [2, 128], strides = [1, 1]} : vector<2x256xf32> to vector<2x128xf32>
    %570 = vector.extract_strided_slice %415 {offsets = [8, 128], sizes = [2, 128], strides = [1, 1]} : vector<16x256xf32> to vector<2x128xf32>
    %571 = arith.addf %569, %570 : vector<2x128xf32>
    %572 = math.tanh %568 : vector<2x128xf32>
    %cst_100 = arith.constant 5.000000e-01 : f32
    %573 = vector.broadcast %cst_100 : f32 to vector<2x128xf32>
    %574 = arith.mulf %573, %568 : vector<2x128xf32>
    %575 = math.tanh %574 : vector<2x128xf32>
    %cst_101 = arith.constant 1.000000e+00 : f32
    %576 = vector.broadcast %cst_101 : f32 to vector<2x128xf32>
    %577 = arith.addf %575, %576 : vector<2x128xf32>
    %cst_102 = arith.constant 5.000000e-01 : f32
    %578 = vector.broadcast %cst_102 : f32 to vector<2x128xf32>
    %579 = arith.mulf %578, %577 : vector<2x128xf32>
    %580 = vector.shape_cast %5 : vector<1x128xi1> to vector<1x128xi1>
    %581 = vector.broadcast %580 : vector<1x128xi1> to vector<2x128xi1>
    %582 = arith.select %581, %572, %579 : vector<2x128xi1>, vector<2x128xf32>
    %583 = math.tanh %571 : vector<2x128xf32>
    %cst_103 = arith.constant 5.000000e-01 : f32
    %584 = vector.broadcast %cst_103 : f32 to vector<2x128xf32>
    %585 = arith.mulf %584, %571 : vector<2x128xf32>
    %586 = math.tanh %585 : vector<2x128xf32>
    %cst_104 = arith.constant 1.000000e+00 : f32
    %587 = vector.broadcast %cst_104 : f32 to vector<2x128xf32>
    %588 = arith.addf %586, %587 : vector<2x128xf32>
    %cst_105 = arith.constant 5.000000e-01 : f32
    %589 = vector.broadcast %cst_105 : f32 to vector<2x128xf32>
    %590 = arith.mulf %589, %588 : vector<2x128xf32>
    %591 = vector.shape_cast %5 : vector<1x128xi1> to vector<1x128xi1>
    %592 = vector.broadcast %591 : vector<1x128xi1> to vector<2x128xi1>
    %593 = arith.select %592, %583, %590 : vector<2x128xi1>, vector<2x128xf32>
    %594 = vector.extract_strided_slice %582 {offsets = [0, 32], sizes = [2, 32], strides = [1, 1]} : vector<2x128xf32> to vector<2x32xf32>
    %595 = arith.mulf %594, %551 : vector<2x32xf32>
    %596 = vector.extract_strided_slice %582 {offsets = [0, 0], sizes = [2, 32], strides = [1, 1]} : vector<2x128xf32> to vector<2x32xf32>
    %597 = vector.extract_strided_slice %582 {offsets = [0, 64], sizes = [2, 32], strides = [1, 1]} : vector<2x128xf32> to vector<2x32xf32>
    %598 = arith.mulf %596, %597 : vector<2x32xf32>
    %599 = arith.addf %595, %598 : vector<2x32xf32>
    %600 = vector.extract_strided_slice %582 {offsets = [0, 96], sizes = [2, 32], strides = [1, 1]} : vector<2x128xf32> to vector<2x32xf32>
    %601 = math.tanh %599 : vector<2x32xf32>
    %602 = arith.mulf %600, %601 : vector<2x32xf32>
    %603 = vector.extract_strided_slice %593 {offsets = [0, 32], sizes = [2, 32], strides = [1, 1]} : vector<2x128xf32> to vector<2x32xf32>
    %604 = arith.mulf %603, %560 : vector<2x32xf32>
    %605 = vector.extract_strided_slice %593 {offsets = [0, 0], sizes = [2, 32], strides = [1, 1]} : vector<2x128xf32> to vector<2x32xf32>
    %606 = vector.extract_strided_slice %593 {offsets = [0, 64], sizes = [2, 32], strides = [1, 1]} : vector<2x128xf32> to vector<2x32xf32>
    %607 = arith.mulf %605, %606 : vector<2x32xf32>
    %608 = arith.addf %604, %607 : vector<2x32xf32>
    %609 = vector.extract_strided_slice %593 {offsets = [0, 96], sizes = [2, 32], strides = [1, 1]} : vector<2x128xf32> to vector<2x32xf32>
    %610 = math.tanh %608 : vector<2x32xf32>
    %611 = arith.mulf %609, %610 : vector<2x32xf32>
    %612 = tpu.concatenate %602, %611 in 1 : vector<2x32xf32>, vector<2x32xf32> -> vector<2x64xf32>
    %cst_106 = arith.constant dense<0.000000e+00> : vector<2x256xf32>
    %613 = tpu.matmul %612, %411, %cst_106 {dimension_numbers = #tpu.dot_dimension_numbers<[1], [0], [0], [1], [0, 0, 1, 1], [], []>} : vector<2x64xf32>, vector<64x256xf32>, vector<2x256xf32> -> vector<2x256xf32>
    %614 = vector.extract_strided_slice %613 {offsets = [0, 0], sizes = [2, 128], strides = [1, 1]} : vector<2x256xf32> to vector<2x128xf32>
    %615 = vector.extract_strided_slice %415 {offsets = [8, 0], sizes = [2, 128], strides = [1, 1]} : vector<16x256xf32> to vector<2x128xf32>
    %616 = arith.addf %614, %615 : vector<2x128xf32>
    %617 = vector.extract_strided_slice %613 {offsets = [0, 128], sizes = [2, 128], strides = [1, 1]} : vector<2x256xf32> to vector<2x128xf32>
    %618 = vector.extract_strided_slice %415 {offsets = [6, 128], sizes = [2, 128], strides = [1, 1]} : vector<16x256xf32> to vector<2x128xf32>
    %619 = arith.addf %617, %618 : vector<2x128xf32>
    %620 = math.tanh %616 : vector<2x128xf32>
    %cst_107 = arith.constant 5.000000e-01 : f32
    %621 = vector.broadcast %cst_107 : f32 to vector<2x128xf32>
    %622 = arith.mulf %621, %616 : vector<2x128xf32>
    %623 = math.tanh %622 : vector<2x128xf32>
    %cst_108 = arith.constant 1.000000e+00 : f32
    %624 = vector.broadcast %cst_108 : f32 to vector<2x128xf32>
    %625 = arith.addf %623, %624 : vector<2x128xf32>
    %cst_109 = arith.constant 5.000000e-01 : f32
    %626 = vector.broadcast %cst_109 : f32 to vector<2x128xf32>
    %627 = arith.mulf %626, %625 : vector<2x128xf32>
    %628 = vector.shape_cast %5 : vector<1x128xi1> to vector<1x128xi1>
    %629 = vector.broadcast %628 : vector<1x128xi1> to vector<2x128xi1>
    %630 = arith.select %629, %620, %627 : vector<2x128xi1>, vector<2x128xf32>
    %631 = math.tanh %619 : vector<2x128xf32>
    %cst_110 = arith.constant 5.000000e-01 : f32
    %632 = vector.broadcast %cst_110 : f32 to vector<2x128xf32>
    %633 = arith.mulf %632, %619 : vector<2x128xf32>
    %634 = math.tanh %633 : vector<2x128xf32>
    %cst_111 = arith.constant 1.000000e+00 : f32
    %635 = vector.broadcast %cst_111 : f32 to vector<2x128xf32>
    %636 = arith.addf %634, %635 : vector<2x128xf32>
    %cst_112 = arith.constant 5.000000e-01 : f32
    %637 = vector.broadcast %cst_112 : f32 to vector<2x128xf32>
    %638 = arith.mulf %637, %636 : vector<2x128xf32>
    %639 = vector.shape_cast %5 : vector<1x128xi1> to vector<1x128xi1>
    %640 = vector.broadcast %639 : vector<1x128xi1> to vector<2x128xi1>
    %641 = arith.select %640, %631, %638 : vector<2x128xi1>, vector<2x128xf32>
    %642 = vector.extract_strided_slice %630 {offsets = [0, 32], sizes = [2, 32], strides = [1, 1]} : vector<2x128xf32> to vector<2x32xf32>
    %643 = arith.mulf %642, %599 : vector<2x32xf32>
    %644 = vector.extract_strided_slice %630 {offsets = [0, 0], sizes = [2, 32], strides = [1, 1]} : vector<2x128xf32> to vector<2x32xf32>
    %645 = vector.extract_strided_slice %630 {offsets = [0, 64], sizes = [2, 32], strides = [1, 1]} : vector<2x128xf32> to vector<2x32xf32>
    %646 = arith.mulf %644, %645 : vector<2x32xf32>
    %647 = arith.addf %643, %646 : vector<2x32xf32>
    %648 = vector.extract_strided_slice %630 {offsets = [0, 96], sizes = [2, 32], strides = [1, 1]} : vector<2x128xf32> to vector<2x32xf32>
    %649 = math.tanh %647 : vector<2x32xf32>
    %650 = arith.mulf %648, %649 : vector<2x32xf32>
    %651 = vector.extract_strided_slice %641 {offsets = [0, 32], sizes = [2, 32], strides = [1, 1]} : vector<2x128xf32> to vector<2x32xf32>
    %652 = arith.mulf %651, %608 : vector<2x32xf32>
    %653 = vector.extract_strided_slice %641 {offsets = [0, 0], sizes = [2, 32], strides = [1, 1]} : vector<2x128xf32> to vector<2x32xf32>
    %654 = vector.extract_strided_slice %641 {offsets = [0, 64], sizes = [2, 32], strides = [1, 1]} : vector<2x128xf32> to vector<2x32xf32>
    %655 = arith.mulf %653, %654 : vector<2x32xf32>
    %656 = arith.addf %652, %655 : vector<2x32xf32>
    %657 = vector.extract_strided_slice %641 {offsets = [0, 96], sizes = [2, 32], strides = [1, 1]} : vector<2x128xf32> to vector<2x32xf32>
    %658 = math.tanh %656 : vector<2x32xf32>
    %659 = arith.mulf %657, %658 : vector<2x32xf32>
    %660 = tpu.concatenate %650, %659 in 1 : vector<2x32xf32>, vector<2x32xf32> -> vector<2x64xf32>
    %cst_113 = arith.constant dense<0.000000e+00> : vector<2x256xf32>
    %661 = tpu.matmul %660, %411, %cst_113 {dimension_numbers = #tpu.dot_dimension_numbers<[1], [0], [0], [1], [0, 0, 1, 1], [], []>} : vector<2x64xf32>, vector<64x256xf32>, vector<2x256xf32> -> vector<2x256xf32>
    %662 = vector.extract_strided_slice %661 {offsets = [0, 0], sizes = [2, 128], strides = [1, 1]} : vector<2x256xf32> to vector<2x128xf32>
    %663 = vector.extract_strided_slice %415 {offsets = [10, 0], sizes = [2, 128], strides = [1, 1]} : vector<16x256xf32> to vector<2x128xf32>
    %664 = arith.addf %662, %663 : vector<2x128xf32>
    %665 = vector.extract_strided_slice %661 {offsets = [0, 128], sizes = [2, 128], strides = [1, 1]} : vector<2x256xf32> to vector<2x128xf32>
    %666 = vector.extract_strided_slice %415 {offsets = [4, 128], sizes = [2, 128], strides = [1, 1]} : vector<16x256xf32> to vector<2x128xf32>
    %667 = arith.addf %665, %666 : vector<2x128xf32>
    %668 = math.tanh %664 : vector<2x128xf32>
    %cst_114 = arith.constant 5.000000e-01 : f32
    %669 = vector.broadcast %cst_114 : f32 to vector<2x128xf32>
    %670 = arith.mulf %669, %664 : vector<2x128xf32>
    %671 = math.tanh %670 : vector<2x128xf32>
    %cst_115 = arith.constant 1.000000e+00 : f32
    %672 = vector.broadcast %cst_115 : f32 to vector<2x128xf32>
    %673 = arith.addf %671, %672 : vector<2x128xf32>
    %cst_116 = arith.constant 5.000000e-01 : f32
    %674 = vector.broadcast %cst_116 : f32 to vector<2x128xf32>
    %675 = arith.mulf %674, %673 : vector<2x128xf32>
    %676 = vector.shape_cast %5 : vector<1x128xi1> to vector<1x128xi1>
    %677 = vector.broadcast %676 : vector<1x128xi1> to vector<2x128xi1>
    %678 = arith.select %677, %668, %675 : vector<2x128xi1>, vector<2x128xf32>
    %679 = math.tanh %667 : vector<2x128xf32>
    %cst_117 = arith.constant 5.000000e-01 : f32
    %680 = vector.broadcast %cst_117 : f32 to vector<2x128xf32>
    %681 = arith.mulf %680, %667 : vector<2x128xf32>
    %682 = math.tanh %681 : vector<2x128xf32>
    %cst_118 = arith.constant 1.000000e+00 : f32
    %683 = vector.broadcast %cst_118 : f32 to vector<2x128xf32>
    %684 = arith.addf %682, %683 : vector<2x128xf32>
    %cst_119 = arith.constant 5.000000e-01 : f32
    %685 = vector.broadcast %cst_119 : f32 to vector<2x128xf32>
    %686 = arith.mulf %685, %684 : vector<2x128xf32>
    %687 = vector.shape_cast %5 : vector<1x128xi1> to vector<1x128xi1>
    %688 = vector.broadcast %687 : vector<1x128xi1> to vector<2x128xi1>
    %689 = arith.select %688, %679, %686 : vector<2x128xi1>, vector<2x128xf32>
    %690 = vector.extract_strided_slice %678 {offsets = [0, 32], sizes = [2, 32], strides = [1, 1]} : vector<2x128xf32> to vector<2x32xf32>
    %691 = arith.mulf %690, %647 : vector<2x32xf32>
    %692 = vector.extract_strided_slice %678 {offsets = [0, 0], sizes = [2, 32], strides = [1, 1]} : vector<2x128xf32> to vector<2x32xf32>
    %693 = vector.extract_strided_slice %678 {offsets = [0, 64], sizes = [2, 32], strides = [1, 1]} : vector<2x128xf32> to vector<2x32xf32>
    %694 = arith.mulf %692, %693 : vector<2x32xf32>
    %695 = arith.addf %691, %694 : vector<2x32xf32>
    %696 = vector.extract_strided_slice %678 {offsets = [0, 96], sizes = [2, 32], strides = [1, 1]} : vector<2x128xf32> to vector<2x32xf32>
    %697 = math.tanh %695 : vector<2x32xf32>
    %698 = arith.mulf %696, %697 : vector<2x32xf32>
    %699 = vector.extract_strided_slice %689 {offsets = [0, 32], sizes = [2, 32], strides = [1, 1]} : vector<2x128xf32> to vector<2x32xf32>
    %700 = arith.mulf %699, %656 : vector<2x32xf32>
    %701 = vector.extract_strided_slice %689 {offsets = [0, 0], sizes = [2, 32], strides = [1, 1]} : vector<2x128xf32> to vector<2x32xf32>
    %702 = vector.extract_strided_slice %689 {offsets = [0, 64], sizes = [2, 32], strides = [1, 1]} : vector<2x128xf32> to vector<2x32xf32>
    %703 = arith.mulf %701, %702 : vector<2x32xf32>
    %704 = arith.addf %700, %703 : vector<2x32xf32>
    %705 = vector.extract_strided_slice %689 {offsets = [0, 96], sizes = [2, 32], strides = [1, 1]} : vector<2x128xf32> to vector<2x32xf32>
    %706 = math.tanh %704 : vector<2x32xf32>
    %707 = arith.mulf %705, %706 : vector<2x32xf32>
    %708 = tpu.concatenate %698, %707 in 1 : vector<2x32xf32>, vector<2x32xf32> -> vector<2x64xf32>
    %cst_120 = arith.constant dense<0.000000e+00> : vector<2x256xf32>
    %709 = tpu.matmul %708, %411, %cst_120 {dimension_numbers = #tpu.dot_dimension_numbers<[1], [0], [0], [1], [0, 0, 1, 1], [], []>} : vector<2x64xf32>, vector<64x256xf32>, vector<2x256xf32> -> vector<2x256xf32>
    %710 = vector.extract_strided_slice %709 {offsets = [0, 0], sizes = [2, 128], strides = [1, 1]} : vector<2x256xf32> to vector<2x128xf32>
    %711 = vector.extract_strided_slice %415 {offsets = [12, 0], sizes = [2, 128], strides = [1, 1]} : vector<16x256xf32> to vector<2x128xf32>
    %712 = arith.addf %710, %711 : vector<2x128xf32>
    %713 = vector.extract_strided_slice %709 {offsets = [0, 128], sizes = [2, 128], strides = [1, 1]} : vector<2x256xf32> to vector<2x128xf32>
    %714 = vector.extract_strided_slice %415 {offsets = [2, 128], sizes = [2, 128], strides = [1, 1]} : vector<16x256xf32> to vector<2x128xf32>
    %715 = arith.addf %713, %714 : vector<2x128xf32>
    %716 = math.tanh %712 : vector<2x128xf32>
    %cst_121 = arith.constant 5.000000e-01 : f32
    %717 = vector.broadcast %cst_121 : f32 to vector<2x128xf32>
    %718 = arith.mulf %717, %712 : vector<2x128xf32>
    %719 = math.tanh %718 : vector<2x128xf32>
    %cst_122 = arith.constant 1.000000e+00 : f32
    %720 = vector.broadcast %cst_122 : f32 to vector<2x128xf32>
    %721 = arith.addf %719, %720 : vector<2x128xf32>
    %cst_123 = arith.constant 5.000000e-01 : f32
    %722 = vector.broadcast %cst_123 : f32 to vector<2x128xf32>
    %723 = arith.mulf %722, %721 : vector<2x128xf32>
    %724 = vector.shape_cast %5 : vector<1x128xi1> to vector<1x128xi1>
    %725 = vector.broadcast %724 : vector<1x128xi1> to vector<2x128xi1>
    %726 = arith.select %725, %716, %723 : vector<2x128xi1>, vector<2x128xf32>
    %727 = math.tanh %715 : vector<2x128xf32>
    %cst_124 = arith.constant 5.000000e-01 : f32
    %728 = vector.broadcast %cst_124 : f32 to vector<2x128xf32>
    %729 = arith.mulf %728, %715 : vector<2x128xf32>
    %730 = math.tanh %729 : vector<2x128xf32>
    %cst_125 = arith.constant 1.000000e+00 : f32
    %731 = vector.broadcast %cst_125 : f32 to vector<2x128xf32>
    %732 = arith.addf %730, %731 : vector<2x128xf32>
    %cst_126 = arith.constant 5.000000e-01 : f32
    %733 = vector.broadcast %cst_126 : f32 to vector<2x128xf32>
    %734 = arith.mulf %733, %732 : vector<2x128xf32>
    %735 = vector.shape_cast %5 : vector<1x128xi1> to vector<1x128xi1>
    %736 = vector.broadcast %735 : vector<1x128xi1> to vector<2x128xi1>
    %737 = arith.select %736, %727, %734 : vector<2x128xi1>, vector<2x128xf32>
    %738 = vector.extract_strided_slice %726 {offsets = [0, 32], sizes = [2, 32], strides = [1, 1]} : vector<2x128xf32> to vector<2x32xf32>
    %739 = arith.mulf %738, %695 : vector<2x32xf32>
    %740 = vector.extract_strided_slice %726 {offsets = [0, 0], sizes = [2, 32], strides = [1, 1]} : vector<2x128xf32> to vector<2x32xf32>
    %741 = vector.extract_strided_slice %726 {offsets = [0, 64], sizes = [2, 32], strides = [1, 1]} : vector<2x128xf32> to vector<2x32xf32>
    %742 = arith.mulf %740, %741 : vector<2x32xf32>
    %743 = arith.addf %739, %742 : vector<2x32xf32>
    %744 = vector.extract_strided_slice %726 {offsets = [0, 96], sizes = [2, 32], strides = [1, 1]} : vector<2x128xf32> to vector<2x32xf32>
    %745 = math.tanh %743 : vector<2x32xf32>
    %746 = arith.mulf %744, %745 : vector<2x32xf32>
    %747 = vector.extract_strided_slice %737 {offsets = [0, 32], sizes = [2, 32], strides = [1, 1]} : vector<2x128xf32> to vector<2x32xf32>
    %748 = arith.mulf %747, %704 : vector<2x32xf32>
    %749 = vector.extract_strided_slice %737 {offsets = [0, 0], sizes = [2, 32], strides = [1, 1]} : vector<2x128xf32> to vector<2x32xf32>
    %750 = vector.extract_strided_slice %737 {offsets = [0, 64], sizes = [2, 32], strides = [1, 1]} : vector<2x128xf32> to vector<2x32xf32>
    %751 = arith.mulf %749, %750 : vector<2x32xf32>
    %752 = arith.addf %748, %751 : vector<2x32xf32>
    %753 = vector.extract_strided_slice %737 {offsets = [0, 96], sizes = [2, 32], strides = [1, 1]} : vector<2x128xf32> to vector<2x32xf32>
    %754 = math.tanh %752 : vector<2x32xf32>
    %755 = arith.mulf %753, %754 : vector<2x32xf32>
    %756 = tpu.concatenate %746, %755 in 1 : vector<2x32xf32>, vector<2x32xf32> -> vector<2x64xf32>
    %cst_127 = arith.constant dense<0.000000e+00> : vector<2x256xf32>
    %757 = tpu.matmul %756, %411, %cst_127 {dimension_numbers = #tpu.dot_dimension_numbers<[1], [0], [0], [1], [0, 0, 1, 1], [], []>} : vector<2x64xf32>, vector<64x256xf32>, vector<2x256xf32> -> vector<2x256xf32>
    %758 = vector.extract_strided_slice %757 {offsets = [0, 0], sizes = [2, 128], strides = [1, 1]} : vector<2x256xf32> to vector<2x128xf32>
    %759 = vector.extract_strided_slice %415 {offsets = [14, 0], sizes = [2, 128], strides = [1, 1]} : vector<16x256xf32> to vector<2x128xf32>
    %760 = arith.addf %758, %759 : vector<2x128xf32>
    %761 = vector.extract_strided_slice %757 {offsets = [0, 128], sizes = [2, 128], strides = [1, 1]} : vector<2x256xf32> to vector<2x128xf32>
    %762 = vector.extract_strided_slice %415 {offsets = [0, 128], sizes = [2, 128], strides = [1, 1]} : vector<16x256xf32> to vector<2x128xf32>
    %763 = arith.addf %761, %762 : vector<2x128xf32>
    %764 = math.tanh %760 : vector<2x128xf32>
    %cst_128 = arith.constant 5.000000e-01 : f32
    %765 = vector.broadcast %cst_128 : f32 to vector<2x128xf32>
    %766 = arith.mulf %765, %760 : vector<2x128xf32>
    %767 = math.tanh %766 : vector<2x128xf32>
    %cst_129 = arith.constant 1.000000e+00 : f32
    %768 = vector.broadcast %cst_129 : f32 to vector<2x128xf32>
    %769 = arith.addf %767, %768 : vector<2x128xf32>
    %cst_130 = arith.constant 5.000000e-01 : f32
    %770 = vector.broadcast %cst_130 : f32 to vector<2x128xf32>
    %771 = arith.mulf %770, %769 : vector<2x128xf32>
    %772 = vector.shape_cast %5 : vector<1x128xi1> to vector<1x128xi1>
    %773 = vector.broadcast %772 : vector<1x128xi1> to vector<2x128xi1>
    %774 = arith.select %773, %764, %771 : vector<2x128xi1>, vector<2x128xf32>
    %775 = math.tanh %763 : vector<2x128xf32>
    %cst_131 = arith.constant 5.000000e-01 : f32
    %776 = vector.broadcast %cst_131 : f32 to vector<2x128xf32>
    %777 = arith.mulf %776, %763 : vector<2x128xf32>
    %778 = math.tanh %777 : vector<2x128xf32>
    %cst_132 = arith.constant 1.000000e+00 : f32
    %779 = vector.broadcast %cst_132 : f32 to vector<2x128xf32>
    %780 = arith.addf %778, %779 : vector<2x128xf32>
    %cst_133 = arith.constant 5.000000e-01 : f32
    %781 = vector.broadcast %cst_133 : f32 to vector<2x128xf32>
    %782 = arith.mulf %781, %780 : vector<2x128xf32>
    %783 = vector.shape_cast %5 : vector<1x128xi1> to vector<1x128xi1>
    %784 = vector.broadcast %783 : vector<1x128xi1> to vector<2x128xi1>
    %785 = arith.select %784, %775, %782 : vector<2x128xi1>, vector<2x128xf32>
    %786 = vector.extract_strided_slice %774 {offsets = [0, 32], sizes = [2, 32], strides = [1, 1]} : vector<2x128xf32> to vector<2x32xf32>
    %787 = arith.mulf %786, %743 : vector<2x32xf32>
    %788 = vector.extract_strided_slice %774 {offsets = [0, 0], sizes = [2, 32], strides = [1, 1]} : vector<2x128xf32> to vector<2x32xf32>
    %789 = vector.extract_strided_slice %774 {offsets = [0, 64], sizes = [2, 32], strides = [1, 1]} : vector<2x128xf32> to vector<2x32xf32>
    %790 = arith.mulf %788, %789 : vector<2x32xf32>
    %791 = arith.addf %787, %790 : vector<2x32xf32>
    %792 = vector.extract_strided_slice %774 {offsets = [0, 96], sizes = [2, 32], strides = [1, 1]} : vector<2x128xf32> to vector<2x32xf32>
    %793 = math.tanh %791 : vector<2x32xf32>
    %794 = arith.mulf %792, %793 : vector<2x32xf32>
    %795 = vector.extract_strided_slice %785 {offsets = [0, 32], sizes = [2, 32], strides = [1, 1]} : vector<2x128xf32> to vector<2x32xf32>
    %796 = arith.mulf %795, %752 : vector<2x32xf32>
    %797 = vector.extract_strided_slice %785 {offsets = [0, 0], sizes = [2, 32], strides = [1, 1]} : vector<2x128xf32> to vector<2x32xf32>
    %798 = vector.extract_strided_slice %785 {offsets = [0, 64], sizes = [2, 32], strides = [1, 1]} : vector<2x128xf32> to vector<2x32xf32>
    %799 = arith.mulf %797, %798 : vector<2x32xf32>
    %800 = arith.addf %796, %799 : vector<2x32xf32>
    %801 = vector.extract_strided_slice %785 {offsets = [0, 96], sizes = [2, 32], strides = [1, 1]} : vector<2x128xf32> to vector<2x32xf32>
    %802 = math.tanh %800 : vector<2x32xf32>
    %803 = arith.mulf %801, %802 : vector<2x32xf32>
    %804 = tpu.concatenate %794, %803 in 1 : vector<2x32xf32>, vector<2x32xf32> -> vector<2x64xf32>
    %c0_134 = arith.constant 0 : index
    %c0_135 = arith.constant 0 : index
    %805 = vector.load %arg8[%c0_134, %c0_135] : memref<64x32xf32, #tpu.memory_space<vmem>>, vector<64x32xf32>
    %cst_136 = arith.constant dense<0.000000e+00> : vector<2x32xf32>
    %806 = tpu.matmul %804, %805, %cst_136 {dimension_numbers = #tpu.dot_dimension_numbers<[1], [0], [0], [1], [0, 0, 1, 1], [], []>} : vector<2x64xf32>, vector<64x32xf32>, vector<2x32xf32> -> vector<2x32xf32>
    %c0_137 = arith.constant 0 : index
    %c0_138 = arith.constant 0 : index
    %807 = vector.load %arg9[%c0_137, %c0_138] : memref<1x32xf32, #tpu.memory_space<vmem>>, vector<1x32xf32>
    %808 = vector.broadcast %807 : vector<1x32xf32> to vector<2x32xf32>
    %809 = arith.addf %806, %808 : vector<2x32xf32>
    %cst_139 = arith.constant 0.000000e+00 : f32
    %810 = vector.broadcast %cst_139 : f32 to vector<2x32xf32>
    %811 = arith.maximumf %809, %810 : vector<2x32xf32>
    %c0_140 = arith.constant 0 : index
    %c0_141 = arith.constant 0 : index
    %812 = vector.load %arg10[%c0_140, %c0_141] : memref<32x16xf32, #tpu.memory_space<vmem>>, vector<32x16xf32>
    %cst_142 = arith.constant dense<0.000000e+00> : vector<2x16xf32>
    %813 = tpu.matmul %811, %812, %cst_142 {dimension_numbers = #tpu.dot_dimension_numbers<[1], [0], [0], [1], [0, 0, 1, 1], [], []>} : vector<2x32xf32>, vector<32x16xf32>, vector<2x16xf32> -> vector<2x16xf32>
    %c0_143 = arith.constant 0 : index
    %c0_144 = arith.constant 0 : index
    %814 = vector.load %arg11[%c0_143, %c0_144] : memref<1x16xf32, #tpu.memory_space<vmem>>, vector<1x16xf32>
    %815 = vector.broadcast %814 : vector<1x16xf32> to vector<2x16xf32>
    %816 = arith.addf %813, %815 : vector<2x16xf32>
    %cst_145 = arith.constant 0.000000e+00 : f32
    %817 = vector.broadcast %cst_145 : f32 to vector<2x16xf32>
    %818 = arith.maximumf %816, %817 : vector<2x16xf32>
    %c0_146 = arith.constant 0 : index
    %c0_147 = arith.constant 0 : index
    %819 = vector.load %arg12[%c0_146, %c0_147] : memref<16x8xf32, #tpu.memory_space<vmem>>, vector<16x8xf32>
    %cst_148 = arith.constant dense<0.000000e+00> : vector<2x8xf32>
    %820 = tpu.matmul %818, %819, %cst_148 {dimension_numbers = #tpu.dot_dimension_numbers<[1], [0], [0], [1], [0, 0, 1, 1], [], []>} : vector<2x16xf32>, vector<16x8xf32>, vector<2x8xf32> -> vector<2x8xf32>
    %c0_149 = arith.constant 0 : index
    %c0_150 = arith.constant 0 : index
    %821 = vector.load %arg13[%c0_149, %c0_150] : memref<1x8xf32, #tpu.memory_space<vmem>>, vector<1x8xf32>
    %822 = vector.broadcast %821 : vector<1x8xf32> to vector<2x8xf32>
    %823 = arith.addf %820, %822 : vector<2x8xf32>
    %cst_151 = arith.constant 0.000000e+00 : f32
    %824 = vector.broadcast %cst_151 : f32 to vector<2x8xf32>
    %825 = arith.maximumf %823, %824 : vector<2x8xf32>
    %c0_152 = arith.constant 0 : index
    %c0_153 = arith.constant 0 : index
    %826 = vector.load %arg14[%c0_152, %c0_153] : memref<8x1xf32, #tpu.memory_space<vmem>>, vector<8x1xf32>
    %cst_154 = arith.constant dense<0.000000e+00> : vector<2x1xf32>
    %827 = tpu.matmul %825, %826, %cst_154 {dimension_numbers = #tpu.dot_dimension_numbers<[1], [0], [0], [1], [0, 0, 1, 1], [], []>} : vector<2x8xf32>, vector<8x1xf32>, vector<2x1xf32> -> vector<2x1xf32>
    %c0_155 = arith.constant 0 : index
    %c0_156 = arith.constant 0 : index
    %828 = vector.load %arg15[%c0_155, %c0_156] : memref<1x1xf32, #tpu.memory_space<vmem>>, vector<1x1xf32>
    %829 = vector.broadcast %828 : vector<1x1xf32> to vector<2x1xf32>
    %830 = arith.addf %827, %829 : vector<2x1xf32>
    %cst_157 = arith.constant 5.000000e-01 : f32
    %831 = vector.broadcast %cst_157 : f32 to vector<2x1xf32>
    %832 = arith.mulf %831, %830 : vector<2x1xf32>
    %833 = math.tanh %832 : vector<2x1xf32>
    %cst_158 = arith.constant 1.000000e+00 : f32
    %834 = vector.broadcast %cst_158 : f32 to vector<2x1xf32>
    %835 = arith.addf %833, %834 : vector<2x1xf32>
    %cst_159 = arith.constant 5.000000e-01 : f32
    %836 = vector.broadcast %cst_159 : f32 to vector<2x1xf32>
    %837 = arith.mulf %836, %835 : vector<2x1xf32>
    %c0_160 = arith.constant 0 : index
    %c0_161 = arith.constant 0 : index
    %838 = vector.load %arg16[%c0_160, %c0_161] : memref<2x1xf32, #tpu.memory_space<vmem>>, vector<2x1xf32>
    tpu.vector_store %arg16[%c0_160, %c0_161], %837 {strides = array<i32>} : memref<2x1xf32, #tpu.memory_space<vmem>>, vector<2x1xf32>,
    return
  }
  func.func @transform_0(%arg0: i32) -> (i32, i32) {
    %c0_i32 = arith.constant 0 : i32
    %c0_i32_0 = arith.constant 0 : i32
    %c0_i32_1 = arith.constant 0 : i32
    return %c0_i32, %c0_i32_0 : i32, i32
  }
  func.func @transform_1(%arg0: i32) -> (i32, i32) {
    %c0_i32 = arith.constant 0 : i32
    %c0_i32_0 = arith.constant 0 : i32
    %c0_i32_1 = arith.constant 0 : i32
    return %c0_i32, %c0_i32_0 : i32, i32
  }
  func.func @transform_2(%arg0: i32) -> (i32, i32) {
    %c0_i32 = arith.constant 0 : i32
    %c0_i32_0 = arith.constant 0 : i32
    %c0_i32_1 = arith.constant 0 : i32
    return %c0_i32, %c0_i32_0 : i32, i32
  }
  func.func @transform_3(%arg0: i32) -> (i32, i32) {
    %c0_i32 = arith.constant 0 : i32
    %c0_i32_0 = arith.constant 0 : i32
    %c0_i32_1 = arith.constant 0 : i32
    return %c0_i32, %c0_i32_0 : i32, i32
  }
  func.func @transform_4(%arg0: i32) -> (i32, i32) {
    %c0_i32 = arith.constant 0 : i32
    %c0_i32_0 = arith.constant 0 : i32
    %c0_i32_1 = arith.constant 0 : i32
    return %c0_i32, %c0_i32_0 : i32, i32
  }
  func.func @transform_5(%arg0: i32) -> (i32, i32) {
    %c0_i32 = arith.constant 0 : i32
    %c0_i32_0 = arith.constant 0 : i32
    %c0_i32_1 = arith.constant 0 : i32
    return %c0_i32, %c0_i32_0 : i32, i32
  }
  func.func @transform_6(%arg0: i32) -> (i32, i32) {
    %c0_i32 = arith.constant 0 : i32
    %c0_i32_0 = arith.constant 0 : i32
    %c0_i32_1 = arith.constant 0 : i32
    return %c0_i32, %c0_i32_0 : i32, i32
  }
  func.func @transform_7(%arg0: i32) -> (i32, i32) {
    %c0_i32 = arith.constant 0 : i32
    %c0_i32_0 = arith.constant 0 : i32
    %c0_i32_1 = arith.constant 0 : i32
    return %c0_i32, %c0_i32_0 : i32, i32
  }
  func.func @transform_8(%arg0: i32) -> (i32, i32) {
    %c0_i32 = arith.constant 0 : i32
    %c0_i32_0 = arith.constant 0 : i32
    %c0_i32_1 = arith.constant 0 : i32
    return %c0_i32, %c0_i32_0 : i32, i32
  }
  func.func @transform_9(%arg0: i32) -> (i32, i32) {
    %c0_i32 = arith.constant 0 : i32
    %c0_i32_0 = arith.constant 0 : i32
    %c0_i32_1 = arith.constant 0 : i32
    return %c0_i32, %c0_i32_0 : i32, i32
  }
  func.func @transform_10(%arg0: i32) -> (i32, i32) {
    %c0_i32 = arith.constant 0 : i32
    %c0_i32_0 = arith.constant 0 : i32
    %c0_i32_1 = arith.constant 0 : i32
    return %c0_i32, %c0_i32_0 : i32, i32
  }
  func.func @transform_11(%arg0: i32) -> (i32, i32) {
    %c0_i32 = arith.constant 0 : i32
    %c0_i32_0 = arith.constant 0 : i32
    %c0_i32_1 = arith.constant 0 : i32
    return %c0_i32, %c0_i32_0 : i32, i32
  }
  func.func @transform_12(%arg0: i32) -> (i32, i32) {
    %c0_i32 = arith.constant 0 : i32
    %c0_i32_0 = arith.constant 0 : i32
    %c0_i32_1 = arith.constant 0 : i32
    return %c0_i32, %c0_i32_0 : i32, i32
  }
  func.func @transform_13(%arg0: i32) -> (i32, i32) {
    %c0_i32 = arith.constant 0 : i32
    %c0_i32_0 = arith.constant 0 : i32
    %c0_i32_1 = arith.constant 0 : i32
    return %c0_i32, %c0_i32_0 : i32, i32
  }
  func.func @transform_14(%arg0: i32) -> (i32, i32) {
    %c0_i32 = arith.constant 0 : i32
    %c0_i32_0 = arith.constant 0 : i32
    %c0_i32_1 = arith.constant 0 : i32
    return %c0_i32, %c0_i32_0 : i32, i32
  }
  func.func @transform_15(%arg0: i32) -> (i32, i32) {
    %c0_i32 = arith.constant 0 : i32
    %c0_i32_0 = arith.constant 0 : i32
    %c0_i32_1 = arith.constant 0 : i32
    return %c0_i32, %c0_i32_0 : i32, i32
  }
}

</mosaic_0001>

<llo_original>
// kernel: tpu_custom_call.1
$region0: #{tpu_custom_call.1}
  #allocation0 [shape = 'u32[]', space=smem, size = 0x4, offset = 0x4, fixed_abs, tag = 'smem constant byte address 0x4 - core index']
  #allocation1 [shape = 'u32[144,128]{1,0:T(1,128)}', space=vmem, size = 0x12000, scoped, tag = 'internal scratch']
  #allocation2 [shape = 'f32[1,1]{1,0:T(1,128)S(1)}', space=vmem, size = 0x200, scoped, tag = 'scoped memory for tpu_custom_call.1']
  %s0 = inlined_call_operand.vmem [shape: f32[16,64], index: 0, kind: input, shape index: {}]
  %s1 = inlined_call_operand.vmem [shape: f32[64,256], index: 1, kind: input, shape index: {}]
  %s2 = inlined_call_operand.hbm [shape: f32[64,256], index: 2, kind: input, shape index: {}]
  %s3 = inlined_call_operand.hbm [shape: f32[1,256], index: 3, kind: input, shape index: {}]
  %s4 = inlined_call_operand.hbm [shape: f32[64,256], index: 4, kind: input, shape index: {}]
  %s5 = inlined_call_operand.hbm [shape: f32[64,256], index: 5, kind: input, shape index: {}]
  %s6 = inlined_call_operand.vmem [shape: f32[1,256], index: 6, kind: input, shape index: {}]
  %s7 = inlined_call_operand.vmem [shape: f32[64,32], index: 7, kind: input, shape index: {}]
  %s8 = inlined_call_operand.vmem [shape: f32[1,32], index: 8, kind: input, shape index: {}]
  %s9 = inlined_call_operand.vmem [shape: f32[32,16], index: 9, kind: input, shape index: {}]
  %s10 = inlined_call_operand.vmem [shape: f32[1,16], index: 10, kind: input, shape index: {}]
  %s11 = inlined_call_operand.vmem [shape: f32[16,8], index: 11, kind: input, shape index: {}]
  %s12 = inlined_call_operand.vmem [shape: f32[1,8], index: 12, kind: input, shape index: {}]
  %s13 = inlined_call_operand.vmem [shape: f32[8,1], index: 13, kind: input, shape index: {}]
  %s14 = inlined_call_operand.<no memory space> [shape: f32[1,1], index: 14, kind: input, shape index: {}]
  %s15 = inlined_call_operand.vmem [shape: f32[2,1], index: 15, kind: output, shape index: {}]
  %s16 = sld [smem:[#allocation0]]
  $region86: #{tpu_custom_call.1} parent=0
    _
  %s18 = ssub.s32 1, %s16
  %s19 = scalar_select 0, %s18, %s16
  %v20 = vstv %s14
  %21 = vst [vmem:[#allocation2] sm:$0x1] %v20
  $region1: #{tpu_custom_call.1} parent=0
    #allocation3 [shape = 'u8[65536]{0}', space=vmem, size = 0x10000, scoped, tag = 'input window, operand 2, single buffered']
    #allocation4 [shape = 's32[1]{0}', space=sflag, size = 0x4, scoped, tag = 'scoped memory for tpu_custom_call.1']
    #allocation5 [shape = 'u8[1024]{0}', space=vmem, size = 0x400, scoped, tag = 'input window, operand 3, single buffered']
    #allocation6 [shape = 's32[1]{0}', space=sflag, size = 0x4, scoped, tag = 'scoped memory for tpu_custom_call.1']
    #allocation7 [shape = 'u8[65536]{0}', space=vmem, size = 0x10000, scoped, tag = 'input window, operand 4, single buffered']
    #allocation8 [shape = 'u8[65536]{0}', space=vmem, size = 0x10000, scoped, tag = 'input window, operand 5, single buffered']
    #allocation9 [shape = 's32[1]{0}', space=sflag, size = 0x4, scoped, tag = 'scoped memory for tpu_custom_call.1']
    %22 = vsyncpa [#allocation4], 0
    %23 = vsyncpa [#allocation6], 0
    %24 = vsyncpa [#allocation9], 0
    // Predicated region
    $region2: #{tpu_custom_call.1} parent=1 // pred_check
      _
    $region3: #{tpu_custom_call.1} parent=1 // pred_check_branch
      %26 = sbr.rel (0) target = $region5
    $region4: #{tpu_custom_call.1} parent=1 // pred_region
      _
    $region5: #{tpu_custom_call.1} parent=1 // pred_fallthru
      _
    // Predicated region
    $region6: #{tpu_custom_call.1} parent=1 // pred_check
      _
    $region7: #{tpu_custom_call.1} parent=1 // pred_check_branch
      %28 = sbr.rel (0) target = $region9
    $region8: #{tpu_custom_call.1} parent=1 // pred_region
      _
    $region9: #{tpu_custom_call.1} parent=1 // pred_fallthru
      _
    // Predicated region
    $region10: #{tpu_custom_call.1} parent=1 // pred_check
      _
    $region11: #{tpu_custom_call.1} parent=1 // pred_check_branch
      %30 = sbr.rel (0) target = $region13
    $region12: #{tpu_custom_call.1} parent=1 // pred_region
      %s32 = ssub.s32 2048, 2048
      %33 = vsyncadd [#allocation4], %s32
      %s34 = sshll.u32 [#allocation3], 4
      %s35 = int_to_ptr.vmem [resolvable:$true] %s34
      %40 = dma.hbm_to_vmem [thread:$0]  %s2, 2048, %s35, [#allocation4], 256, 256, 16
    $region13: #{tpu_custom_call.1} parent=1 // pred_fallthru
      _
    // Predicated region
    $region14: #{tpu_custom_call.1} parent=1 // pred_check
      _
    $region15: #{tpu_custom_call.1} parent=1 // pred_check_branch
      %42 = sbr.rel (0) target = $region17
    $region16: #{tpu_custom_call.1} parent=1 // pred_region
      %s44 = ssub.s32 32, 32
      %45 = vsyncadd [#allocation6], %s44
      %s47 = sshll.u32 [#allocation5], 4
      %s48 = int_to_ptr.vmem [resolvable:$true] %s47
      %50 = dma.hbm_to_vmem [thread:$0]  %s3, 32, %s48, [#allocation6]
    $region17: #{tpu_custom_call.1} parent=1 // pred_fallthru
      _
    // Predicated region
    $region18: #{tpu_custom_call.1} parent=1 // pred_check
      _
    $region19: #{tpu_custom_call.1} parent=1 // pred_check_branch
      %52 = sbr.rel (0) target = $region21
    $region20: #{tpu_custom_call.1} parent=1 // pred_region
      %s54 = ssub.s32 2048, 2048
      %55 = vsyncadd [#allocation6], %s54
      %s56 = sshll.u32 [#allocation7], 4
      %s57 = int_to_ptr.vmem [resolvable:$true] %s56
      %62 = dma.hbm_to_vmem [thread:$0]  %s4, 2048, %s57, [#allocation6], 256, 256, 16
    $region21: #{tpu_custom_call.1} parent=1 // pred_fallthru
      _
    // Predicated region
    $region22: #{tpu_custom_call.1} parent=1 // pred_check
      _
    $region23: #{tpu_custom_call.1} parent=1 // pred_check_branch
      %64 = sbr.rel (0) target = $region25
    $region24: #{tpu_custom_call.1} parent=1 // pred_region
      %s66 = ssub.s32 2048, 2048
      %67 = vsyncadd [#allocation9], %s66
      %s68 = sshll.u32 [#allocation8], 4
      %s69 = int_to_ptr.vmem [resolvable:$true] %s68
      %74 = dma.hbm_to_vmem [thread:$0]  %s5, 2048, %s69, [#allocation9], 256, 256, 16
    $region25: #{tpu_custom_call.1} parent=1 // pred_fallthru
      _
    // Predicated region
    $region26: #{tpu_custom_call.1} parent=1 // pred_check
      _
    $region27: #{tpu_custom_call.1} parent=1 // pred_check_branch
      %76 = sbr.rel (0) target = $region29
    $region28: #{tpu_custom_call.1} parent=1 // pred_region
      _
    $region29: #{tpu_custom_call.1} parent=1 // pred_fallthru
      _
    // Predicated region
    $region30: #{tpu_custom_call.1} parent=1 // pred_check
      _
    $region31: #{tpu_custom_call.1} parent=1 // pred_check_branch
      %78 = sbr.rel (0) target = $region33
    $region32: #{tpu_custom_call.1} parent=1 // pred_region
      _
    $region33: #{tpu_custom_call.1} parent=1 // pred_fallthru
      _
    // Predicated region
    $region34: #{tpu_custom_call.1} parent=1 // pred_check
      _
    $region35: #{tpu_custom_call.1} parent=1 // pred_check_branch
      %80 = sbr.rel (0) target = $region37
    $region36: #{tpu_custom_call.1} parent=1 // pred_region
      _
    $region37: #{tpu_custom_call.1} parent=1 // pred_fallthru
      _
    // Predicated region
    $region38: #{tpu_custom_call.1} parent=1 // pred_check
      _
    $region39: #{tpu_custom_call.1} parent=1 // pred_check_branch
      %82 = sbr.rel (0) target = $region41
    $region40: #{tpu_custom_call.1} parent=1 // pred_region
      _
    $region41: #{tpu_custom_call.1} parent=1 // pred_fallthru
      _
    // Predicated region
    $region42: #{tpu_custom_call.1} parent=1 // pred_check
      _
    $region43: #{tpu_custom_call.1} parent=1 // pred_check_branch
      %84 = sbr.rel (0) target = $region45
    $region44: #{tpu_custom_call.1} parent=1 // pred_region
      _
    $region45: #{tpu_custom_call.1} parent=1 // pred_fallthru
      _
    // Predicated region
    $region46: #{tpu_custom_call.1} parent=1 // pred_check
      _
    $region47: #{tpu_custom_call.1} parent=1 // pred_check_branch
      %86 = sbr.rel (0) target = $region49
    $region48: #{tpu_custom_call.1} parent=1 // pred_region
      _
    $region49: #{tpu_custom_call.1} parent=1 // pred_fallthru
      _
    // Predicated region
    $region50: #{tpu_custom_call.1} parent=1 // pred_check
      _
    $region51: #{tpu_custom_call.1} parent=1 // pred_check_branch
      %88 = sbr.rel (0) target = $region53
    $region52: #{tpu_custom_call.1} parent=1 // pred_region
      _
    $region53: #{tpu_custom_call.1} parent=1 // pred_fallthru
      _
    // Predicated region
    $region54: #{tpu_custom_call.1} parent=1 // pred_check
      _
    $region55: #{tpu_custom_call.1} parent=1 // pred_check_branch
      %90 = sbr.rel (0) target = $region57
    $region56: #{tpu_custom_call.1} parent=1 // pred_region
      _
    $region57: #{tpu_custom_call.1} parent=1 // pred_fallthru
      _
    // Predicated region
    $region58: #{tpu_custom_call.1} parent=1 // pred_check
      _
    $region59: #{tpu_custom_call.1} parent=1 // pred_check_branch
      %92 = sbr.rel (0) target = $region61
    $region60: #{tpu_custom_call.1} parent=1 // pred_region
      _
    $region61: #{tpu_custom_call.1} parent=1 // pred_fallthru
      _
    // Predicated region
    $region62: #{tpu_custom_call.1} parent=1 // pred_check
      _
    $region63: #{tpu_custom_call.1} parent=1 // pred_check_branch
      %94 = sbr.rel (0) target = $region65
    $region64: #{tpu_custom_call.1} parent=1 // pred_region
      %95 = dma.done [#allocation4], 2048
    $region65: #{tpu_custom_call.1} parent=1 // pred_fallthru
      _
    // Predicated region
    $region66: #{tpu_custom_call.1} parent=1 // pred_check
      _
    $region67: #{tpu_custom_call.1} parent=1 // pred_check_branch
      %97 = sbr.rel (0) target = $region69
    $region68: #{tpu_custom_call.1} parent=1 // pred_region
      %98 = dma.done [#allocation6], 32
    $region69: #{tpu_custom_call.1} parent=1 // pred_fallthru
      _
    // Predicated region
    $region70: #{tpu_custom_call.1} parent=1 // pred_check
      _
    $region71: #{tpu_custom_call.1} parent=1 // pred_check_branch
      %100 = sbr.rel (0) target = $region73
    $region72: #{tpu_custom_call.1} parent=1 // pred_region
      %101 = dma.done [#allocation6], 2048
    $region73: #{tpu_custom_call.1} parent=1 // pred_fallthru
      _
    // Predicated region
    $region74: #{tpu_custom_call.1} parent=1 // pred_check
      _
    $region75: #{tpu_custom_call.1} parent=1 // pred_check_branch
      %103 = sbr.rel (0) target = $region77
    $region76: #{tpu_custom_call.1} parent=1 // pred_region
      %104 = dma.done [#allocation9], 2048
    $region77: #{tpu_custom_call.1} parent=1 // pred_fallthru
      _
    %v105 = vlaneseq
    %v106 = vand.u32 %v105, 127
    %vm107 = vcmp.ge.s32.totalorder %v106, 64
    %vm108 = vcmp.lt.s32.totalorder %v106, 96
    %vm109 = vmand %vm107, %vm108
    %v110 = vld [vmem:[%s0] sm:$0xff]
    %v111 = vld [vmem:[%s0 + $0x8] sm:$0xff]
    %v112 = vld [vmem:[%s1] sm:$0xff]
    %v113 = vld [vmem:[%s1 + $0x8] sm:$0xff]
    %v114 = vld [vmem:[%s1 + $0x10] sm:$0xff]
    %v115 = vld [vmem:[%s1 + $0x18] sm:$0xff]
    %v116 = vld [vmem:[%s1 + $0x20] sm:$0xff]
    %v117 = vld [vmem:[%s1 + $0x28] sm:$0xff]
    %v118 = vld [vmem:[%s1 + $0x30] sm:$0xff]
    %v119 = vld [vmem:[%s1 + $0x38] sm:$0xff]
    %v120 = vld [vmem:[%s1 + $0x40] sm:$0xff]
    %v121 = vld [vmem:[%s1 + $0x48] sm:$0xff]
    %v122 = vld [vmem:[%s1 + $0x50] sm:$0xff]
    %v123 = vld [vmem:[%s1 + $0x58] sm:$0xff]
    %v124 = vld [vmem:[%s1 + $0x60] sm:$0xff]
    %v125 = vld [vmem:[%s1 + $0x68] sm:$0xff]
    %v126 = vld [vmem:[%s1 + $0x70] sm:$0xff]
    %v127 = vld [vmem:[%s1 + $0x78] sm:$0xff]
    %v128 = vld [vmem:[#allocation3] sm:$0xff]
    %v129 = vld [vmem:[#allocation3 + $0x8] sm:$0xff]
    %v130 = vld [vmem:[#allocation3 + $0x10] sm:$0xff]
    %v131 = vld [vmem:[#allocation3 + $0x18] sm:$0xff]
    %v132 = vld [vmem:[#allocation3 + $0x20] sm:$0xff]
    %v133 = vld [vmem:[#allocation3 + $0x28] sm:$0xff]
    %v134 = vld [vmem:[#allocation3 + $0x30] sm:$0xff]
    %v135 = vld [vmem:[#allocation3 + $0x38] sm:$0xff]
    %v136 = vld [vmem:[#allocation3 + $0x40] sm:$0xff]
    %v137 = vld [vmem:[#allocation3 + $0x48] sm:$0xff]
    %v138 = vld [vmem:[#allocation3 + $0x50] sm:$0xff]
    %v139 = vld [vmem:[#allocation3 + $0x58] sm:$0xff]
    %v140 = vld [vmem:[#allocation3 + $0x60] sm:$0xff]
    %v141 = vld [vmem:[#allocation3 + $0x68] sm:$0xff]
    %v142 = vld [vmem:[#allocation3 + $0x70] sm:$0xff]
    %v143 = vld [vmem:[#allocation3 + $0x78] sm:$0xff]
    %v144 = vld [vmem:[#allocation5] sm:$0x3]
    %v146 = vlaneseq
    %v147 = vshrl.u32 %v146, 7
    %v148 = vsub.s32 0, %v147
    %v149 = vrot.slane %v144, %v148
    %v150 = vlaneseq
    %v151 = vshrl.u32 %v150, 7
    %v152 = vsub.s32 1, %v151
    %v153 = vrot.slane %v144, %v152
    %vm156 = vcmask 523264
    %v158 = vsel %vm156, %v110, 0
    %v161 = vsel %vm156, %v111, 0
    %163 = vmatprep.subr.mxu0 %v113
    %164 = vmatpush1.msra.mxu0 %v112
    %165 = vmatprep.subr.mxu0 %v115
    %166 = vmatpush1.msra.mxu0 %v114
    %167 = vmatprep.subr.mxu0 %v117
    %168 = vmatpush1.msra.mxu0 %v116
    %169 = vmatprep.subr.mxu0 %v119
    %170 = vmatpush1.msra.mxu0 %v118
    %171 = vmatprep.subr.mxu0 %v121
    %172 = vmatpush1.msra.mxu0 %v120
    %173 = vmatprep.subr.mxu0 %v123
    %174 = vmatpush1.msra.mxu0 %v122
    %175 = vmatprep.subr.mxu0 %v125
    %176 = vmatpush1.msra.mxu0 %v124
    %177 = vmatprep.subr.mxu0 %v127
    %178 = vmatpush1.msra.mxu0 %v126
    %179 = vmatprep.subr.mxu0 0.0
    %180 = vmatpush1.msra.mxu0 0.0
    %181 = vmatprep.subr.mxu0 0.0
    %182 = vmatpush1.msra.mxu0 0.0
    %183 = vmatprep.subr.mxu0 0.0
    %184 = vmatpush1.msra.mxu0 0.0
    %185 = vmatprep.subr.mxu0 0.0
    %186 = vmatpush1.msra.mxu0 0.0
    %187 = vmatprep.subr.mxu0 0.0
    %188 = vmatpush1.msra.mxu0 0.0
    %189 = vmatprep.subr.mxu0 0.0
    %190 = vmatpush1.msra.mxu0 0.0
    %191 = vmatprep.subr.mxu0 0.0
    %192 = vmatpush1.msra.mxu0 0.0
    %193 = vmatprep.subr.mxu0 0.0
    %194 = vmatpush1.msra.mxu0 0.0
    %195 = vmatprep.subr.mxu0 0.0
    %196 = vmatpush1.msra.mxu0 0.0
    %197 = vmatprep.subr.mxu0 0.0
    %198 = vmatpush1.msra.mxu0 0.0
    %199 = vmatprep.subr.mxu0 0.0
    %200 = vmatpush1.msra.mxu0 0.0
    %201 = vmatprep.subr.mxu0 0.0
    %202 = vmatpush1.msra.mxu0 0.0
    %203 = vmatprep.subr.mxu0 0.0
    %204 = vmatpush1.msra.mxu0 0.0
    %205 = vmatprep.subr.mxu0 0.0
    %206 = vmatpush1.msra.mxu0 0.0
    %207 = vmatprep.subr.mxu0 0.0
    %208 = vmatpush1.msra.mxu0 0.0
    %209 = vmatprep.subr.mxu0 0.0
    %210 = vmatpush1.msra.mxu0 0.0
    %211 = vmatprep.subr.mxu0 0.0
    %212 = vmatpush1.msra.mxu0 0.0
    %213 = vmatprep.subr.mxu0 0.0
    %214 = vmatpush1.msra.mxu0 0.0
    %215 = vmatprep.subr.mxu0 0.0
    %216 = vmatpush1.msra.mxu0 0.0
    %217 = vmatprep.subr.mxu0 0.0
    %218 = vmatpush1.msra.mxu0 0.0
    %219 = vmatprep.subr.mxu0 0.0
    %220 = vmatpush1.msra.mxu0 0.0
    %221 = vmatprep.subr.mxu0 0.0
    %222 = vmatpush1.msra.mxu0 0.0
    %223 = vmatprep.subr.mxu0 0.0
    %224 = vmatpush1.msra.mxu0 0.0
    %225 = vmatprep.subr.mxu0 0.0
    %226 = vmatpush1.msra.mxu0 0.0
    %227 = vmatprep.mubr.f32.mxu0 0.0
    %228 = vmatmul.mubr.f32.gmra.mrb[0].mxu0 %v158
    %v229 = vpop.f32.mrb[0].mxu0
    %v230 = vadd.f32 %v149, %v229
    %v231 = vpop.f32.mrb[0].mxu0
    %v232 = vadd.f32 %v153, %v231
    %233 = vmatprep.mubr.f32.mxu0 0.0
    %234 = vmatmul.mubr.f32.gmra.mrb[0].mxu0 %v161
    %v235 = vpop.f32.mrb[0].mxu0
    %v236 = vadd.f32 %v149, %v235
    %v237 = vpop.f32.mrb[0].mxu0
    %v238 = vadd.f32 %v153, %v237
    %239 = vdwg.mxu0
    %v241 = vsel %vm156, 0.0, 0
    %243 = vmatprep.subr.mxu0 %v129
    %244 = vmatpush1.msra.mxu0 %v128
    %245 = vmatprep.subr.mxu0 %v131
    %246 = vmatpush1.msra.mxu0 %v130
    %247 = vmatprep.subr.mxu0 %v133
    %248 = vmatpush1.msra.mxu0 %v132
    %249 = vmatprep.subr.mxu0 %v135
    %250 = vmatpush1.msra.mxu0 %v134
    %251 = vmatprep.subr.mxu0 %v137
    %252 = vmatpush1.msra.mxu0 %v136
    %253 = vmatprep.subr.mxu0 %v139
    %254 = vmatpush1.msra.mxu0 %v138
    %255 = vmatprep.subr.mxu0 %v141
    %256 = vmatpush1.msra.mxu0 %v140
    %257 = vmatprep.subr.mxu0 %v143
    %258 = vmatpush1.msra.mxu0 %v142
    %259 = vmatprep.subr.mxu0 0.0
    %260 = vmatpush1.msra.mxu0 0.0
    %261 = vmatprep.subr.mxu0 0.0
    %262 = vmatpush1.msra.mxu0 0.0
    %263 = vmatprep.subr.mxu0 0.0
    %264 = vmatpush1.msra.mxu0 0.0
    %265 = vmatprep.subr.mxu0 0.0
    %266 = vmatpush1.msra.mxu0 0.0
    %267 = vmatprep.subr.mxu0 0.0
    %268 = vmatpush1.msra.mxu0 0.0
    %269 = vmatprep.subr.mxu0 0.0
    %270 = vmatpush1.msra.mxu0 0.0
    %271 = vmatprep.subr.mxu0 0.0
    %272 = vmatpush1.msra.mxu0 0.0
    %273 = vmatprep.subr.mxu0 0.0
    %274 = vmatpush1.msra.mxu0 0.0
    %275 = vmatprep.subr.mxu0 0.0
    %276 = vmatpush1.msra.mxu0 0.0
    %277 = vmatprep.subr.mxu0 0.0
    %278 = vmatpush1.msra.mxu0 0.0
    %279 = vmatprep.subr.mxu0 0.0
    %280 = vmatpush1.msra.mxu0 0.0
    %281 = vmatprep.subr.mxu0 0.0
    %282 = vmatpush1.msra.mxu0 0.0
    %283 = vmatprep.subr.mxu0 0.0
    %284 = vmatpush1.msra.mxu0 0.0
    %285 = vmatprep.subr.mxu0 0.0
    %286 = vmatpush1.msra.mxu0 0.0
    %287 = vmatprep.subr.mxu0 0.0
    %288 = vmatpush1.msra.mxu0 0.0
    %289 = vmatprep.subr.mxu0 0.0
    %290 = vmatpush1.msra.mxu0 0.0
    %291 = vmatprep.subr.mxu0 0.0
    %292 = vmatpush1.msra.mxu0 0.0
    %293 = vmatprep.subr.mxu0 0.0
    %294 = vmatpush1.msra.mxu0 0.0
    %295 = vmatprep.subr.mxu0 0.0
    %296 = vmatpush1.msra.mxu0 0.0
    %297 = vmatprep.subr.mxu0 0.0
    %298 = vmatpush1.msra.mxu0 0.0
    %299 = vmatprep.subr.mxu0 0.0
    %300 = vmatpush1.msra.mxu0 0.0
    %301 = vmatprep.subr.mxu0 0.0
    %302 = vmatpush1.msra.mxu0 0.0
    %303 = vmatprep.subr.mxu0 0.0
    %304 = vmatpush1.msra.mxu0 0.0
    %305 = vmatprep.subr.mxu0 0.0
    %306 = vmatpush1.msra.mxu0 0.0
    %307 = vmatprep.mubr.f32.mxu0 0.0
    %308 = vmatmul.mubr.f32.gmra.mrb[0].mxu0 %v241
    %v309 = vpop.f32.mrb[0].mxu0
    %v310 = vadd.f32 0.0, %v309
    %v311 = vpop.f32.mrb[0].mxu0
    %v312 = vadd.f32 0.0, %v311
    %313 = vdwg.mxu0
    %v314 = vadd.f32 %v310, %v230
    %v316 = vrot.slane %v238, 6
    %v318 = vadd.f32 %v312, %v316
    %v319 = vtanh.pop %v314
    %v320 = vmul.f32 %v314, 0.5
    %v321 = vtanh.pop %v320
    %v322 = vadd.f32 %v321, 1.0
    %v323 = vmul.f32 %v322, 0.5
    %v324 = vsel %vm109, 1, 0
    %vm325 = vcmp.eq.s32.totalorder %v324, 1
    %v326 = vsel %vm325, %v319, %v323
    %v327 = vtanh.pop %v318
    %v328 = vmul.f32 %v318, 0.5
    %v329 = vtanh.pop %v328
    %v330 = vadd.f32 %v329, 1.0
    %v331 = vmul.f32 %v330, 0.5
    %v332 = vsel %vm325, %v327, %v331
    %v333 = vmul.f32 %v326, 0.0
    %335 = vrot.lane.b32.xlu0 %v326, 64
    %v336 = vpop.permute.xlu0 %335
    %v338 = vmul.f32 %v326, %v336
    %340 = vrot.lane.b32.xlu0 %v338, 32
    %v341 = vpop.permute.xlu0 %340
    %v343 = vadd.f32 %v333, %v341
    %v344 = vtanh.pop %v343
    %346 = vrot.lane.b32.xlu0 %v344, 64
    %v347 = vpop.permute.xlu0 %346
    %v349 = vmul.f32 %v326, %v347
    %v350 = vmul.f32 %v332, 0.0
    %352 = vrot.lane.b32.xlu0 %v332, 64
    %v353 = vpop.permute.xlu0 %352
    %v355 = vmul.f32 %v332, %v353
    %357 = vrot.lane.b32.xlu0 %v355, 32
    %v358 = vpop.permute.xlu0 %357
    %v360 = vadd.f32 %v350, %v358
    %v361 = vtanh.pop %v360
    %363 = vrot.lane.b32.xlu0 %v361, 64
    %v364 = vpop.permute.xlu0 %363
    %v366 = vmul.f32 %v332, %v364
    %368 = vrot.lane.b32.xlu0 %v349, 32
    %v369 = vpop.permute.xlu0 %368
    %372 = vrot.lane.b32.xlu0 %v366, 64
    %v373 = vpop.permute.xlu0 %372
    %vm375 = vcmask 261120
    %v376 = vsel %vm375, %v369, %v373
    %v378 = vsel %vm156, %v376, 0
    %380 = vmatprep.subr.mxu0 %v129
    %381 = vmatpush1.msra.mxu0 %v128
    %382 = vmatprep.subr.mxu0 %v131
    %383 = vmatpush1.msra.mxu0 %v130
    %384 = vmatprep.subr.mxu0 %v133
    %385 = vmatpush1.msra.mxu0 %v132
    %386 = vmatprep.subr.mxu0 %v135
    %387 = vmatpush1.msra.mxu0 %v134
    %388 = vmatprep.subr.mxu0 %v137
    %389 = vmatpush1.msra.mxu0 %v136
    %390 = vmatprep.subr.mxu0 %v139
    %391 = vmatpush1.msra.mxu0 %v138
    %392 = vmatprep.subr.mxu0 %v141
    %393 = vmatpush1.msra.mxu0 %v140
    %394 = vmatprep.subr.mxu0 %v143
    %395 = vmatpush1.msra.mxu0 %v142
    %396 = vmatprep.subr.mxu0 0.0
    %397 = vmatpush1.msra.mxu0 0.0
    %398 = vmatprep.subr.mxu0 0.0
    %399 = vmatpush1.msra.mxu0 0.0
    %400 = vmatprep.subr.mxu0 0.0
    %401 = vmatpush1.msra.mxu0 0.0
    %402 = vmatprep.subr.mxu0 0.0
    %403 = vmatpush1.msra.mxu0 0.0
    %404 = vmatprep.subr.mxu0 0.0
    %405 = vmatpush1.msra.mxu0 0.0
    %406 = vmatprep.subr.mxu0 0.0
    %407 = vmatpush1.msra.mxu0 0.0
    %408 = vmatprep.subr.mxu0 0.0
    %409 = vmatpush1.msra.mxu0 0.0
    %410 = vmatprep.subr.mxu0 0.0
    %411 = vmatpush1.msra.mxu0 0.0
    %412 = vmatprep.subr.mxu0 0.0
    %413 = vmatpush1.msra.mxu0 0.0
    %414 = vmatprep.subr.mxu0 0.0
    %415 = vmatpush1.msra.mxu0 0.0
    %416 = vmatprep.subr.mxu0 0.0
    %417 = vmatpush1.msra.mxu0 0.0
    %418 = vmatprep.subr.mxu0 0.0
    %419 = vmatpush1.msra.mxu0 0.0
    %420 = vmatprep.subr.mxu0 0.0
    %421 = vmatpush1.msra.mxu0 0.0
    %422 = vmatprep.subr.mxu0 0.0
    %423 = vmatpush1.msra.mxu0 0.0
    %424 = vmatprep.subr.mxu0 0.0
    %425 = vmatpush1.msra.mxu0 0.0
    %426 = vmatprep.subr.mxu0 0.0
    %427 = vmatpush1.msra.mxu0 0.0
    %428 = vmatprep.subr.mxu0 0.0
    %429 = vmatpush1.msra.mxu0 0.0
    %430 = vmatprep.subr.mxu0 0.0
    %431 = vmatpush1.msra.mxu0 0.0
    %432 = vmatprep.subr.mxu0 0.0
    %433 = vmatpush1.msra.mxu0 0.0
    %434 = vmatprep.subr.mxu0 0.0
    %435 = vmatpush1.msra.mxu0 0.0
    %436 = vmatprep.subr.mxu0 0.0
    %437 = vmatpush1.msra.mxu0 0.0
    %438 = vmatprep.subr.mxu0 0.0
    %439 = vmatpush1.msra.mxu0 0.0
    %440 = vmatprep.subr.mxu0 0.0
    %441 = vmatpush1.msra.mxu0 0.0
    %442 = vmatprep.subr.mxu0 0.0
    %443 = vmatpush1.msra.mxu0 0.0
    %444 = vmatprep.mubr.f32.mxu0 0.0
    %445 = vmatmul.mubr.f32.gmra.mrb[0].mxu0 %v378
    %v446 = vpop.f32.mrb[0].mxu0
    %v447 = vadd.f32 0.0, %v446
    %v448 = vpop.f32.mrb[0].mxu0
    %v449 = vadd.f32 0.0, %v448
    %450 = vdwg.mxu0
    %v452 = vrot.slane %v230, 2
    %v454 = vadd.f32 %v447, %v452
    %v455 = vrot.slane %v238, 4
    %v457 = vadd.f32 %v449, %v455
    %v458 = vtanh.pop %v454
    %v459 = vmul.f32 %v454, 0.5
    %v460 = vtanh.pop %v459
    %v461 = vadd.f32 %v460, 1.0
    %v462 = vmul.f32 %v461, 0.5
    %v463 = vsel %vm325, %v458, %v462
    %v464 = vtanh.pop %v457
    %v465 = vmul.f32 %v457, 0.5
    %v466 = vtanh.pop %v465
    %v467 = vadd.f32 %v466, 1.0
    %v468 = vmul.f32 %v467, 0.5
    %v469 = vsel %vm325, %v464, %v468
    %v470 = vmul.f32 %v463, %v343
    %472 = vrot.lane.b32.xlu0 %v463, 64
    %v473 = vpop.permute.xlu0 %472
    %v475 = vmul.f32 %v463, %v473
    %477 = vrot.lane.b32.xlu0 %v475, 32
    %v478 = vpop.permute.xlu0 %477
    %v480 = vadd.f32 %v470, %v478
    %v481 = vtanh.pop %v480
    %483 = vrot.lane.b32.xlu0 %v481, 64
    %v484 = vpop.permute.xlu0 %483
    %v486 = vmul.f32 %v463, %v484
    %v487 = vmul.f32 %v469, %v360
    %489 = vrot.lane.b32.xlu0 %v469, 64
    %v490 = vpop.permute.xlu0 %489
    %v492 = vmul.f32 %v469, %v490
    %494 = vrot.lane.b32.xlu0 %v492, 32
    %v495 = vpop.permute.xlu0 %494
    %v497 = vadd.f32 %v487, %v495
    %v498 = vtanh.pop %v497
    %500 = vrot.lane.b32.xlu0 %v498, 64
    %v501 = vpop.permute.xlu0 %500
    %v503 = vmul.f32 %v469, %v501
    %505 = vrot.lane.b32.xlu0 %v486, 32
    %v506 = vpop.permute.xlu0 %505
    %509 = vrot.lane.b32.xlu0 %v503, 64
    %v510 = vpop.permute.xlu0 %509
    %v512 = vsel %vm375, %v506, %v510
    %v514 = vsel %vm156, %v512, 0
    %516 = vmatprep.subr.mxu0 %v129
    %517 = vmatpush1.msra.mxu0 %v128
    %518 = vmatprep.subr.mxu0 %v131
    %519 = vmatpush1.msra.mxu0 %v130
    %520 = vmatprep.subr.mxu0 %v133
    %521 = vmatpush1.msra.mxu0 %v132
    %522 = vmatprep.subr.mxu0 %v135
    %523 = vmatpush1.msra.mxu0 %v134
    %524 = vmatprep.subr.mxu0 %v137
    %525 = vmatpush1.msra.mxu0 %v136
    %526 = vmatprep.subr.mxu0 %v139
    %527 = vmatpush1.msra.mxu0 %v138
    %528 = vmatprep.subr.mxu0 %v141
    %529 = vmatpush1.msra.mxu0 %v140
    %530 = vmatprep.subr.mxu0 %v143
    %531 = vmatpush1.msra.mxu0 %v142
    %532 = vmatprep.subr.mxu0 0.0
    %533 = vmatpush1.msra.mxu0 0.0
    %534 = vmatprep.subr.mxu0 0.0
    %535 = vmatpush1.msra.mxu0 0.0
    %536 = vmatprep.subr.mxu0 0.0
    %537 = vmatpush1.msra.mxu0 0.0
    %538 = vmatprep.subr.mxu0 0.0
    %539 = vmatpush1.msra.mxu0 0.0
    %540 = vmatprep.subr.mxu0 0.0
    %541 = vmatpush1.msra.mxu0 0.0
    %542 = vmatprep.subr.mxu0 0.0
    %543 = vmatpush1.msra.mxu0 0.0
    %544 = vmatprep.subr.mxu0 0.0
    %545 = vmatpush1.msra.mxu0 0.0
    %546 = vmatprep.subr.mxu0 0.0
    %547 = vmatpush1.msra.mxu0 0.0
    %548 = vmatprep.subr.mxu0 0.0
    %549 = vmatpush1.msra.mxu0 0.0
    %550 = vmatprep.subr.mxu0 0.0
    %551 = vmatpush1.msra.mxu0 0.0
    %552 = vmatprep.subr.mxu0 0.0
    %553 = vmatpush1.msra.mxu0 0.0
    %554 = vmatprep.subr.mxu0 0.0
    %555 = vmatpush1.msra.mxu0 0.0
    %556 = vmatprep.subr.mxu0 0.0
    %557 = vmatpush1.msra.mxu0 0.0
    %558 = vmatprep.subr.mxu0 0.0
    %559 = vmatpush1.msra.mxu0 0.0
    %560 = vmatprep.subr.mxu0 0.0
    %561 = vmatpush1.msra.mxu0 0.0
    %562 = vmatprep.subr.mxu0 0.0
    %563 = vmatpush1.msra.mxu0 0.0
    %564 = vmatprep.subr.mxu0 0.0
    %565 = vmatpush1.msra.mxu0 0.0
    %566 = vmatprep.subr.mxu0 0.0
    %567 = vmatpush1.msra.mxu0 0.0
    %568 = vmatprep.subr.mxu0 0.0
    %569 = vmatpush1.msra.mxu0 0.0
    %570 = vmatprep.subr.mxu0 0.0
    %571 = vmatpush1.msra.mxu0 0.0
    %572 = vmatprep.subr.mxu0 0.0
    %573 = vmatpush1.msra.mxu0 0.0
    %574 = vmatprep.subr.mxu0 0.0
    %575 = vmatpush1.msra.mxu0 0.0
    %576 = vmatprep.subr.mxu0 0.0
    %577 = vmatpush1.msra.mxu0 0.0
    %578 = vmatprep.subr.mxu0 0.0
    %579 = vmatpush1.msra.mxu0 0.0
    %580 = vmatprep.mubr.f32.mxu0 0.0
    %581 = vmatmul.mubr.f32.gmra.mrb[0].mxu0 %v514
    %v582 = vpop.f32.mrb[0].mxu0
    %v583 = vadd.f32 0.0, %v582
    %v584 = vpop.f32.mrb[0].mxu0
    %v585 = vadd.f32 0.0, %v584
    %586 = vdwg.mxu0
    %v587 = vrot.slane %v230, 4
    %v589 = vadd.f32 %v583, %v587
    %v590 = vrot.slane %v238, 2
    %v592 = vadd.f32 %v585, %v590
    %v593 = vtanh.pop %v589
    %v594 = vmul.f32 %v589, 0.5
    %v595 = vtanh.pop %v594
    %v596 = vadd.f32 %v595, 1.0
    %v597 = vmul.f32 %v596, 0.5
    %v598 = vsel %vm325, %v593, %v597
    %v599 = vtanh.pop %v592
    %v600 = vmul.f32 %v592, 0.5
    %v601 = vtanh.pop %v600
    %v602 = vadd.f32 %v601, 1.0
    %v603 = vmul.f32 %v602, 0.5
    %v604 = vsel %vm325, %v599, %v603
    %v605 = vmul.f32 %v598, %v480
    %607 = vrot.lane.b32.xlu0 %v598, 64
    %v608 = vpop.permute.xlu0 %607
    %v610 = vmul.f32 %v598, %v608
    %612 = vrot.lane.b32.xlu0 %v610, 32
    %v613 = vpop.permute.xlu0 %612
    %v615 = vadd.f32 %v605, %v613
    %v616 = vtanh.pop %v615
    %618 = vrot.lane.b32.xlu0 %v616, 64
    %v619 = vpop.permute.xlu0 %618
    %v621 = vmul.f32 %v598, %v619
    %v622 = vmul.f32 %v604, %v497
    %624 = vrot.lane.b32.xlu0 %v604, 64
    %v625 = vpop.permute.xlu0 %624
    %v627 = vmul.f32 %v604, %v625
    %629 = vrot.lane.b32.xlu0 %v627, 32
    %v630 = vpop.permute.xlu0 %629
    %v632 = vadd.f32 %v622, %v630
    %v633 = vtanh.pop %v632
    %635 = vrot.lane.b32.xlu0 %v633, 64
    %v636 = vpop.permute.xlu0 %635
    %v638 = vmul.f32 %v604, %v636
    %640 = vrot.lane.b32.xlu0 %v621, 32
    %v641 = vpop.permute.xlu0 %640
    %644 = vrot.lane.b32.xlu0 %v638, 64
    %v645 = vpop.permute.xlu0 %644
    %v647 = vsel %vm375, %v641, %v645
    %v649 = vsel %vm156, %v647, 0
    %651 = vmatprep.subr.mxu0 %v129
    %652 = vmatpush1.msra.mxu0 %v128
    %653 = vmatprep.subr.mxu0 %v131
    %654 = vmatpush1.msra.mxu0 %v130
    %655 = vmatprep.subr.mxu0 %v133
    %656 = vmatpush1.msra.mxu0 %v132
    %657 = vmatprep.subr.mxu0 %v135
    %658 = vmatpush1.msra.mxu0 %v134
    %659 = vmatprep.subr.mxu0 %v137
    %660 = vmatpush1.msra.mxu0 %v136
    %661 = vmatprep.subr.mxu0 %v139
    %662 = vmatpush1.msra.mxu0 %v138
    %663 = vmatprep.subr.mxu0 %v141
    %664 = vmatpush1.msra.mxu0 %v140
    %665 = vmatprep.subr.mxu0 %v143
    %666 = vmatpush1.msra.mxu0 %v142
    %667 = vmatprep.subr.mxu0 0.0
    %668 = vmatpush1.msra.mxu0 0.0
    %669 = vmatprep.subr.mxu0 0.0
    %670 = vmatpush1.msra.mxu0 0.0
    %671 = vmatprep.subr.mxu0 0.0
    %672 = vmatpush1.msra.mxu0 0.0
    %673 = vmatprep.subr.mxu0 0.0
    %674 = vmatpush1.msra.mxu0 0.0
    %675 = vmatprep.subr.mxu0 0.0
    %676 = vmatpush1.msra.mxu0 0.0
    %677 = vmatprep.subr.mxu0 0.0
    %678 = vmatpush1.msra.mxu0 0.0
    %679 = vmatprep.subr.mxu0 0.0
    %680 = vmatpush1.msra.mxu0 0.0
    %681 = vmatprep.subr.mxu0 0.0
    %682 = vmatpush1.msra.mxu0 0.0
    %683 = vmatprep.subr.mxu0 0.0
    %684 = vmatpush1.msra.mxu0 0.0
    %685 = vmatprep.subr.mxu0 0.0
    %686 = vmatpush1.msra.mxu0 0.0
    %687 = vmatprep.subr.mxu0 0.0
    %688 = vmatpush1.msra.mxu0 0.0
    %689 = vmatprep.subr.mxu0 0.0
    %690 = vmatpush1.msra.mxu0 0.0
    %691 = vmatprep.subr.mxu0 0.0
    %692 = vmatpush1.msra.mxu0 0.0
    %693 = vmatprep.subr.mxu0 0.0
    %694 = vmatpush1.msra.mxu0 0.0
    %695 = vmatprep.subr.mxu0 0.0
    %696 = vmatpush1.msra.mxu0 0.0
    %697 = vmatprep.subr.mxu0 0.0
    %698 = vmatpush1.msra.mxu0 0.0
    %699 = vmatprep.subr.mxu0 0.0
    %700 = vmatpush1.msra.mxu0 0.0
    %701 = vmatprep.subr.mxu0 0.0
    %702 = vmatpush1.msra.mxu0 0.0
    %703 = vmatprep.subr.mxu0 0.0
    %704 = vmatpush1.msra.mxu0 0.0
    %705 = vmatprep.subr.mxu0 0.0
    %706 = vmatpush1.msra.mxu0 0.0
    %707 = vmatprep.subr.mxu0 0.0
    %708 = vmatpush1.msra.mxu0 0.0
    %709 = vmatprep.subr.mxu0 0.0
    %710 = vmatpush1.msra.mxu0 0.0
    %711 = vmatprep.subr.mxu0 0.0
    %712 = vmatpush1.msra.mxu0 0.0
    %713 = vmatprep.subr.mxu0 0.0
    %714 = vmatpush1.msra.mxu0 0.0
    %715 = vmatprep.mubr.f32.mxu0 0.0
    %716 = vmatmul.mubr.f32.gmra.mrb[0].mxu0 %v649
    %v717 = vpop.f32.mrb[0].mxu0
    %v718 = vadd.f32 0.0, %v717
    %v719 = vpop.f32.mrb[0].mxu0
    %v720 = vadd.f32 0.0, %v719
    %721 = vdwg.mxu0
    %v722 = vrot.slane %v230, 6
    %v724 = vadd.f32 %v718, %v722
    %v725 = vadd.f32 %v720, %v238
    %v726 = vtanh.pop %v724
    %v727 = vmul.f32 %v724, 0.5
    %v728 = vtanh.pop %v727
    %v729 = vadd.f32 %v728, 1.0
    %v730 = vmul.f32 %v729, 0.5
    %v731 = vsel %vm325, %v726, %v730
    %v732 = vtanh.pop %v725
    %v733 = vmul.f32 %v725, 0.5
    %v734 = vtanh.pop %v733
    %v735 = vadd.f32 %v734, 1.0
    %v736 = vmul.f32 %v735, 0.5
    %v737 = vsel %vm325, %v732, %v736
    %v738 = vmul.f32 %v731, %v615
    %740 = vrot.lane.b32.xlu0 %v731, 64
    %v741 = vpop.permute.xlu0 %740
    %v743 = vmul.f32 %v731, %v741
    %745 = vrot.lane.b32.xlu0 %v743, 32
    %v746 = vpop.permute.xlu0 %745
    %v748 = vadd.f32 %v738, %v746
    %v749 = vtanh.pop %v748
    %751 = vrot.lane.b32.xlu0 %v749, 64
    %v752 = vpop.permute.xlu0 %751
    %v754 = vmul.f32 %v731, %v752
    %v755 = vmul.f32 %v737, %v632
    %757 = vrot.lane.b32.xlu0 %v737, 64
    %v758 = vpop.permute.xlu0 %757
    %v760 = vmul.f32 %v737, %v758
    %762 = vrot.lane.b32.xlu0 %v760, 32
    %v763 = vpop.permute.xlu0 %762
    %v765 = vadd.f32 %v755, %v763
    %v766 = vtanh.pop %v765
    %768 = vrot.lane.b32.xlu0 %v766, 64
    %v769 = vpop.permute.xlu0 %768
    %v771 = vmul.f32 %v737, %v769
    %773 = vrot.lane.b32.xlu0 %v754, 32
    %v774 = vpop.permute.xlu0 %773
    %777 = vrot.lane.b32.xlu0 %v771, 64
    %v778 = vpop.permute.xlu0 %777
    %v780 = vsel %vm375, %v774, %v778
    %v782 = vsel %vm156, %v780, 0
    %784 = vmatprep.subr.mxu0 %v129
    %785 = vmatpush1.msra.mxu0 %v128
    %786 = vmatprep.subr.mxu0 %v131
    %787 = vmatpush1.msra.mxu0 %v130
    %788 = vmatprep.subr.mxu0 %v133
    %789 = vmatpush1.msra.mxu0 %v132
    %790 = vmatprep.subr.mxu0 %v135
    %791 = vmatpush1.msra.mxu0 %v134
    %792 = vmatprep.subr.mxu0 %v137
    %793 = vmatpush1.msra.mxu0 %v136
    %794 = vmatprep.subr.mxu0 %v139
    %795 = vmatpush1.msra.mxu0 %v138
    %796 = vmatprep.subr.mxu0 %v141
    %797 = vmatpush1.msra.mxu0 %v140
    %798 = vmatprep.subr.mxu0 %v143
    %799 = vmatpush1.msra.mxu0 %v142
    %800 = vmatprep.subr.mxu0 0.0
    %801 = vmatpush1.msra.mxu0 0.0
    %802 = vmatprep.subr.mxu0 0.0
    %803 = vmatpush1.msra.mxu0 0.0
    %804 = vmatprep.subr.mxu0 0.0
    %805 = vmatpush1.msra.mxu0 0.0
    %806 = vmatprep.subr.mxu0 0.0
    %807 = vmatpush1.msra.mxu0 0.0
    %808 = vmatprep.subr.mxu0 0.0
    %809 = vmatpush1.msra.mxu0 0.0
    %810 = vmatprep.subr.mxu0 0.0
    %811 = vmatpush1.msra.mxu0 0.0
    %812 = vmatprep.subr.mxu0 0.0
    %813 = vmatpush1.msra.mxu0 0.0
    %814 = vmatprep.subr.mxu0 0.0
    %815 = vmatpush1.msra.mxu0 0.0
    %816 = vmatprep.subr.mxu0 0.0
    %817 = vmatpush1.msra.mxu0 0.0
    %818 = vmatprep.subr.mxu0 0.0
    %819 = vmatpush1.msra.mxu0 0.0
    %820 = vmatprep.subr.mxu0 0.0
    %821 = vmatpush1.msra.mxu0 0.0
    %822 = vmatprep.subr.mxu0 0.0
    %823 = vmatpush1.msra.mxu0 0.0
    %824 = vmatprep.subr.mxu0 0.0
    %825 = vmatpush1.msra.mxu0 0.0
    %826 = vmatprep.subr.mxu0 0.0
    %827 = vmatpush1.msra.mxu0 0.0
    %828 = vmatprep.subr.mxu0 0.0
    %829 = vmatpush1.msra.mxu0 0.0
    %830 = vmatprep.subr.mxu0 0.0
    %831 = vmatpush1.msra.mxu0 0.0
    %832 = vmatprep.subr.mxu0 0.0
    %833 = vmatpush1.msra.mxu0 0.0
    %834 = vmatprep.subr.mxu0 0.0
    %835 = vmatpush1.msra.mxu0 0.0
    %836 = vmatprep.subr.mxu0 0.0
    %837 = vmatpush1.msra.mxu0 0.0
    %838 = vmatprep.subr.mxu0 0.0
    %839 = vmatpush1.msra.mxu0 0.0
    %840 = vmatprep.subr.mxu0 0.0
    %841 = vmatpush1.msra.mxu0 0.0
    %842 = vmatprep.subr.mxu0 0.0
    %843 = vmatpush1.msra.mxu0 0.0
    %844 = vmatprep.subr.mxu0 0.0
    %845 = vmatpush1.msra.mxu0 0.0
    %846 = vmatprep.subr.mxu0 0.0
    %847 = vmatpush1.msra.mxu0 0.0
    %848 = vmatprep.mubr.f32.mxu0 0.0
    %849 = vmatmul.mubr.f32.gmra.mrb[0].mxu0 %v782
    %v850 = vpop.f32.mrb[0].mxu0
    %v851 = vadd.f32 0.0, %v850
    %v852 = vpop.f32.mrb[0].mxu0
    %v853 = vadd.f32 0.0, %v852
    %854 = vdwg.mxu0
    %v855 = vadd.f32 %v851, %v236
    %v857 = vrot.slane %v232, 6
    %v859 = vadd.f32 %v853, %v857
    %v860 = vtanh.pop %v855
    %v861 = vmul.f32 %v855, 0.5
    %v862 = vtanh.pop %v861
    %v863 = vadd.f32 %v862, 1.0
    %v864 = vmul.f32 %v863, 0.5
    %v865 = vsel %vm325, %v860, %v864
    %v866 = vtanh.pop %v859
    %v867 = vmul.f32 %v859, 0.5
    %v868 = vtanh.pop %v867
    %v869 = vadd.f32 %v868, 1.0
    %v870 = vmul.f32 %v869, 0.5
    %v871 = vsel %vm325, %v866, %v870
    %v872 = vmul.f32 %v865, %v748
    %874 = vrot.lane.b32.xlu0 %v865, 64
    %v875 = vpop.permute.xlu0 %874
    %v877 = vmul.f32 %v865, %v875
    %879 = vrot.lane.b32.xlu0 %v877, 32
    %v880 = vpop.permute.xlu0 %879
    %v882 = vadd.f32 %v872, %v880
    %v883 = vtanh.pop %v882
    %885 = vrot.lane.b32.xlu0 %v883, 64
    %v886 = vpop.permute.xlu0 %885
    %v888 = vmul.f32 %v865, %v886
    %v889 = vmul.f32 %v871, %v765
    %891 = vrot.lane.b32.xlu0 %v871, 64
    %v892 = vpop.permute.xlu0 %891
    %v894 = vmul.f32 %v871, %v892
    %896 = vrot.lane.b32.xlu0 %v894, 32
    %v897 = vpop.permute.xlu0 %896
    %v899 = vadd.f32 %v889, %v897
    %v900 = vtanh.pop %v899
    %902 = vrot.lane.b32.xlu0 %v900, 64
    %v903 = vpop.permute.xlu0 %902
    %v905 = vmul.f32 %v871, %v903
    %907 = vrot.lane.b32.xlu0 %v888, 32
    %v908 = vpop.permute.xlu0 %907
    %911 = vrot.lane.b32.xlu0 %v905, 64
    %v912 = vpop.permute.xlu0 %911
    %v914 = vsel %vm375, %v908, %v912
    %v916 = vsel %vm156, %v914, 0
    %918 = vmatprep.subr.mxu0 %v129
    %919 = vmatpush1.msra.mxu0 %v128
    %920 = vmatprep.subr.mxu0 %v131
    %921 = vmatpush1.msra.mxu0 %v130
    %922 = vmatprep.subr.mxu0 %v133
    %923 = vmatpush1.msra.mxu0 %v132
    %924 = vmatprep.subr.mxu0 %v135
    %925 = vmatpush1.msra.mxu0 %v134
    %926 = vmatprep.subr.mxu0 %v137
    %927 = vmatpush1.msra.mxu0 %v136
    %928 = vmatprep.subr.mxu0 %v139
    %929 = vmatpush1.msra.mxu0 %v138
    %930 = vmatprep.subr.mxu0 %v141
    %931 = vmatpush1.msra.mxu0 %v140
    %932 = vmatprep.subr.mxu0 %v143
    %933 = vmatpush1.msra.mxu0 %v142
    %934 = vmatprep.subr.mxu0 0.0
    %935 = vmatpush1.msra.mxu0 0.0
    %936 = vmatprep.subr.mxu0 0.0
    %937 = vmatpush1.msra.mxu0 0.0
    %938 = vmatprep.subr.mxu0 0.0
    %939 = vmatpush1.msra.mxu0 0.0
    %940 = vmatprep.subr.mxu0 0.0
    %941 = vmatpush1.msra.mxu0 0.0
    %942 = vmatprep.subr.mxu0 0.0
    %943 = vmatpush1.msra.mxu0 0.0
    %944 = vmatprep.subr.mxu0 0.0
    %945 = vmatpush1.msra.mxu0 0.0
    %946 = vmatprep.subr.mxu0 0.0
    %947 = vmatpush1.msra.mxu0 0.0
    %948 = vmatprep.subr.mxu0 0.0
    %949 = vmatpush1.msra.mxu0 0.0
    %950 = vmatprep.subr.mxu0 0.0
    %951 = vmatpush1.msra.mxu0 0.0
    %952 = vmatprep.subr.mxu0 0.0
    %953 = vmatpush1.msra.mxu0 0.0
    %954 = vmatprep.subr.mxu0 0.0
    %955 = vmatpush1.msra.mxu0 0.0
    %956 = vmatprep.subr.mxu0 0.0
    %957 = vmatpush1.msra.mxu0 0.0
    %958 = vmatprep.subr.mxu0 0.0
    %959 = vmatpush1.msra.mxu0 0.0
    %960 = vmatprep.subr.mxu0 0.0
    %961 = vmatpush1.msra.mxu0 0.0
    %962 = vmatprep.subr.mxu0 0.0
    %963 = vmatpush1.msra.mxu0 0.0
    %964 = vmatprep.subr.mxu0 0.0
    %965 = vmatpush1.msra.mxu0 0.0
    %966 = vmatprep.subr.mxu0 0.0
    %967 = vmatpush1.msra.mxu0 0.0
    %968 = vmatprep.subr.mxu0 0.0
    %969 = vmatpush1.msra.mxu0 0.0
    %970 = vmatprep.subr.mxu0 0.0
    %971 = vmatpush1.msra.mxu0 0.0
    %972 = vmatprep.subr.mxu0 0.0
    %973 = vmatpush1.msra.mxu0 0.0
    %974 = vmatprep.subr.mxu0 0.0
    %975 = vmatpush1.msra.mxu0 0.0
    %976 = vmatprep.subr.mxu0 0.0
    %977 = vmatpush1.msra.mxu0 0.0
    %978 = vmatprep.subr.mxu0 0.0
    %979 = vmatpush1.msra.mxu0 0.0
    %980 = vmatprep.subr.mxu0 0.0
    %981 = vmatpush1.msra.mxu0 0.0
    %982 = vmatprep.mubr.f32.mxu0 0.0
    %983 = vmatmul.mubr.f32.gmra.mrb[0].mxu0 %v916
    %v984 = vpop.f32.mrb[0].mxu0
    %v985 = vadd.f32 0.0, %v984
    %v986 = vpop.f32.mrb[0].mxu0
    %v987 = vadd.f32 0.0, %v986
    %988 = vdwg.mxu0
    %v990 = vrot.slane %v236, 2
    %v992 = vadd.f32 %v985, %v990
    %v993 = vrot.slane %v232, 4
    %v995 = vadd.f32 %v987, %v993
    %v996 = vtanh.pop %v992
    %v997 = vmul.f32 %v992, 0.5
    %v998 = vtanh.pop %v997
    %v999 = vadd.f32 %v998, 1.0
    %v1000 = vmul.f32 %v999, 0.5
    %v1001 = vsel %vm325, %v996, %v1000
    %v1002 = vtanh.pop %v995
    %v1003 = vmul.f32 %v995, 0.5
    %v1004 = vtanh.pop %v1003
    %v1005 = vadd.f32 %v1004, 1.0
    %v1006 = vmul.f32 %v1005, 0.5
    %v1007 = vsel %vm325, %v1002, %v1006
    %v1008 = vmul.f32 %v1001, %v882
    %1010 = vrot.lane.b32.xlu0 %v1001, 64
    %v1011 = vpop.permute.xlu0 %1010
    %v1013 = vmul.f32 %v1001, %v1011
    %1015 = vrot.lane.b32.xlu0 %v1013, 32
    %v1016 = vpop.permute.xlu0 %1015
    %v1018 = vadd.f32 %v1008, %v1016
    %v1019 = vtanh.pop %v1018
    %1021 = vrot.lane.b32.xlu0 %v1019, 64
    %v1022 = vpop.permute.xlu0 %1021
    %v1024 = vmul.f32 %v1001, %v1022
    %v1025 = vmul.f32 %v1007, %v899
    %1027 = vrot.lane.b32.xlu0 %v1007, 64
    %v1028 = vpop.permute.xlu0 %1027
    %v1030 = vmul.f32 %v1007, %v1028
    %1032 = vrot.lane.b32.xlu0 %v1030, 32
    %v1033 = vpop.permute.xlu0 %1032
    %v1035 = vadd.f32 %v1025, %v1033
    %v1036 = vtanh.pop %v1035
    %1038 = vrot.lane.b32.xlu0 %v1036, 64
    %v1039 = vpop.permute.xlu0 %1038
    %v1041 = vmul.f32 %v1007, %v1039
    %1043 = vrot.lane.b32.xlu0 %v1024, 32
    %v1044 = vpop.permute.xlu0 %1043
    %1047 = vrot.lane.b32.xlu0 %v1041, 64
    %v1048 = vpop.permute.xlu0 %1047
    %v1050 = vsel %vm375, %v1044, %v1048
    %v1052 = vsel %vm156, %v1050, 0
    %1054 = vmatprep.subr.mxu0 %v129
    %1055 = vmatpush1.msra.mxu0 %v128
    %1056 = vmatprep.subr.mxu0 %v131
    %1057 = vmatpush1.msra.mxu0 %v130
    %1058 = vmatprep.subr.mxu0 %v133
    %1059 = vmatpush1.msra.mxu0 %v132
    %1060 = vmatprep.subr.mxu0 %v135
    %1061 = vmatpush1.msra.mxu0 %v134
    %1062 = vmatprep.subr.mxu0 %v137
    %1063 = vmatpush1.msra.mxu0 %v136
    %1064 = vmatprep.subr.mxu0 %v139
    %1065 = vmatpush1.msra.mxu0 %v138
    %1066 = vmatprep.subr.mxu0 %v141
    %1067 = vmatpush1.msra.mxu0 %v140
    %1068 = vmatprep.subr.mxu0 %v143
    %1069 = vmatpush1.msra.mxu0 %v142
    %1070 = vmatprep.subr.mxu0 0.0
    %1071 = vmatpush1.msra.mxu0 0.0
    %1072 = vmatprep.subr.mxu0 0.0
    %1073 = vmatpush1.msra.mxu0 0.0
    %1074 = vmatprep.subr.mxu0 0.0
    %1075 = vmatpush1.msra.mxu0 0.0
    %1076 = vmatprep.subr.mxu0 0.0
    %1077 = vmatpush1.msra.mxu0 0.0
    %1078 = vmatprep.subr.mxu0 0.0
    %1079 = vmatpush1.msra.mxu0 0.0
    %1080 = vmatprep.subr.mxu0 0.0
    %1081 = vmatpush1.msra.mxu0 0.0
    %1082 = vmatprep.subr.mxu0 0.0
    %1083 = vmatpush1.msra.mxu0 0.0
    %1084 = vmatprep.subr.mxu0 0.0
    %1085 = vmatpush1.msra.mxu0 0.0
    %1086 = vmatprep.subr.mxu0 0.0
    %1087 = vmatpush1.msra.mxu0 0.0
    %1088 = vmatprep.subr.mxu0 0.0
    %1089 = vmatpush1.msra.mxu0 0.0
    %1090 = vmatprep.subr.mxu0 0.0
    %1091 = vmatpush1.msra.mxu0 0.0
    %1092 = vmatprep.subr.mxu0 0.0
    %1093 = vmatpush1.msra.mxu0 0.0
    %1094 = vmatprep.subr.mxu0 0.0
    %1095 = vmatpush1.msra.mxu0 0.0
    %1096 = vmatprep.subr.mxu0 0.0
    %1097 = vmatpush1.msra.mxu0 0.0
    %1098 = vmatprep.subr.mxu0 0.0
    %1099 = vmatpush1.msra.mxu0 0.0
    %1100 = vmatprep.subr.mxu0 0.0
    %1101 = vmatpush1.msra.mxu0 0.0
    %1102 = vmatprep.subr.mxu0 0.0
    %1103 = vmatpush1.msra.mxu0 0.0
    %1104 = vmatprep.subr.mxu0 0.0
    %1105 = vmatpush1.msra.mxu0 0.0
    %1106 = vmatprep.subr.mxu0 0.0
    %1107 = vmatpush1.msra.mxu0 0.0
    %1108 = vmatprep.subr.mxu0 0.0
    %1109 = vmatpush1.msra.mxu0 0.0
    %1110 = vmatprep.subr.mxu0 0.0
    %1111 = vmatpush1.msra.mxu0 0.0
    %1112 = vmatprep.subr.mxu0 0.0
    %1113 = vmatpush1.msra.mxu0 0.0
    %1114 = vmatprep.subr.mxu0 0.0
    %1115 = vmatpush1.msra.mxu0 0.0
    %1116 = vmatprep.subr.mxu0 0.0
    %1117 = vmatpush1.msra.mxu0 0.0
    %1118 = vmatprep.mubr.f32.mxu0 0.0
    %1119 = vmatmul.mubr.f32.gmra.mrb[0].mxu0 %v1052
    %v1120 = vpop.f32.mrb[0].mxu0
    %v1121 = vadd.f32 0.0, %v1120
    %v1122 = vpop.f32.mrb[0].mxu0
    %v1123 = vadd.f32 0.0, %v1122
    %1124 = vdwg.mxu0
    %v1125 = vrot.slane %v236, 4
    %v1127 = vadd.f32 %v1121, %v1125
    %v1128 = vrot.slane %v232, 2
    %v1130 = vadd.f32 %v1123, %v1128
    %v1131 = vtanh.pop %v1127
    %v1132 = vmul.f32 %v1127, 0.5
    %v1133 = vtanh.pop %v1132
    %v1134 = vadd.f32 %v1133, 1.0
    %v1135 = vmul.f32 %v1134, 0.5
    %v1136 = vsel %vm325, %v1131, %v1135
    %v1137 = vtanh.pop %v1130
    %v1138 = vmul.f32 %v1130, 0.5
    %v1139 = vtanh.pop %v1138
    %v1140 = vadd.f32 %v1139, 1.0
    %v1141 = vmul.f32 %v1140, 0.5
    %v1142 = vsel %vm325, %v1137, %v1141
    %v1143 = vmul.f32 %v1136, %v1018
    %1145 = vrot.lane.b32.xlu0 %v1136, 64
    %v1146 = vpop.permute.xlu0 %1145
    %v1148 = vmul.f32 %v1136, %v1146
    %1150 = vrot.lane.b32.xlu0 %v1148, 32
    %v1151 = vpop.permute.xlu0 %1150
    %v1153 = vadd.f32 %v1143, %v1151
    %v1154 = vtanh.pop %v1153
    %1156 = vrot.lane.b32.xlu0 %v1154, 64
    %v1157 = vpop.permute.xlu0 %1156
    %v1159 = vmul.f32 %v1136, %v1157
    %v1160 = vmul.f32 %v1142, %v1035
    %1162 = vrot.lane.b32.xlu0 %v1142, 64
    %v1163 = vpop.permute.xlu0 %1162
    %v1165 = vmul.f32 %v1142, %v1163
    %1167 = vrot.lane.b32.xlu0 %v1165, 32
    %v1168 = vpop.permute.xlu0 %1167
    %v1170 = vadd.f32 %v1160, %v1168
    %v1171 = vtanh.pop %v1170
    %1173 = vrot.lane.b32.xlu0 %v1171, 64
    %v1174 = vpop.permute.xlu0 %1173
    %v1176 = vmul.f32 %v1142, %v1174
    %1178 = vrot.lane.b32.xlu0 %v1159, 32
    %v1179 = vpop.permute.xlu0 %1178
    %1182 = vrot.lane.b32.xlu0 %v1176, 64
    %v1183 = vpop.permute.xlu0 %1182
    %v1185 = vsel %vm375, %v1179, %v1183
    %v1187 = vsel %vm156, %v1185, 0
    %1189 = vmatprep.subr.mxu0 %v129
    %1190 = vmatpush1.msra.mxu0 %v128
    %1191 = vmatprep.subr.mxu0 %v131
    %1192 = vmatpush1.msra.mxu0 %v130
    %1193 = vmatprep.subr.mxu0 %v133
    %1194 = vmatpush1.msra.mxu0 %v132
    %1195 = vmatprep.subr.mxu0 %v135
    %1196 = vmatpush1.msra.mxu0 %v134
    %1197 = vmatprep.subr.mxu0 %v137
    %1198 = vmatpush1.msra.mxu0 %v136
    %1199 = vmatprep.subr.mxu0 %v139
    %1200 = vmatpush1.msra.mxu0 %v138
    %1201 = vmatprep.subr.mxu0 %v141
    %1202 = vmatpush1.msra.mxu0 %v140
    %1203 = vmatprep.subr.mxu0 %v143
    %1204 = vmatpush1.msra.mxu0 %v142
    %1205 = vmatprep.subr.mxu0 0.0
    %1206 = vmatpush1.msra.mxu0 0.0
    %1207 = vmatprep.subr.mxu0 0.0
    %1208 = vmatpush1.msra.mxu0 0.0
    %1209 = vmatprep.subr.mxu0 0.0
    %1210 = vmatpush1.msra.mxu0 0.0
    %1211 = vmatprep.subr.mxu0 0.0
    %1212 = vmatpush1.msra.mxu0 0.0
    %1213 = vmatprep.subr.mxu0 0.0
    %1214 = vmatpush1.msra.mxu0 0.0
    %1215 = vmatprep.subr.mxu0 0.0
    %1216 = vmatpush1.msra.mxu0 0.0
    %1217 = vmatprep.subr.mxu0 0.0
    %1218 = vmatpush1.msra.mxu0 0.0
    %1219 = vmatprep.subr.mxu0 0.0
    %1220 = vmatpush1.msra.mxu0 0.0
    %1221 = vmatprep.subr.mxu0 0.0
    %1222 = vmatpush1.msra.mxu0 0.0
    %1223 = vmatprep.subr.mxu0 0.0
    %1224 = vmatpush1.msra.mxu0 0.0
    %1225 = vmatprep.subr.mxu0 0.0
    %1226 = vmatpush1.msra.mxu0 0.0
    %1227 = vmatprep.subr.mxu0 0.0
    %1228 = vmatpush1.msra.mxu0 0.0
    %1229 = vmatprep.subr.mxu0 0.0
    %1230 = vmatpush1.msra.mxu0 0.0
    %1231 = vmatprep.subr.mxu0 0.0
    %1232 = vmatpush1.msra.mxu0 0.0
    %1233 = vmatprep.subr.mxu0 0.0
    %1234 = vmatpush1.msra.mxu0 0.0
    %1235 = vmatprep.subr.mxu0 0.0
    %1236 = vmatpush1.msra.mxu0 0.0
    %1237 = vmatprep.subr.mxu0 0.0
    %1238 = vmatpush1.msra.mxu0 0.0
    %1239 = vmatprep.subr.mxu0 0.0
    %1240 = vmatpush1.msra.mxu0 0.0
    %1241 = vmatprep.subr.mxu0 0.0
    %1242 = vmatpush1.msra.mxu0 0.0
    %1243 = vmatprep.subr.mxu0 0.0
    %1244 = vmatpush1.msra.mxu0 0.0
    %1245 = vmatprep.subr.mxu0 0.0
    %1246 = vmatpush1.msra.mxu0 0.0
    %1247 = vmatprep.subr.mxu0 0.0
    %1248 = vmatpush1.msra.mxu0 0.0
    %1249 = vmatprep.subr.mxu0 0.0
    %1250 = vmatpush1.msra.mxu0 0.0
    %1251 = vmatprep.subr.mxu0 0.0
    %1252 = vmatpush1.msra.mxu0 0.0
    %1253 = vmatprep.mubr.f32.mxu0 0.0
    %1254 = vmatmul.mubr.f32.gmra.mrb[0].mxu0 %v1187
    %v1255 = vpop.f32.mrb[0].mxu0
    %v1256 = vadd.f32 0.0, %v1255
    %v1257 = vpop.f32.mrb[0].mxu0
    %v1258 = vadd.f32 0.0, %v1257
    %1259 = vdwg.mxu0
    %v1260 = vrot.slane %v236, 6
    %v1262 = vadd.f32 %v1256, %v1260
    %v1263 = vadd.f32 %v1258, %v232
    %v1264 = vtanh.pop %v1262
    %v1265 = vmul.f32 %v1262, 0.5
    %v1266 = vtanh.pop %v1265
    %v1267 = vadd.f32 %v1266, 1.0
    %v1268 = vmul.f32 %v1267, 0.5
    %v1269 = vsel %vm325, %v1264, %v1268
    %v1270 = vtanh.pop %v1263
    %v1271 = vmul.f32 %v1263, 0.5
    %v1272 = vtanh.pop %v1271
    %v1273 = vadd.f32 %v1272, 1.0
    %v1274 = vmul.f32 %v1273, 0.5
    %v1275 = vsel %vm325, %v1270, %v1274
    %v1276 = vmul.f32 %v1269, %v1153
    %1278 = vrot.lane.b32.xlu0 %v1269, 64
    %v1279 = vpop.permute.xlu0 %1278
    %v1281 = vmul.f32 %v1269, %v1279
    %1283 = vrot.lane.b32.xlu0 %v1281, 32
    %v1284 = vpop.permute.xlu0 %1283
    %v1286 = vadd.f32 %v1276, %v1284
    %v1287 = vtanh.pop %v1286
    %1289 = vrot.lane.b32.xlu0 %v1287, 64
    %v1290 = vpop.permute.xlu0 %1289
    %v1292 = vmul.f32 %v1269, %v1290
    %v1293 = vmul.f32 %v1275, %v1170
    %1295 = vrot.lane.b32.xlu0 %v1275, 64
    %v1296 = vpop.permute.xlu0 %1295
    %v1298 = vmul.f32 %v1275, %v1296
    %1300 = vrot.lane.b32.xlu0 %v1298, 32
    %v1301 = vpop.permute.xlu0 %1300
    %v1303 = vadd.f32 %v1293, %v1301
    %v1304 = vtanh.pop %v1303
    %1306 = vrot.lane.b32.xlu0 %v1304, 64
    %v1307 = vpop.permute.xlu0 %1306
    %v1309 = vmul.f32 %v1275, %v1307
    %1311 = vrot.lane.b32.xlu0 %v1309, 64
    %v1312 = vpop.permute.xlu0 %1311
    %v1314 = vsel %vm375, %v369, %v1312
    %v1315 = vsel %vm375, %v506, %v1183
    %v1316 = vsel %vm375, %v641, %v1048
    %v1317 = vsel %vm375, %v774, %v912
    %v1318 = vsel %vm375, %v908, %v778
    %v1319 = vsel %vm375, %v1044, %v645
    %v1320 = vsel %vm375, %v1179, %v510
    %1322 = vrot.lane.b32.xlu0 %v1292, 32
    %v1323 = vpop.permute.xlu0 %1322
    %v1325 = vsel %vm375, %v1323, %v373
    %v1327 = vrot.slane %v1315, 6
    %v1330 = vrot.slane %v1316, 4
    %v1333 = vrot.slane %v1317, 2
    %v1336 = vrot.slane %v1319, 6
    %v1339 = vrot.slane %v1320, 4
    %v1342 = vrot.slane %v1325, 2
    %vm1344 = vcmask 1041408
    %v1345 = vsel %vm1344, %v1314, %v1327
    %vm1346 = vcmask 1043456
    %v1347 = vsel %vm1346, %v1345, %v1330
    %vm1348 = vcmask 1045504
    %v1349 = vsel %vm1348, %v1347, %v1333
    %v1350 = vsel %vm1344, %v1318, %v1336
    %v1351 = vsel %vm1346, %v1350, %v1339
    %v1352 = vsel %vm1348, %v1351, %v1342
    %v1353 = vld [vmem:[#allocation7] sm:$0xff]
    %v1354 = vld [vmem:[#allocation7 + $0x8] sm:$0xff]
    %v1355 = vld [vmem:[#allocation7 + $0x10] sm:$0xff]
    %v1356 = vld [vmem:[#allocation7 + $0x18] sm:$0xff]
    %v1357 = vld [vmem:[#allocation7 + $0x20] sm:$0xff]
    %v1358 = vld [vmem:[#allocation7 + $0x28] sm:$0xff]
    %v1359 = vld [vmem:[#allocation7 + $0x30] sm:$0xff]
    %v1360 = vld [vmem:[#allocation7 + $0x38] sm:$0xff]
    %v1361 = vld [vmem:[#allocation7 + $0x40] sm:$0xff]
    %v1362 = vld [vmem:[#allocation7 + $0x48] sm:$0xff]
    %v1363 = vld [vmem:[#allocation7 + $0x50] sm:$0xff]
    %v1364 = vld [vmem:[#allocation7 + $0x58] sm:$0xff]
    %v1365 = vld [vmem:[#allocation7 + $0x60] sm:$0xff]
    %v1366 = vld [vmem:[#allocation7 + $0x68] sm:$0xff]
    %v1367 = vld [vmem:[#allocation7 + $0x70] sm:$0xff]
    %v1368 = vld [vmem:[#allocation7 + $0x78] sm:$0xff]
    %v1369 = vld [vmem:[#allocation8] sm:$0xff]
    %v1370 = vld [vmem:[#allocation8 + $0x8] sm:$0xff]
    %v1371 = vld [vmem:[#allocation8 + $0x10] sm:$0xff]
    %v1372 = vld [vmem:[#allocation8 + $0x18] sm:$0xff]
    %v1373 = vld [vmem:[#allocation8 + $0x20] sm:$0xff]
    %v1374 = vld [vmem:[#allocation8 + $0x28] sm:$0xff]
    %v1375 = vld [vmem:[#allocation8 + $0x30] sm:$0xff]
    %v1376 = vld [vmem:[#allocation8 + $0x38] sm:$0xff]
    %v1377 = vld [vmem:[#allocation8 + $0x40] sm:$0xff]
    %v1378 = vld [vmem:[#allocation8 + $0x48] sm:$0xff]
    %v1379 = vld [vmem:[#allocation8 + $0x50] sm:$0xff]
    %v1380 = vld [vmem:[#allocation8 + $0x58] sm:$0xff]
    %v1381 = vld [vmem:[#allocation8 + $0x60] sm:$0xff]
    %v1382 = vld [vmem:[#allocation8 + $0x68] sm:$0xff]
    %v1383 = vld [vmem:[#allocation8 + $0x70] sm:$0xff]
    %v1384 = vld [vmem:[#allocation8 + $0x78] sm:$0xff]
    %v1385 = vld [vmem:[%s6] sm:$0x3]
    %v1387 = vlaneseq
    %v1388 = vshrl.u32 %v1387, 7
    %v1389 = vsub.s32 0, %v1388
    %v1390 = vrot.slane %v1385, %v1389
    %v1391 = vlaneseq
    %v1392 = vshrl.u32 %v1391, 7
    %v1393 = vsub.s32 1, %v1392
    %v1394 = vrot.slane %v1385, %v1393
    %v1398 = vsel %vm156, %v1349, 0
    %v1401 = vsel %vm156, %v1352, 0
    %1403 = vmatprep.subr.mxu0 %v1354
    %1404 = vmatpush1.msra.mxu0 %v1353
    %1405 = vmatprep.subr.mxu0 %v1356
    %1406 = vmatpush1.msra.mxu0 %v1355
    %1407 = vmatprep.subr.mxu0 %v1358
    %1408 = vmatpush1.msra.mxu0 %v1357
    %1409 = vmatprep.subr.mxu0 %v1360
    %1410 = vmatpush1.msra.mxu0 %v1359
    %1411 = vmatprep.subr.mxu0 %v1362
    %1412 = vmatpush1.msra.mxu0 %v1361
    %1413 = vmatprep.subr.mxu0 %v1364
    %1414 = vmatpush1.msra.mxu0 %v1363
    %1415 = vmatprep.subr.mxu0 %v1366
    %1416 = vmatpush1.msra.mxu0 %v1365
    %1417 = vmatprep.subr.mxu0 %v1368
    %1418 = vmatpush1.msra.mxu0 %v1367
    %1419 = vmatprep.subr.mxu0 0.0
    %1420 = vmatpush1.msra.mxu0 0.0
    %1421 = vmatprep.subr.mxu0 0.0
    %1422 = vmatpush1.msra.mxu0 0.0
    %1423 = vmatprep.subr.mxu0 0.0
    %1424 = vmatpush1.msra.mxu0 0.0
    %1425 = vmatprep.subr.mxu0 0.0
    %1426 = vmatpush1.msra.mxu0 0.0
    %1427 = vmatprep.subr.mxu0 0.0
    %1428 = vmatpush1.msra.mxu0 0.0
    %1429 = vmatprep.subr.mxu0 0.0
    %1430 = vmatpush1.msra.mxu0 0.0
    %1431 = vmatprep.subr.mxu0 0.0
    %1432 = vmatpush1.msra.mxu0 0.0
    %1433 = vmatprep.subr.mxu0 0.0
    %1434 = vmatpush1.msra.mxu0 0.0
    %1435 = vmatprep.subr.mxu0 0.0
    %1436 = vmatpush1.msra.mxu0 0.0
    %1437 = vmatprep.subr.mxu0 0.0
    %1438 = vmatpush1.msra.mxu0 0.0
    %1439 = vmatprep.subr.mxu0 0.0
    %1440 = vmatpush1.msra.mxu0 0.0
    %1441 = vmatprep.subr.mxu0 0.0
    %1442 = vmatpush1.msra.mxu0 0.0
    %1443 = vmatprep.subr.mxu0 0.0
    %1444 = vmatpush1.msra.mxu0 0.0
    %1445 = vmatprep.subr.mxu0 0.0
    %1446 = vmatpush1.msra.mxu0 0.0
    %1447 = vmatprep.subr.mxu0 0.0
    %1448 = vmatpush1.msra.mxu0 0.0
    %1449 = vmatprep.subr.mxu0 0.0
    %1450 = vmatpush1.msra.mxu0 0.0
    %1451 = vmatprep.subr.mxu0 0.0
    %1452 = vmatpush1.msra.mxu0 0.0
    %1453 = vmatprep.subr.mxu0 0.0
    %1454 = vmatpush1.msra.mxu0 0.0
    %1455 = vmatprep.subr.mxu0 0.0
    %1456 = vmatpush1.msra.mxu0 0.0
    %1457 = vmatprep.subr.mxu0 0.0
    %1458 = vmatpush1.msra.mxu0 0.0
    %1459 = vmatprep.subr.mxu0 0.0
    %1460 = vmatpush1.msra.mxu0 0.0
    %1461 = vmatprep.subr.mxu0 0.0
    %1462 = vmatpush1.msra.mxu0 0.0
    %1463 = vmatprep.subr.mxu0 0.0
    %1464 = vmatpush1.msra.mxu0 0.0
    %1465 = vmatprep.subr.mxu0 0.0
    %1466 = vmatpush1.msra.mxu0 0.0
    %1467 = vmatprep.mubr.f32.mxu0 0.0
    %1468 = vmatmul.mubr.f32.gmra.mrb[0].mxu0 %v1398
    %v1469 = vpop.f32.mrb[0].mxu0
    %v1470 = vadd.f32 %v1390, %v1469
    %v1471 = vpop.f32.mrb[0].mxu0
    %v1472 = vadd.f32 %v1394, %v1471
    %1473 = vmatprep.mubr.f32.mxu0 0.0
    %1474 = vmatmul.mubr.f32.gmra.mrb[0].mxu0 %v1401
    %v1475 = vpop.f32.mrb[0].mxu0
    %v1476 = vadd.f32 %v1390, %v1475
    %v1477 = vpop.f32.mrb[0].mxu0
    %v1478 = vadd.f32 %v1394, %v1477
    %1479 = vdwg.mxu0
    %1480 = vmatprep.subr.mxu0 %v1370
    %1481 = vmatpush1.msra.mxu0 %v1369
    %1482 = vmatprep.subr.mxu0 %v1372
    %1483 = vmatpush1.msra.mxu0 %v1371
    %1484 = vmatprep.subr.mxu0 %v1374
    %1485 = vmatpush1.msra.mxu0 %v1373
    %1486 = vmatprep.subr.mxu0 %v1376
    %1487 = vmatpush1.msra.mxu0 %v1375
    %1488 = vmatprep.subr.mxu0 %v1378
    %1489 = vmatpush1.msra.mxu0 %v1377
    %1490 = vmatprep.subr.mxu0 %v1380
    %1491 = vmatpush1.msra.mxu0 %v1379
    %1492 = vmatprep.subr.mxu0 %v1382
    %1493 = vmatpush1.msra.mxu0 %v1381
    %1494 = vmatprep.subr.mxu0 %v1384
    %1495 = vmatpush1.msra.mxu0 %v1383
    %1496 = vmatprep.subr.mxu0 0.0
    %1497 = vmatpush1.msra.mxu0 0.0
    %1498 = vmatprep.subr.mxu0 0.0
    %1499 = vmatpush1.msra.mxu0 0.0
    %1500 = vmatprep.subr.mxu0 0.0
    %1501 = vmatpush1.msra.mxu0 0.0
    %1502 = vmatprep.subr.mxu0 0.0
    %1503 = vmatpush1.msra.mxu0 0.0
    %1504 = vmatprep.subr.mxu0 0.0
    %1505 = vmatpush1.msra.mxu0 0.0
    %1506 = vmatprep.subr.mxu0 0.0
    %1507 = vmatpush1.msra.mxu0 0.0
    %1508 = vmatprep.subr.mxu0 0.0
    %1509 = vmatpush1.msra.mxu0 0.0
    %1510 = vmatprep.subr.mxu0 0.0
    %1511 = vmatpush1.msra.mxu0 0.0
    %1512 = vmatprep.subr.mxu0 0.0
    %1513 = vmatpush1.msra.mxu0 0.0
    %1514 = vmatprep.subr.mxu0 0.0
    %1515 = vmatpush1.msra.mxu0 0.0
    %1516 = vmatprep.subr.mxu0 0.0
    %1517 = vmatpush1.msra.mxu0 0.0
    %1518 = vmatprep.subr.mxu0 0.0
    %1519 = vmatpush1.msra.mxu0 0.0
    %1520 = vmatprep.subr.mxu0 0.0
    %1521 = vmatpush1.msra.mxu0 0.0
    %1522 = vmatprep.subr.mxu0 0.0
    %1523 = vmatpush1.msra.mxu0 0.0
    %1524 = vmatprep.subr.mxu0 0.0
    %1525 = vmatpush1.msra.mxu0 0.0
    %1526 = vmatprep.subr.mxu0 0.0
    %1527 = vmatpush1.msra.mxu0 0.0
    %1528 = vmatprep.subr.mxu0 0.0
    %1529 = vmatpush1.msra.mxu0 0.0
    %1530 = vmatprep.subr.mxu0 0.0
    %1531 = vmatpush1.msra.mxu0 0.0
    %1532 = vmatprep.subr.mxu0 0.0
    %1533 = vmatpush1.msra.mxu0 0.0
    %1534 = vmatprep.subr.mxu0 0.0
    %1535 = vmatpush1.msra.mxu0 0.0
    %1536 = vmatprep.subr.mxu0 0.0
    %1537 = vmatpush1.msra.mxu0 0.0
    %1538 = vmatprep.subr.mxu0 0.0
    %1539 = vmatpush1.msra.mxu0 0.0
    %1540 = vmatprep.subr.mxu0 0.0
    %1541 = vmatpush1.msra.mxu0 0.0
    %1542 = vmatprep.subr.mxu0 0.0
    %1543 = vmatpush1.msra.mxu0 0.0
    %1544 = vmatprep.mubr.f32.mxu0 0.0
    %1545 = vmatmul.mubr.f32.gmra.mrb[0].mxu0 %v241
    %v1546 = vpop.f32.mrb[0].mxu0
    %v1547 = vadd.f32 0.0, %v1546
    %v1548 = vpop.f32.mrb[0].mxu0
    %v1549 = vadd.f32 0.0, %v1548
    %1550 = vdwg.mxu0
    %v1551 = vadd.f32 %v1547, %v1470
    %v1553 = vrot.slane %v1478, 6
    %v1555 = vadd.f32 %v1549, %v1553
    %v1556 = vtanh.pop %v1551
    %v1557 = vmul.f32 %v1551, 0.5
    %v1558 = vtanh.pop %v1557
    %v1559 = vadd.f32 %v1558, 1.0
    %v1560 = vmul.f32 %v1559, 0.5
    %v1561 = vsel %vm325, %v1556, %v1560
    %v1562 = vtanh.pop %v1555
    %v1563 = vmul.f32 %v1555, 0.5
    %v1564 = vtanh.pop %v1563
    %v1565 = vadd.f32 %v1564, 1.0
    %v1566 = vmul.f32 %v1565, 0.5
    %v1567 = vsel %vm325, %v1562, %v1566
    %v1568 = vmul.f32 %v1561, 0.0
    %1570 = vrot.lane.b32.xlu0 %v1561, 64
    %v1571 = vpop.permute.xlu0 %1570
    %v1573 = vmul.f32 %v1561, %v1571
    %1575 = vrot.lane.b32.xlu0 %v1573, 32
    %v1576 = vpop.permute.xlu0 %1575
    %v1578 = vadd.f32 %v1568, %v1576
    %v1579 = vtanh.pop %v1578
    %1581 = vrot.lane.b32.xlu0 %v1579, 64
    %v1582 = vpop.permute.xlu0 %1581
    %v1584 = vmul.f32 %v1561, %v1582
    %v1585 = vmul.f32 %v1567, 0.0
    %1587 = vrot.lane.b32.xlu0 %v1567, 64
    %v1588 = vpop.permute.xlu0 %1587
    %v1590 = vmul.f32 %v1567, %v1588
    %1592 = vrot.lane.b32.xlu0 %v1590, 32
    %v1593 = vpop.permute.xlu0 %1592
    %v1595 = vadd.f32 %v1585, %v1593
    %v1596 = vtanh.pop %v1595
    %1598 = vrot.lane.b32.xlu0 %v1596, 64
    %v1599 = vpop.permute.xlu0 %1598
    %v1601 = vmul.f32 %v1567, %v1599
    %1603 = vrot.lane.b32.xlu0 %v1584, 32
    %v1604 = vpop.permute.xlu0 %1603
    %1607 = vrot.lane.b32.xlu0 %v1601, 64
    %v1608 = vpop.permute.xlu0 %1607
    %v1610 = vsel %vm375, %v1604, %v1608
    %v1612 = vsel %vm156, %v1610, 0
    %1614 = vmatprep.subr.mxu0 %v1370
    %1615 = vmatpush1.msra.mxu0 %v1369
    %1616 = vmatprep.subr.mxu0 %v1372
    %1617 = vmatpush1.msra.mxu0 %v1371
    %1618 = vmatprep.subr.mxu0 %v1374
    %1619 = vmatpush1.msra.mxu0 %v1373
    %1620 = vmatprep.subr.mxu0 %v1376
    %1621 = vmatpush1.msra.mxu0 %v1375
    %1622 = vmatprep.subr.mxu0 %v1378
    %1623 = vmatpush1.msra.mxu0 %v1377
    %1624 = vmatprep.subr.mxu0 %v1380
    %1625 = vmatpush1.msra.mxu0 %v1379
    %1626 = vmatprep.subr.mxu0 %v1382
    %1627 = vmatpush1.msra.mxu0 %v1381
    %1628 = vmatprep.subr.mxu0 %v1384
    %1629 = vmatpush1.msra.mxu0 %v1383
    %1630 = vmatprep.subr.mxu0 0.0
    %1631 = vmatpush1.msra.mxu0 0.0
    %1632 = vmatprep.subr.mxu0 0.0
    %1633 = vmatpush1.msra.mxu0 0.0
    %1634 = vmatprep.subr.mxu0 0.0
    %1635 = vmatpush1.msra.mxu0 0.0
    %1636 = vmatprep.subr.mxu0 0.0
    %1637 = vmatpush1.msra.mxu0 0.0
    %1638 = vmatprep.subr.mxu0 0.0
    %1639 = vmatpush1.msra.mxu0 0.0
    %1640 = vmatprep.subr.mxu0 0.0
    %1641 = vmatpush1.msra.mxu0 0.0
    %1642 = vmatprep.subr.mxu0 0.0
    %1643 = vmatpush1.msra.mxu0 0.0
    %1644 = vmatprep.subr.mxu0 0.0
    %1645 = vmatpush1.msra.mxu0 0.0
    %1646 = vmatprep.subr.mxu0 0.0
    %1647 = vmatpush1.msra.mxu0 0.0
    %1648 = vmatprep.subr.mxu0 0.0
    %1649 = vmatpush1.msra.mxu0 0.0
    %1650 = vmatprep.subr.mxu0 0.0
    %1651 = vmatpush1.msra.mxu0 0.0
    %1652 = vmatprep.subr.mxu0 0.0
    %1653 = vmatpush1.msra.mxu0 0.0
    %1654 = vmatprep.subr.mxu0 0.0
    %1655 = vmatpush1.msra.mxu0 0.0
    %1656 = vmatprep.subr.mxu0 0.0
    %1657 = vmatpush1.msra.mxu0 0.0
    %1658 = vmatprep.subr.mxu0 0.0
    %1659 = vmatpush1.msra.mxu0 0.0
    %1660 = vmatprep.subr.mxu0 0.0
    %1661 = vmatpush1.msra.mxu0 0.0
    %1662 = vmatprep.subr.mxu0 0.0
    %1663 = vmatpush1.msra.mxu0 0.0
    %1664 = vmatprep.subr.mxu0 0.0
    %1665 = vmatpush1.msra.mxu0 0.0
    %1666 = vmatprep.subr.mxu0 0.0
    %1667 = vmatpush1.msra.mxu0 0.0
    %1668 = vmatprep.subr.mxu0 0.0
    %1669 = vmatpush1.msra.mxu0 0.0
    %1670 = vmatprep.subr.mxu0 0.0
    %1671 = vmatpush1.msra.mxu0 0.0
    %1672 = vmatprep.subr.mxu0 0.0
    %1673 = vmatpush1.msra.mxu0 0.0
    %1674 = vmatprep.subr.mxu0 0.0
    %1675 = vmatpush1.msra.mxu0 0.0
    %1676 = vmatprep.subr.mxu0 0.0
    %1677 = vmatpush1.msra.mxu0 0.0
    %1678 = vmatprep.mubr.f32.mxu0 0.0
    %1679 = vmatmul.mubr.f32.gmra.mrb[0].mxu0 %v1612
    %v1680 = vpop.f32.mrb[0].mxu0
    %v1681 = vadd.f32 0.0, %v1680
    %v1682 = vpop.f32.mrb[0].mxu0
    %v1683 = vadd.f32 0.0, %v1682
    %1684 = vdwg.mxu0
    %v1686 = vrot.slane %v1470, 2
    %v1688 = vadd.f32 %v1681, %v1686
    %v1689 = vrot.slane %v1478, 4
    %v1691 = vadd.f32 %v1683, %v1689
    %v1692 = vtanh.pop %v1688
    %v1693 = vmul.f32 %v1688, 0.5
    %v1694 = vtanh.pop %v1693
    %v1695 = vadd.f32 %v1694, 1.0
    %v1696 = vmul.f32 %v1695, 0.5
    %v1697 = vsel %vm325, %v1692, %v1696
    %v1698 = vtanh.pop %v1691
    %v1699 = vmul.f32 %v1691, 0.5
    %v1700 = vtanh.pop %v1699
    %v1701 = vadd.f32 %v1700, 1.0
    %v1702 = vmul.f32 %v1701, 0.5
    %v1703 = vsel %vm325, %v1698, %v1702
    %v1704 = vmul.f32 %v1697, %v1578
    %1706 = vrot.lane.b32.xlu0 %v1697, 64
    %v1707 = vpop.permute.xlu0 %1706
    %v1709 = vmul.f32 %v1697, %v1707
    %1711 = vrot.lane.b32.xlu0 %v1709, 32
    %v1712 = vpop.permute.xlu0 %1711
    %v1714 = vadd.f32 %v1704, %v1712
    %v1715 = vtanh.pop %v1714
    %1717 = vrot.lane.b32.xlu0 %v1715, 64
    %v1718 = vpop.permute.xlu0 %1717
    %v1720 = vmul.f32 %v1697, %v1718
    %v1721 = vmul.f32 %v1703, %v1595
    %1723 = vrot.lane.b32.xlu0 %v1703, 64
    %v1724 = vpop.permute.xlu0 %1723
    %v1726 = vmul.f32 %v1703, %v1724
    %1728 = vrot.lane.b32.xlu0 %v1726, 32
    %v1729 = vpop.permute.xlu0 %1728
    %v1731 = vadd.f32 %v1721, %v1729
    %v1732 = vtanh.pop %v1731
    %1734 = vrot.lane.b32.xlu0 %v1732, 64
    %v1735 = vpop.permute.xlu0 %1734
    %v1737 = vmul.f32 %v1703, %v1735
    %1739 = vrot.lane.b32.xlu0 %v1720, 32
    %v1740 = vpop.permute.xlu0 %1739
    %1743 = vrot.lane.b32.xlu0 %v1737, 64
    %v1744 = vpop.permute.xlu0 %1743
    %v1746 = vsel %vm375, %v1740, %v1744
    %v1748 = vsel %vm156, %v1746, 0
    %1750 = vmatprep.subr.mxu0 %v1370
    %1751 = vmatpush1.msra.mxu0 %v1369
    %1752 = vmatprep.subr.mxu0 %v1372
    %1753 = vmatpush1.msra.mxu0 %v1371
    %1754 = vmatprep.subr.mxu0 %v1374
    %1755 = vmatpush1.msra.mxu0 %v1373
    %1756 = vmatprep.subr.mxu0 %v1376
    %1757 = vmatpush1.msra.mxu0 %v1375
    %1758 = vmatprep.subr.mxu0 %v1378
    %1759 = vmatpush1.msra.mxu0 %v1377
    %1760 = vmatprep.subr.mxu0 %v1380
    %1761 = vmatpush1.msra.mxu0 %v1379
    %1762 = vmatprep.subr.mxu0 %v1382
    %1763 = vmatpush1.msra.mxu0 %v1381
    %1764 = vmatprep.subr.mxu0 %v1384
    %1765 = vmatpush1.msra.mxu0 %v1383
    %1766 = vmatprep.subr.mxu0 0.0
    %1767 = vmatpush1.msra.mxu0 0.0
    %1768 = vmatprep.subr.mxu0 0.0
    %1769 = vmatpush1.msra.mxu0 0.0
    %1770 = vmatprep.subr.mxu0 0.0
    %1771 = vmatpush1.msra.mxu0 0.0
    %1772 = vmatprep.subr.mxu0 0.0
    %1773 = vmatpush1.msra.mxu0 0.0
    %1774 = vmatprep.subr.mxu0 0.0
    %1775 = vmatpush1.msra.mxu0 0.0
    %1776 = vmatprep.subr.mxu0 0.0
    %1777 = vmatpush1.msra.mxu0 0.0
    %1778 = vmatprep.subr.mxu0 0.0
    %1779 = vmatpush1.msra.mxu0 0.0
    %1780 = vmatprep.subr.mxu0 0.0
    %1781 = vmatpush1.msra.mxu0 0.0
    %1782 = vmatprep.subr.mxu0 0.0
    %1783 = vmatpush1.msra.mxu0 0.0
    %1784 = vmatprep.subr.mxu0 0.0
    %1785 = vmatpush1.msra.mxu0 0.0
    %1786 = vmatprep.subr.mxu0 0.0
    %1787 = vmatpush1.msra.mxu0 0.0
    %1788 = vmatprep.subr.mxu0 0.0
    %1789 = vmatpush1.msra.mxu0 0.0
    %1790 = vmatprep.subr.mxu0 0.0
    %1791 = vmatpush1.msra.mxu0 0.0
    %1792 = vmatprep.subr.mxu0 0.0
    %1793 = vmatpush1.msra.mxu0 0.0
    %1794 = vmatprep.subr.mxu0 0.0
    %1795 = vmatpush1.msra.mxu0 0.0
    %1796 = vmatprep.subr.mxu0 0.0
    %1797 = vmatpush1.msra.mxu0 0.0
    %1798 = vmatprep.subr.mxu0 0.0
    %1799 = vmatpush1.msra.mxu0 0.0
    %1800 = vmatprep.subr.mxu0 0.0
    %1801 = vmatpush1.msra.mxu0 0.0
    %1802 = vmatprep.subr.mxu0 0.0
    %1803 = vmatpush1.msra.mxu0 0.0
    %1804 = vmatprep.subr.mxu0 0.0
    %1805 = vmatpush1.msra.mxu0 0.0
    %1806 = vmatprep.subr.mxu0 0.0
    %1807 = vmatpush1.msra.mxu0 0.0
    %1808 = vmatprep.subr.mxu0 0.0
    %1809 = vmatpush1.msra.mxu0 0.0
    %1810 = vmatprep.subr.mxu0 0.0
    %1811 = vmatpush1.msra.mxu0 0.0
    %1812 = vmatprep.subr.mxu0 0.0
    %1813 = vmatpush1.msra.mxu0 0.0
    %1814 = vmatprep.mubr.f32.mxu0 0.0
    %1815 = vmatmul.mubr.f32.gmra.mrb[0].mxu0 %v1748
    %v1816 = vpop.f32.mrb[0].mxu0
    %v1817 = vadd.f32 0.0, %v1816
    %v1818 = vpop.f32.mrb[0].mxu0
    %v1819 = vadd.f32 0.0, %v1818
    %1820 = vdwg.mxu0
    %v1821 = vrot.slane %v1470, 4
    %v1823 = vadd.f32 %v1817, %v1821
    %v1824 = vrot.slane %v1478, 2
    %v1826 = vadd.f32 %v1819, %v1824
    %v1827 = vtanh.pop %v1823
    %v1828 = vmul.f32 %v1823, 0.5
    %v1829 = vtanh.pop %v1828
    %v1830 = vadd.f32 %v1829, 1.0
    %v1831 = vmul.f32 %v1830, 0.5
    %v1832 = vsel %vm325, %v1827, %v1831
    %v1833 = vtanh.pop %v1826
    %v1834 = vmul.f32 %v1826, 0.5
    %v1835 = vtanh.pop %v1834
    %v1836 = vadd.f32 %v1835, 1.0
    %v1837 = vmul.f32 %v1836, 0.5
    %v1838 = vsel %vm325, %v1833, %v1837
    %v1839 = vmul.f32 %v1832, %v1714
    %1841 = vrot.lane.b32.xlu0 %v1832, 64
    %v1842 = vpop.permute.xlu0 %1841
    %v1844 = vmul.f32 %v1832, %v1842
    %1846 = vrot.lane.b32.xlu0 %v1844, 32
    %v1847 = vpop.permute.xlu0 %1846
    %v1849 = vadd.f32 %v1839, %v1847
    %v1850 = vtanh.pop %v1849
    %1852 = vrot.lane.b32.xlu0 %v1850, 64
    %v1853 = vpop.permute.xlu0 %1852
    %v1855 = vmul.f32 %v1832, %v1853
    %v1856 = vmul.f32 %v1838, %v1731
    %1858 = vrot.lane.b32.xlu0 %v1838, 64
    %v1859 = vpop.permute.xlu0 %1858
    %v1861 = vmul.f32 %v1838, %v1859
    %1863 = vrot.lane.b32.xlu0 %v1861, 32
    %v1864 = vpop.permute.xlu0 %1863
    %v1866 = vadd.f32 %v1856, %v1864
    %v1867 = vtanh.pop %v1866
    %1869 = vrot.lane.b32.xlu0 %v1867, 64
    %v1870 = vpop.permute.xlu0 %1869
    %v1872 = vmul.f32 %v1838, %v1870
    %1874 = vrot.lane.b32.xlu0 %v1855, 32
    %v1875 = vpop.permute.xlu0 %1874
    %1878 = vrot.lane.b32.xlu0 %v1872, 64
    %v1879 = vpop.permute.xlu0 %1878
    %v1881 = vsel %vm375, %v1875, %v1879
    %v1883 = vsel %vm156, %v1881, 0
    %1885 = vmatprep.subr.mxu0 %v1370
    %1886 = vmatpush1.msra.mxu0 %v1369
    %1887 = vmatprep.subr.mxu0 %v1372
    %1888 = vmatpush1.msra.mxu0 %v1371
    %1889 = vmatprep.subr.mxu0 %v1374
    %1890 = vmatpush1.msra.mxu0 %v1373
    %1891 = vmatprep.subr.mxu0 %v1376
    %1892 = vmatpush1.msra.mxu0 %v1375
    %1893 = vmatprep.subr.mxu0 %v1378
    %1894 = vmatpush1.msra.mxu0 %v1377
    %1895 = vmatprep.subr.mxu0 %v1380
    %1896 = vmatpush1.msra.mxu0 %v1379
    %1897 = vmatprep.subr.mxu0 %v1382
    %1898 = vmatpush1.msra.mxu0 %v1381
    %1899 = vmatprep.subr.mxu0 %v1384
    %1900 = vmatpush1.msra.mxu0 %v1383
    %1901 = vmatprep.subr.mxu0 0.0
    %1902 = vmatpush1.msra.mxu0 0.0
    %1903 = vmatprep.subr.mxu0 0.0
    %1904 = vmatpush1.msra.mxu0 0.0
    %1905 = vmatprep.subr.mxu0 0.0
    %1906 = vmatpush1.msra.mxu0 0.0
    %1907 = vmatprep.subr.mxu0 0.0
    %1908 = vmatpush1.msra.mxu0 0.0
    %1909 = vmatprep.subr.mxu0 0.0
    %1910 = vmatpush1.msra.mxu0 0.0
    %1911 = vmatprep.subr.mxu0 0.0
    %1912 = vmatpush1.msra.mxu0 0.0
    %1913 = vmatprep.subr.mxu0 0.0
    %1914 = vmatpush1.msra.mxu0 0.0
    %1915 = vmatprep.subr.mxu0 0.0
    %1916 = vmatpush1.msra.mxu0 0.0
    %1917 = vmatprep.subr.mxu0 0.0
    %1918 = vmatpush1.msra.mxu0 0.0
    %1919 = vmatprep.subr.mxu0 0.0
    %1920 = vmatpush1.msra.mxu0 0.0
    %1921 = vmatprep.subr.mxu0 0.0
    %1922 = vmatpush1.msra.mxu0 0.0
    %1923 = vmatprep.subr.mxu0 0.0
    %1924 = vmatpush1.msra.mxu0 0.0
    %1925 = vmatprep.subr.mxu0 0.0
    %1926 = vmatpush1.msra.mxu0 0.0
    %1927 = vmatprep.subr.mxu0 0.0
    %1928 = vmatpush1.msra.mxu0 0.0
    %1929 = vmatprep.subr.mxu0 0.0
    %1930 = vmatpush1.msra.mxu0 0.0
    %1931 = vmatprep.subr.mxu0 0.0
    %1932 = vmatpush1.msra.mxu0 0.0
    %1933 = vmatprep.subr.mxu0 0.0
    %1934 = vmatpush1.msra.mxu0 0.0
    %1935 = vmatprep.subr.mxu0 0.0
    %1936 = vmatpush1.msra.mxu0 0.0
    %1937 = vmatprep.subr.mxu0 0.0
    %1938 = vmatpush1.msra.mxu0 0.0
    %1939 = vmatprep.subr.mxu0 0.0
    %1940 = vmatpush1.msra.mxu0 0.0
    %1941 = vmatprep.subr.mxu0 0.0
    %1942 = vmatpush1.msra.mxu0 0.0
    %1943 = vmatprep.subr.mxu0 0.0
    %1944 = vmatpush1.msra.mxu0 0.0
    %1945 = vmatprep.subr.mxu0 0.0
    %1946 = vmatpush1.msra.mxu0 0.0
    %1947 = vmatprep.subr.mxu0 0.0
    %1948 = vmatpush1.msra.mxu0 0.0
    %1949 = vmatprep.mubr.f32.mxu0 0.0
    %1950 = vmatmul.mubr.f32.gmra.mrb[0].mxu0 %v1883
    %v1951 = vpop.f32.mrb[0].mxu0
    %v1952 = vadd.f32 0.0, %v1951
    %v1953 = vpop.f32.mrb[0].mxu0
    %v1954 = vadd.f32 0.0, %v1953
    %1955 = vdwg.mxu0
    %v1956 = vrot.slane %v1470, 6
    %v1958 = vadd.f32 %v1952, %v1956
    %v1959 = vadd.f32 %v1954, %v1478
    %v1960 = vtanh.pop %v1958
    %v1961 = vmul.f32 %v1958, 0.5
    %v1962 = vtanh.pop %v1961
    %v1963 = vadd.f32 %v1962, 1.0
    %v1964 = vmul.f32 %v1963, 0.5
    %v1965 = vsel %vm325, %v1960, %v1964
    %v1966 = vtanh.pop %v1959
    %v1967 = vmul.f32 %v1959, 0.5
    %v1968 = vtanh.pop %v1967
    %v1969 = vadd.f32 %v1968, 1.0
    %v1970 = vmul.f32 %v1969, 0.5
    %v1971 = vsel %vm325, %v1966, %v1970
    %v1972 = vmul.f32 %v1965, %v1849
    %1974 = vrot.lane.b32.xlu0 %v1965, 64
    %v1975 = vpop.permute.xlu0 %1974
    %v1977 = vmul.f32 %v1965, %v1975
    %1979 = vrot.lane.b32.xlu0 %v1977, 32
    %v1980 = vpop.permute.xlu0 %1979
    %v1982 = vadd.f32 %v1972, %v1980
    %v1983 = vtanh.pop %v1982
    %1985 = vrot.lane.b32.xlu0 %v1983, 64
    %v1986 = vpop.permute.xlu0 %1985
    %v1988 = vmul.f32 %v1965, %v1986
    %v1989 = vmul.f32 %v1971, %v1866
    %1991 = vrot.lane.b32.xlu0 %v1971, 64
    %v1992 = vpop.permute.xlu0 %1991
    %v1994 = vmul.f32 %v1971, %v1992
    %1996 = vrot.lane.b32.xlu0 %v1994, 32
    %v1997 = vpop.permute.xlu0 %1996
    %v1999 = vadd.f32 %v1989, %v1997
    %v2000 = vtanh.pop %v1999
    %2002 = vrot.lane.b32.xlu0 %v2000, 64
    %v2003 = vpop.permute.xlu0 %2002
    %v2005 = vmul.f32 %v1971, %v2003
    %2007 = vrot.lane.b32.xlu0 %v1988, 32
    %v2008 = vpop.permute.xlu0 %2007
    %2011 = vrot.lane.b32.xlu0 %v2005, 64
    %v2012 = vpop.permute.xlu0 %2011
    %v2014 = vsel %vm375, %v2008, %v2012
    %v2016 = vsel %vm156, %v2014, 0
    %2018 = vmatprep.subr.mxu0 %v1370
    %2019 = vmatpush1.msra.mxu0 %v1369
    %2020 = vmatprep.subr.mxu0 %v1372
    %2021 = vmatpush1.msra.mxu0 %v1371
    %2022 = vmatprep.subr.mxu0 %v1374
    %2023 = vmatpush1.msra.mxu0 %v1373
    %2024 = vmatprep.subr.mxu0 %v1376
    %2025 = vmatpush1.msra.mxu0 %v1375
    %2026 = vmatprep.subr.mxu0 %v1378
    %2027 = vmatpush1.msra.mxu0 %v1377
    %2028 = vmatprep.subr.mxu0 %v1380
    %2029 = vmatpush1.msra.mxu0 %v1379
    %2030 = vmatprep.subr.mxu0 %v1382
    %2031 = vmatpush1.msra.mxu0 %v1381
    %2032 = vmatprep.subr.mxu0 %v1384
    %2033 = vmatpush1.msra.mxu0 %v1383
    %2034 = vmatprep.subr.mxu0 0.0
    %2035 = vmatpush1.msra.mxu0 0.0
    %2036 = vmatprep.subr.mxu0 0.0
    %2037 = vmatpush1.msra.mxu0 0.0
    %2038 = vmatprep.subr.mxu0 0.0
    %2039 = vmatpush1.msra.mxu0 0.0
    %2040 = vmatprep.subr.mxu0 0.0
    %2041 = vmatpush1.msra.mxu0 0.0
    %2042 = vmatprep.subr.mxu0 0.0
    %2043 = vmatpush1.msra.mxu0 0.0
    %2044 = vmatprep.subr.mxu0 0.0
    %2045 = vmatpush1.msra.mxu0 0.0
    %2046 = vmatprep.subr.mxu0 0.0
    %2047 = vmatpush1.msra.mxu0 0.0
    %2048 = vmatprep.subr.mxu0 0.0
    %2049 = vmatpush1.msra.mxu0 0.0
    %2050 = vmatprep.subr.mxu0 0.0
    %2051 = vmatpush1.msra.mxu0 0.0
    %2052 = vmatprep.subr.mxu0 0.0
    %2053 = vmatpush1.msra.mxu0 0.0
    %2054 = vmatprep.subr.mxu0 0.0
    %2055 = vmatpush1.msra.mxu0 0.0
    %2056 = vmatprep.subr.mxu0 0.0
    %2057 = vmatpush1.msra.mxu0 0.0
    %2058 = vmatprep.subr.mxu0 0.0
    %2059 = vmatpush1.msra.mxu0 0.0
    %2060 = vmatprep.subr.mxu0 0.0
    %2061 = vmatpush1.msra.mxu0 0.0
    %2062 = vmatprep.subr.mxu0 0.0
    %2063 = vmatpush1.msra.mxu0 0.0
    %2064 = vmatprep.subr.mxu0 0.0
    %2065 = vmatpush1.msra.mxu0 0.0
    %2066 = vmatprep.subr.mxu0 0.0
    %2067 = vmatpush1.msra.mxu0 0.0
    %2068 = vmatprep.subr.mxu0 0.0
    %2069 = vmatpush1.msra.mxu0 0.0
    %2070 = vmatprep.subr.mxu0 0.0
    %2071 = vmatpush1.msra.mxu0 0.0
    %2072 = vmatprep.subr.mxu0 0.0
    %2073 = vmatpush1.msra.mxu0 0.0
    %2074 = vmatprep.subr.mxu0 0.0
    %2075 = vmatpush1.msra.mxu0 0.0
    %2076 = vmatprep.subr.mxu0 0.0
    %2077 = vmatpush1.msra.mxu0 0.0
    %2078 = vmatprep.subr.mxu0 0.0
    %2079 = vmatpush1.msra.mxu0 0.0
    %2080 = vmatprep.subr.mxu0 0.0
    %2081 = vmatpush1.msra.mxu0 0.0
    %2082 = vmatprep.mubr.f32.mxu0 0.0
    %2083 = vmatmul.mubr.f32.gmra.mrb[0].mxu0 %v2016
    %v2084 = vpop.f32.mrb[0].mxu0
    %v2085 = vadd.f32 0.0, %v2084
    %v2086 = vpop.f32.mrb[0].mxu0
    %v2087 = vadd.f32 0.0, %v2086
    %2088 = vdwg.mxu0
    %v2089 = vadd.f32 %v2085, %v1476
    %v2091 = vrot.slane %v1472, 6
    %v2093 = vadd.f32 %v2087, %v2091
    %v2094 = vtanh.pop %v2089
    %v2095 = vmul.f32 %v2089, 0.5
    %v2096 = vtanh.pop %v2095
    %v2097 = vadd.f32 %v2096, 1.0
    %v2098 = vmul.f32 %v2097, 0.5
    %v2099 = vsel %vm325, %v2094, %v2098
    %v2100 = vtanh.pop %v2093
    %v2101 = vmul.f32 %v2093, 0.5
    %v2102 = vtanh.pop %v2101
    %v2103 = vadd.f32 %v2102, 1.0
    %v2104 = vmul.f32 %v2103, 0.5
    %v2105 = vsel %vm325, %v2100, %v2104
    %v2106 = vmul.f32 %v2099, %v1982
    %2108 = vrot.lane.b32.xlu0 %v2099, 64
    %v2109 = vpop.permute.xlu0 %2108
    %v2111 = vmul.f32 %v2099, %v2109
    %2113 = vrot.lane.b32.xlu0 %v2111, 32
    %v2114 = vpop.permute.xlu0 %2113
    %v2116 = vadd.f32 %v2106, %v2114
    %v2117 = vtanh.pop %v2116
    %2119 = vrot.lane.b32.xlu0 %v2117, 64
    %v2120 = vpop.permute.xlu0 %2119
    %v2122 = vmul.f32 %v2099, %v2120
    %v2123 = vmul.f32 %v2105, %v1999
    %2125 = vrot.lane.b32.xlu0 %v2105, 64
    %v2126 = vpop.permute.xlu0 %2125
    %v2128 = vmul.f32 %v2105, %v2126
    %2130 = vrot.lane.b32.xlu0 %v2128, 32
    %v2131 = vpop.permute.xlu0 %2130
    %v2133 = vadd.f32 %v2123, %v2131
    %v2134 = vtanh.pop %v2133
    %2136 = vrot.lane.b32.xlu0 %v2134, 64
    %v2137 = vpop.permute.xlu0 %2136
    %v2139 = vmul.f32 %v2105, %v2137
    %2141 = vrot.lane.b32.xlu0 %v2122, 32
    %v2142 = vpop.permute.xlu0 %2141
    %2145 = vrot.lane.b32.xlu0 %v2139, 64
    %v2146 = vpop.permute.xlu0 %2145
    %v2148 = vsel %vm375, %v2142, %v2146
    %v2150 = vsel %vm156, %v2148, 0
    %2152 = vmatprep.subr.mxu0 %v1370
    %2153 = vmatpush1.msra.mxu0 %v1369
    %2154 = vmatprep.subr.mxu0 %v1372
    %2155 = vmatpush1.msra.mxu0 %v1371
    %2156 = vmatprep.subr.mxu0 %v1374
    %2157 = vmatpush1.msra.mxu0 %v1373
    %2158 = vmatprep.subr.mxu0 %v1376
    %2159 = vmatpush1.msra.mxu0 %v1375
    %2160 = vmatprep.subr.mxu0 %v1378
    %2161 = vmatpush1.msra.mxu0 %v1377
    %2162 = vmatprep.subr.mxu0 %v1380
    %2163 = vmatpush1.msra.mxu0 %v1379
    %2164 = vmatprep.subr.mxu0 %v1382
    %2165 = vmatpush1.msra.mxu0 %v1381
    %2166 = vmatprep.subr.mxu0 %v1384
    %2167 = vmatpush1.msra.mxu0 %v1383
    %2168 = vmatprep.subr.mxu0 0.0
    %2169 = vmatpush1.msra.mxu0 0.0
    %2170 = vmatprep.subr.mxu0 0.0
    %2171 = vmatpush1.msra.mxu0 0.0
    %2172 = vmatprep.subr.mxu0 0.0
    %2173 = vmatpush1.msra.mxu0 0.0
    %2174 = vmatprep.subr.mxu0 0.0
    %2175 = vmatpush1.msra.mxu0 0.0
    %2176 = vmatprep.subr.mxu0 0.0
    %2177 = vmatpush1.msra.mxu0 0.0
    %2178 = vmatprep.subr.mxu0 0.0
    %2179 = vmatpush1.msra.mxu0 0.0
    %2180 = vmatprep.subr.mxu0 0.0
    %2181 = vmatpush1.msra.mxu0 0.0
    %2182 = vmatprep.subr.mxu0 0.0
    %2183 = vmatpush1.msra.mxu0 0.0
    %2184 = vmatprep.subr.mxu0 0.0
    %2185 = vmatpush1.msra.mxu0 0.0
    %2186 = vmatprep.subr.mxu0 0.0
    %2187 = vmatpush1.msra.mxu0 0.0
    %2188 = vmatprep.subr.mxu0 0.0
    %2189 = vmatpush1.msra.mxu0 0.0
    %2190 = vmatprep.subr.mxu0 0.0
    %2191 = vmatpush1.msra.mxu0 0.0
    %2192 = vmatprep.subr.mxu0 0.0
    %2193 = vmatpush1.msra.mxu0 0.0
    %2194 = vmatprep.subr.mxu0 0.0
    %2195 = vmatpush1.msra.mxu0 0.0
    %2196 = vmatprep.subr.mxu0 0.0
    %2197 = vmatpush1.msra.mxu0 0.0
    %2198 = vmatprep.subr.mxu0 0.0
    %2199 = vmatpush1.msra.mxu0 0.0
    %2200 = vmatprep.subr.mxu0 0.0
    %2201 = vmatpush1.msra.mxu0 0.0
    %2202 = vmatprep.subr.mxu0 0.0
    %2203 = vmatpush1.msra.mxu0 0.0
    %2204 = vmatprep.subr.mxu0 0.0
    %2205 = vmatpush1.msra.mxu0 0.0
    %2206 = vmatprep.subr.mxu0 0.0
    %2207 = vmatpush1.msra.mxu0 0.0
    %2208 = vmatprep.subr.mxu0 0.0
    %2209 = vmatpush1.msra.mxu0 0.0
    %2210 = vmatprep.subr.mxu0 0.0
    %2211 = vmatpush1.msra.mxu0 0.0
    %2212 = vmatprep.subr.mxu0 0.0
    %2213 = vmatpush1.msra.mxu0 0.0
    %2214 = vmatprep.subr.mxu0 0.0
    %2215 = vmatpush1.msra.mxu0 0.0
    %2216 = vmatprep.mubr.f32.mxu0 0.0
    %2217 = vmatmul.mubr.f32.gmra.mrb[0].mxu0 %v2150
    %v2218 = vpop.f32.mrb[0].mxu0
    %v2219 = vadd.f32 0.0, %v2218
    %v2220 = vpop.f32.mrb[0].mxu0
    %v2221 = vadd.f32 0.0, %v2220
    %2222 = vdwg.mxu0
    %v2224 = vrot.slane %v1476, 2
    %v2226 = vadd.f32 %v2219, %v2224
    %v2227 = vrot.slane %v1472, 4
    %v2229 = vadd.f32 %v2221, %v2227
    %v2230 = vtanh.pop %v2226
    %v2231 = vmul.f32 %v2226, 0.5
    %v2232 = vtanh.pop %v2231
    %v2233 = vadd.f32 %v2232, 1.0
    %v2234 = vmul.f32 %v2233, 0.5
    %v2235 = vsel %vm325, %v2230, %v2234
    %v2236 = vtanh.pop %v2229
    %v2237 = vmul.f32 %v2229, 0.5
    %v2238 = vtanh.pop %v2237
    %v2239 = vadd.f32 %v2238, 1.0
    %v2240 = vmul.f32 %v2239, 0.5
    %v2241 = vsel %vm325, %v2236, %v2240
    %v2242 = vmul.f32 %v2235, %v2116
    %2244 = vrot.lane.b32.xlu0 %v2235, 64
    %v2245 = vpop.permute.xlu0 %2244
    %v2247 = vmul.f32 %v2235, %v2245
    %2249 = vrot.lane.b32.xlu0 %v2247, 32
    %v2250 = vpop.permute.xlu0 %2249
    %v2252 = vadd.f32 %v2242, %v2250
    %v2253 = vtanh.pop %v2252
    %2255 = vrot.lane.b32.xlu0 %v2253, 64
    %v2256 = vpop.permute.xlu0 %2255
    %v2258 = vmul.f32 %v2235, %v2256
    %v2259 = vmul.f32 %v2241, %v2133
    %2261 = vrot.lane.b32.xlu0 %v2241, 64
    %v2262 = vpop.permute.xlu0 %2261
    %v2264 = vmul.f32 %v2241, %v2262
    %2266 = vrot.lane.b32.xlu0 %v2264, 32
    %v2267 = vpop.permute.xlu0 %2266
    %v2269 = vadd.f32 %v2259, %v2267
    %v2270 = vtanh.pop %v2269
    %2272 = vrot.lane.b32.xlu0 %v2270, 64
    %v2273 = vpop.permute.xlu0 %2272
    %v2275 = vmul.f32 %v2241, %v2273
    %2277 = vrot.lane.b32.xlu0 %v2258, 32
    %v2278 = vpop.permute.xlu0 %2277
    %2281 = vrot.lane.b32.xlu0 %v2275, 64
    %v2282 = vpop.permute.xlu0 %2281
    %v2284 = vsel %vm375, %v2278, %v2282
    %v2286 = vsel %vm156, %v2284, 0
    %2288 = vmatprep.subr.mxu0 %v1370
    %2289 = vmatpush1.msra.mxu0 %v1369
    %2290 = vmatprep.subr.mxu0 %v1372
    %2291 = vmatpush1.msra.mxu0 %v1371
    %2292 = vmatprep.subr.mxu0 %v1374
    %2293 = vmatpush1.msra.mxu0 %v1373
    %2294 = vmatprep.subr.mxu0 %v1376
    %2295 = vmatpush1.msra.mxu0 %v1375
    %2296 = vmatprep.subr.mxu0 %v1378
    %2297 = vmatpush1.msra.mxu0 %v1377
    %2298 = vmatprep.subr.mxu0 %v1380
    %2299 = vmatpush1.msra.mxu0 %v1379
    %2300 = vmatprep.subr.mxu0 %v1382
    %2301 = vmatpush1.msra.mxu0 %v1381
    %2302 = vmatprep.subr.mxu0 %v1384
    %2303 = vmatpush1.msra.mxu0 %v1383
    %2304 = vmatprep.subr.mxu0 0.0
    %2305 = vmatpush1.msra.mxu0 0.0
    %2306 = vmatprep.subr.mxu0 0.0
    %2307 = vmatpush1.msra.mxu0 0.0
    %2308 = vmatprep.subr.mxu0 0.0
    %2309 = vmatpush1.msra.mxu0 0.0
    %2310 = vmatprep.subr.mxu0 0.0
    %2311 = vmatpush1.msra.mxu0 0.0
    %2312 = vmatprep.subr.mxu0 0.0
    %2313 = vmatpush1.msra.mxu0 0.0
    %2314 = vmatprep.subr.mxu0 0.0
    %2315 = vmatpush1.msra.mxu0 0.0
    %2316 = vmatprep.subr.mxu0 0.0
    %2317 = vmatpush1.msra.mxu0 0.0
    %2318 = vmatprep.subr.mxu0 0.0
    %2319 = vmatpush1.msra.mxu0 0.0
    %2320 = vmatprep.subr.mxu0 0.0
    %2321 = vmatpush1.msra.mxu0 0.0
    %2322 = vmatprep.subr.mxu0 0.0
    %2323 = vmatpush1.msra.mxu0 0.0
    %2324 = vmatprep.subr.mxu0 0.0
    %2325 = vmatpush1.msra.mxu0 0.0
    %2326 = vmatprep.subr.mxu0 0.0
    %2327 = vmatpush1.msra.mxu0 0.0
    %2328 = vmatprep.subr.mxu0 0.0
    %2329 = vmatpush1.msra.mxu0 0.0
    %2330 = vmatprep.subr.mxu0 0.0
    %2331 = vmatpush1.msra.mxu0 0.0
    %2332 = vmatprep.subr.mxu0 0.0
    %2333 = vmatpush1.msra.mxu0 0.0
    %2334 = vmatprep.subr.mxu0 0.0
    %2335 = vmatpush1.msra.mxu0 0.0
    %2336 = vmatprep.subr.mxu0 0.0
    %2337 = vmatpush1.msra.mxu0 0.0
    %2338 = vmatprep.subr.mxu0 0.0
    %2339 = vmatpush1.msra.mxu0 0.0
    %2340 = vmatprep.subr.mxu0 0.0
    %2341 = vmatpush1.msra.mxu0 0.0
    %2342 = vmatprep.subr.mxu0 0.0
    %2343 = vmatpush1.msra.mxu0 0.0
    %2344 = vmatprep.subr.mxu0 0.0
    %2345 = vmatpush1.msra.mxu0 0.0
    %2346 = vmatprep.subr.mxu0 0.0
    %2347 = vmatpush1.msra.mxu0 0.0
    %2348 = vmatprep.subr.mxu0 0.0
    %2349 = vmatpush1.msra.mxu0 0.0
    %2350 = vmatprep.subr.mxu0 0.0
    %2351 = vmatpush1.msra.mxu0 0.0
    %2352 = vmatprep.mubr.f32.mxu0 0.0
    %2353 = vmatmul.mubr.f32.gmra.mrb[0].mxu0 %v2286
    %v2354 = vpop.f32.mrb[0].mxu0
    %v2355 = vadd.f32 0.0, %v2354
    %v2356 = vpop.f32.mrb[0].mxu0
    %v2357 = vadd.f32 0.0, %v2356
    %2358 = vdwg.mxu0
    %v2359 = vrot.slane %v1476, 4
    %v2361 = vadd.f32 %v2355, %v2359
    %v2362 = vrot.slane %v1472, 2
    %v2364 = vadd.f32 %v2357, %v2362
    %v2365 = vtanh.pop %v2361
    %v2366 = vmul.f32 %v2361, 0.5
    %v2367 = vtanh.pop %v2366
    %v2368 = vadd.f32 %v2367, 1.0
    %v2369 = vmul.f32 %v2368, 0.5
    %v2370 = vsel %vm325, %v2365, %v2369
    %v2371 = vtanh.pop %v2364
    %v2372 = vmul.f32 %v2364, 0.5
    %v2373 = vtanh.pop %v2372
    %v2374 = vadd.f32 %v2373, 1.0
    %v2375 = vmul.f32 %v2374, 0.5
    %v2376 = vsel %vm325, %v2371, %v2375
    %v2377 = vmul.f32 %v2370, %v2252
    %2379 = vrot.lane.b32.xlu0 %v2370, 64
    %v2380 = vpop.permute.xlu0 %2379
    %v2382 = vmul.f32 %v2370, %v2380
    %2384 = vrot.lane.b32.xlu0 %v2382, 32
    %v2385 = vpop.permute.xlu0 %2384
    %v2387 = vadd.f32 %v2377, %v2385
    %v2388 = vtanh.pop %v2387
    %2390 = vrot.lane.b32.xlu0 %v2388, 64
    %v2391 = vpop.permute.xlu0 %2390
    %v2393 = vmul.f32 %v2370, %v2391
    %v2394 = vmul.f32 %v2376, %v2269
    %2396 = vrot.lane.b32.xlu0 %v2376, 64
    %v2397 = vpop.permute.xlu0 %2396
    %v2399 = vmul.f32 %v2376, %v2397
    %2401 = vrot.lane.b32.xlu0 %v2399, 32
    %v2402 = vpop.permute.xlu0 %2401
    %v2404 = vadd.f32 %v2394, %v2402
    %v2405 = vtanh.pop %v2404
    %2407 = vrot.lane.b32.xlu0 %v2405, 64
    %v2408 = vpop.permute.xlu0 %2407
    %v2410 = vmul.f32 %v2376, %v2408
    %2412 = vrot.lane.b32.xlu0 %v2393, 32
    %v2413 = vpop.permute.xlu0 %2412
    %2416 = vrot.lane.b32.xlu0 %v2410, 64
    %v2417 = vpop.permute.xlu0 %2416
    %v2419 = vsel %vm375, %v2413, %v2417
    %v2421 = vsel %vm156, %v2419, 0
    %2423 = vmatprep.subr.mxu0 %v1370
    %2424 = vmatpush1.msra.mxu0 %v1369
    %2425 = vmatprep.subr.mxu0 %v1372
    %2426 = vmatpush1.msra.mxu0 %v1371
    %2427 = vmatprep.subr.mxu0 %v1374
    %2428 = vmatpush1.msra.mxu0 %v1373
    %2429 = vmatprep.subr.mxu0 %v1376
    %2430 = vmatpush1.msra.mxu0 %v1375
    %2431 = vmatprep.subr.mxu0 %v1378
    %2432 = vmatpush1.msra.mxu0 %v1377
    %2433 = vmatprep.subr.mxu0 %v1380
    %2434 = vmatpush1.msra.mxu0 %v1379
    %2435 = vmatprep.subr.mxu0 %v1382
    %2436 = vmatpush1.msra.mxu0 %v1381
    %2437 = vmatprep.subr.mxu0 %v1384
    %2438 = vmatpush1.msra.mxu0 %v1383
    %2439 = vmatprep.subr.mxu0 0.0
    %2440 = vmatpush1.msra.mxu0 0.0
    %2441 = vmatprep.subr.mxu0 0.0
    %2442 = vmatpush1.msra.mxu0 0.0
    %2443 = vmatprep.subr.mxu0 0.0
    %2444 = vmatpush1.msra.mxu0 0.0
    %2445 = vmatprep.subr.mxu0 0.0
    %2446 = vmatpush1.msra.mxu0 0.0
    %2447 = vmatprep.subr.mxu0 0.0
    %2448 = vmatpush1.msra.mxu0 0.0
    %2449 = vmatprep.subr.mxu0 0.0
    %2450 = vmatpush1.msra.mxu0 0.0
    %2451 = vmatprep.subr.mxu0 0.0
    %2452 = vmatpush1.msra.mxu0 0.0
    %2453 = vmatprep.subr.mxu0 0.0
    %2454 = vmatpush1.msra.mxu0 0.0
    %2455 = vmatprep.subr.mxu0 0.0
    %2456 = vmatpush1.msra.mxu0 0.0
    %2457 = vmatprep.subr.mxu0 0.0
    %2458 = vmatpush1.msra.mxu0 0.0
    %2459 = vmatprep.subr.mxu0 0.0
    %2460 = vmatpush1.msra.mxu0 0.0
    %2461 = vmatprep.subr.mxu0 0.0
    %2462 = vmatpush1.msra.mxu0 0.0
    %2463 = vmatprep.subr.mxu0 0.0
    %2464 = vmatpush1.msra.mxu0 0.0
    %2465 = vmatprep.subr.mxu0 0.0
    %2466 = vmatpush1.msra.mxu0 0.0
    %2467 = vmatprep.subr.mxu0 0.0
    %2468 = vmatpush1.msra.mxu0 0.0
    %2469 = vmatprep.subr.mxu0 0.0
    %2470 = vmatpush1.msra.mxu0 0.0
    %2471 = vmatprep.subr.mxu0 0.0
    %2472 = vmatpush1.msra.mxu0 0.0
    %2473 = vmatprep.subr.mxu0 0.0
    %2474 = vmatpush1.msra.mxu0 0.0
    %2475 = vmatprep.subr.mxu0 0.0
    %2476 = vmatpush1.msra.mxu0 0.0
    %2477 = vmatprep.subr.mxu0 0.0
    %2478 = vmatpush1.msra.mxu0 0.0
    %2479 = vmatprep.subr.mxu0 0.0
    %2480 = vmatpush1.msra.mxu0 0.0
    %2481 = vmatprep.subr.mxu0 0.0
    %2482 = vmatpush1.msra.mxu0 0.0
    %2483 = vmatprep.subr.mxu0 0.0
    %2484 = vmatpush1.msra.mxu0 0.0
    %2485 = vmatprep.subr.mxu0 0.0
    %2486 = vmatpush1.msra.mxu0 0.0
    %2487 = vmatprep.mubr.f32.mxu0 0.0
    %2488 = vmatmul.mubr.f32.gmra.mrb[0].mxu0 %v2421
    %v2489 = vpop.f32.mrb[0].mxu0
    %v2490 = vadd.f32 0.0, %v2489
    %v2491 = vpop.f32.mrb[0].mxu0
    %v2492 = vadd.f32 0.0, %v2491
    %2493 = vdwg.mxu0
    %v2494 = vrot.slane %v1476, 6
    %v2496 = vadd.f32 %v2490, %v2494
    %v2497 = vadd.f32 %v2492, %v1472
    %v2498 = vtanh.pop %v2496
    %v2499 = vmul.f32 %v2496, 0.5
    %v2500 = vtanh.pop %v2499
    %v2501 = vadd.f32 %v2500, 1.0
    %v2502 = vmul.f32 %v2501, 0.5
    %v2503 = vsel %vm325, %v2498, %v2502
    %v2504 = vtanh.pop %v2497
    %v2505 = vmul.f32 %v2497, 0.5
    %v2506 = vtanh.pop %v2505
    %v2507 = vadd.f32 %v2506, 1.0
    %v2508 = vmul.f32 %v2507, 0.5
    %v2509 = vsel %vm325, %v2504, %v2508
    %v2510 = vmul.f32 %v2503, %v2387
    %2512 = vrot.lane.b32.xlu0 %v2503, 64
    %v2513 = vpop.permute.xlu0 %2512
    %v2515 = vmul.f32 %v2503, %v2513
    %2517 = vrot.lane.b32.xlu0 %v2515, 32
    %v2518 = vpop.permute.xlu0 %2517
    %v2520 = vadd.f32 %v2510, %v2518
    %v2521 = vtanh.pop %v2520
    %2523 = vrot.lane.b32.xlu0 %v2521, 64
    %v2524 = vpop.permute.xlu0 %2523
    %v2526 = vmul.f32 %v2503, %v2524
    %v2527 = vmul.f32 %v2509, %v2404
    %2529 = vrot.lane.b32.xlu0 %v2509, 64
    %v2530 = vpop.permute.xlu0 %2529
    %v2532 = vmul.f32 %v2509, %v2530
    %2534 = vrot.lane.b32.xlu0 %v2532, 32
    %v2535 = vpop.permute.xlu0 %2534
    %v2537 = vadd.f32 %v2527, %v2535
    %v2538 = vtanh.pop %v2537
    %2540 = vrot.lane.b32.xlu0 %v2538, 64
    %v2541 = vpop.permute.xlu0 %2540
    %v2543 = vmul.f32 %v2509, %v2541
    %2545 = vrot.lane.b32.xlu0 %v2526, 32
    %v2546 = vpop.permute.xlu0 %2545
    %2549 = vrot.lane.b32.xlu0 %v2543, 64
    %v2550 = vpop.permute.xlu0 %2549
    %v2552 = vsel %vm375, %v2546, %v2550
    %v2553 = vld [vmem:[%s7] sm:$0xff]
    %v2554 = vld [vmem:[%s7 + $0x8] sm:$0xff]
    %v2555 = vld [vmem:[%s7 + $0x10] sm:$0xff]
    %v2556 = vld [vmem:[%s7 + $0x18] sm:$0xff]
    %v2557 = vld [vmem:[%s7 + $0x20] sm:$0xff]
    %v2558 = vld [vmem:[%s7 + $0x28] sm:$0xff]
    %v2559 = vld [vmem:[%s7 + $0x30] sm:$0xff]
    %v2560 = vld [vmem:[%s7 + $0x38] sm:$0xff]
    %v2561 = vld [vmem:[%s8] sm:$0x1]
    %v2563 = vlaneseq
    %v2564 = vshrl.u32 %v2563, 7
    %v2565 = vsub.s32 0, %v2564
    %v2566 = vrot.slane %v2561, %v2565
    %v2569 = vsel %vm156, %v2552, 0
    %2571 = vmatprep.subr.mxu0 0.0
    %2572 = vmatpush1.msra.mxu0 %v2553
    %2573 = vmatprep.subr.mxu0 0.0
    %2574 = vmatpush1.msra.mxu0 %v2554
    %2575 = vmatprep.subr.mxu0 0.0
    %2576 = vmatpush1.msra.mxu0 %v2555
    %2577 = vmatprep.subr.mxu0 0.0
    %2578 = vmatpush1.msra.mxu0 %v2556
    %2579 = vmatprep.subr.mxu0 0.0
    %2580 = vmatpush1.msra.mxu0 %v2557
    %2581 = vmatprep.subr.mxu0 0.0
    %2582 = vmatpush1.msra.mxu0 %v2558
    %2583 = vmatprep.subr.mxu0 0.0
    %2584 = vmatpush1.msra.mxu0 %v2559
    %2585 = vmatprep.subr.mxu0 0.0
    %2586 = vmatpush1.msra.mxu0 %v2560
    %2587 = vmatprep.subr.mxu0 0.0
    %2588 = vmatpush1.msra.mxu0 0.0
    %2589 = vmatprep.subr.mxu0 0.0
    %2590 = vmatpush1.msra.mxu0 0.0
    %2591 = vmatprep.subr.mxu0 0.0
    %2592 = vmatpush1.msra.mxu0 0.0
    %2593 = vmatprep.subr.mxu0 0.0
    %2594 = vmatpush1.msra.mxu0 0.0
    %2595 = vmatprep.subr.mxu0 0.0
    %2596 = vmatpush1.msra.mxu0 0.0
    %2597 = vmatprep.subr.mxu0 0.0
    %2598 = vmatpush1.msra.mxu0 0.0
    %2599 = vmatprep.subr.mxu0 0.0
    %2600 = vmatpush1.msra.mxu0 0.0
    %2601 = vmatprep.subr.mxu0 0.0
    %2602 = vmatpush1.msra.mxu0 0.0
    %2603 = vmatprep.subr.mxu0 0.0
    %2604 = vmatpush1.msra.mxu0 0.0
    %2605 = vmatprep.subr.mxu0 0.0
    %2606 = vmatpush1.msra.mxu0 0.0
    %2607 = vmatprep.subr.mxu0 0.0
    %2608 = vmatpush1.msra.mxu0 0.0
    %2609 = vmatprep.subr.mxu0 0.0
    %2610 = vmatpush1.msra.mxu0 0.0
    %2611 = vmatprep.subr.mxu0 0.0
    %2612 = vmatpush1.msra.mxu0 0.0
    %2613 = vmatprep.subr.mxu0 0.0
    %2614 = vmatpush1.msra.mxu0 0.0
    %2615 = vmatprep.subr.mxu0 0.0
    %2616 = vmatpush1.msra.mxu0 0.0
    %2617 = vmatprep.subr.mxu0 0.0
    %2618 = vmatpush1.msra.mxu0 0.0
    %2619 = vmatprep.subr.mxu0 0.0
    %2620 = vmatpush1.msra.mxu0 0.0
    %2621 = vmatprep.subr.mxu0 0.0
    %2622 = vmatpush1.msra.mxu0 0.0
    %2623 = vmatprep.subr.mxu0 0.0
    %2624 = vmatpush1.msra.mxu0 0.0
    %2625 = vmatprep.subr.mxu0 0.0
    %2626 = vmatpush1.msra.mxu0 0.0
    %2627 = vmatprep.subr.mxu0 0.0
    %2628 = vmatpush1.msra.mxu0 0.0
    %2629 = vmatprep.subr.mxu0 0.0
    %2630 = vmatpush1.msra.mxu0 0.0
    %2631 = vmatprep.subr.mxu0 0.0
    %2632 = vmatpush1.msra.mxu0 0.0
    %2633 = vmatprep.subr.mxu0 0.0
    %2634 = vmatpush1.msra.mxu0 0.0
    %2635 = vmatprep.mubr.f32.mxu0 0.0
    %2636 = vmatmul.mubr.f32.gmra.mrb[0].mxu0 %v2569
    %v2637 = vpop.f32.mrb[0].mxu0
    %v2638 = vadd.f32 %v2566, %v2637
    %v2639 = vpop.f32.mrb[0].mxu0
    %2640 = vdwg.mxu0
    %v2641 = vmax.f32 %v2638, 0.0
    %v2642 = vld [vmem:[%s9] sm:$0xff]
    %v2643 = vld [vmem:[%s9 + $0x8] sm:$0xff]
    %v2644 = vld [vmem:[%s9 + $0x10] sm:$0xff]
    %v2645 = vld [vmem:[%s9 + $0x18] sm:$0xff]
    %v2646 = vld [vmem:[%s10] sm:$0x1]
    %v2648 = vlaneseq
    %v2649 = vshrl.u32 %v2648, 7
    %v2650 = vsub.s32 0, %v2649
    %v2651 = vrot.slane %v2646, %v2650
    %v2654 = vsel %vm375, %v2641, 0
    %2656 = vmatprep.subr.mxu0 0.0
    %2657 = vmatpush1.msra.mxu0 %v2642
    %2658 = vmatprep.subr.mxu0 0.0
    %2659 = vmatpush1.msra.mxu0 %v2643
    %2660 = vmatprep.subr.mxu0 0.0
    %2661 = vmatpush1.msra.mxu0 %v2644
    %2662 = vmatprep.subr.mxu0 0.0
    %2663 = vmatpush1.msra.mxu0 %v2645
    %2664 = vmatprep.subr.mxu0 0.0
    %2665 = vmatpush1.msra.mxu0 0.0
    %2666 = vmatprep.subr.mxu0 0.0
    %2667 = vmatpush1.msra.mxu0 0.0
    %2668 = vmatprep.subr.mxu0 0.0
    %2669 = vmatpush1.msra.mxu0 0.0
    %2670 = vmatprep.subr.mxu0 0.0
    %2671 = vmatpush1.msra.mxu0 0.0
    %2672 = vmatprep.subr.mxu0 0.0
    %2673 = vmatpush1.msra.mxu0 0.0
    %2674 = vmatprep.subr.mxu0 0.0
    %2675 = vmatpush1.msra.mxu0 0.0
    %2676 = vmatprep.subr.mxu0 0.0
    %2677 = vmatpush1.msra.mxu0 0.0
    %2678 = vmatprep.subr.mxu0 0.0
    %2679 = vmatpush1.msra.mxu0 0.0
    %2680 = vmatprep.subr.mxu0 0.0
    %2681 = vmatpush1.msra.mxu0 0.0
    %2682 = vmatprep.subr.mxu0 0.0
    %2683 = vmatpush1.msra.mxu0 0.0
    %2684 = vmatprep.subr.mxu0 0.0
    %2685 = vmatpush1.msra.mxu0 0.0
    %2686 = vmatprep.subr.mxu0 0.0
    %2687 = vmatpush1.msra.mxu0 0.0
    %2688 = vmatprep.subr.mxu0 0.0
    %2689 = vmatpush1.msra.mxu0 0.0
    %2690 = vmatprep.subr.mxu0 0.0
    %2691 = vmatpush1.msra.mxu0 0.0
    %2692 = vmatprep.subr.mxu0 0.0
    %2693 = vmatpush1.msra.mxu0 0.0
    %2694 = vmatprep.subr.mxu0 0.0
    %2695 = vmatpush1.msra.mxu0 0.0
    %2696 = vmatprep.subr.mxu0 0.0
    %2697 = vmatpush1.msra.mxu0 0.0
    %2698 = vmatprep.subr.mxu0 0.0
    %2699 = vmatpush1.msra.mxu0 0.0
    %2700 = vmatprep.subr.mxu0 0.0
    %2701 = vmatpush1.msra.mxu0 0.0
    %2702 = vmatprep.subr.mxu0 0.0
    %2703 = vmatpush1.msra.mxu0 0.0
    %2704 = vmatprep.subr.mxu0 0.0
    %2705 = vmatpush1.msra.mxu0 0.0
    %2706 = vmatprep.subr.mxu0 0.0
    %2707 = vmatpush1.msra.mxu0 0.0
    %2708 = vmatprep.subr.mxu0 0.0
    %2709 = vmatpush1.msra.mxu0 0.0
    %2710 = vmatprep.subr.mxu0 0.0
    %2711 = vmatpush1.msra.mxu0 0.0
    %2712 = vmatprep.subr.mxu0 0.0
    %2713 = vmatpush1.msra.mxu0 0.0
    %2714 = vmatprep.subr.mxu0 0.0
    %2715 = vmatpush1.msra.mxu0 0.0
    %2716 = vmatprep.subr.mxu0 0.0
    %2717 = vmatpush1.msra.mxu0 0.0
    %2718 = vmatprep.subr.mxu0 0.0
    %2719 = vmatpush1.msra.mxu0 0.0
    %2720 = vmatprep.mubr.f32.mxu0 0.0
    %2721 = vmatmul.mubr.f32.gmra.mrb[0].mxu0 %v2654
    %v2722 = vpop.f32.mrb[0].mxu0
    %v2723 = vadd.f32 %v2651, %v2722
    %v2724 = vpop.f32.mrb[0].mxu0
    %2725 = vdwg.mxu0
    %v2726 = vmax.f32 %v2723, 0.0
    %v2727 = vld [vmem:[%s11] sm:$0xff]
    %v2728 = vld [vmem:[%s11 + $0x8] sm:$0xff]
    %v2729 = vld [vmem:[%s12] sm:$0x1]
    %v2731 = vlaneseq
    %v2732 = vshrl.u32 %v2731, 7
    %v2733 = vsub.s32 0, %v2732
    %v2734 = vrot.slane %v2729, %v2733
    %vm2736 = vcmask 130048
    %v2738 = vsel %vm2736, %v2726, 0
    %2740 = vmatprep.subr.mxu0 0.0
    %2741 = vmatpush1.msra.mxu0 %v2727
    %2742 = vmatprep.subr.mxu0 0.0
    %2743 = vmatpush1.msra.mxu0 %v2728
    %2744 = vmatprep.subr.mxu0 0.0
    %2745 = vmatpush1.msra.mxu0 0.0
    %2746 = vmatprep.subr.mxu0 0.0
    %2747 = vmatpush1.msra.mxu0 0.0
    %2748 = vmatprep.subr.mxu0 0.0
    %2749 = vmatpush1.msra.mxu0 0.0
    %2750 = vmatprep.subr.mxu0 0.0
    %2751 = vmatpush1.msra.mxu0 0.0
    %2752 = vmatprep.subr.mxu0 0.0
    %2753 = vmatpush1.msra.mxu0 0.0
    %2754 = vmatprep.subr.mxu0 0.0
    %2755 = vmatpush1.msra.mxu0 0.0
    %2756 = vmatprep.subr.mxu0 0.0
    %2757 = vmatpush1.msra.mxu0 0.0
    %2758 = vmatprep.subr.mxu0 0.0
    %2759 = vmatpush1.msra.mxu0 0.0
    %2760 = vmatprep.subr.mxu0 0.0
    %2761 = vmatpush1.msra.mxu0 0.0
    %2762 = vmatprep.subr.mxu0 0.0
    %2763 = vmatpush1.msra.mxu0 0.0
    %2764 = vmatprep.subr.mxu0 0.0
    %2765 = vmatpush1.msra.mxu0 0.0
    %2766 = vmatprep.subr.mxu0 0.0
    %2767 = vmatpush1.msra.mxu0 0.0
    %2768 = vmatprep.subr.mxu0 0.0
    %2769 = vmatpush1.msra.mxu0 0.0
    %2770 = vmatprep.subr.mxu0 0.0
    %2771 = vmatpush1.msra.mxu0 0.0
    %2772 = vmatprep.subr.mxu0 0.0
    %2773 = vmatpush1.msra.mxu0 0.0
    %2774 = vmatprep.subr.mxu0 0.0
    %2775 = vmatpush1.msra.mxu0 0.0
    %2776 = vmatprep.subr.mxu0 0.0
    %2777 = vmatpush1.msra.mxu0 0.0
    %2778 = vmatprep.subr.mxu0 0.0
    %2779 = vmatpush1.msra.mxu0 0.0
    %2780 = vmatprep.subr.mxu0 0.0
    %2781 = vmatpush1.msra.mxu0 0.0
    %2782 = vmatprep.subr.mxu0 0.0
    %2783 = vmatpush1.msra.mxu0 0.0
    %2784 = vmatprep.subr.mxu0 0.0
    %2785 = vmatpush1.msra.mxu0 0.0
    %2786 = vmatprep.subr.mxu0 0.0
    %2787 = vmatpush1.msra.mxu0 0.0
    %2788 = vmatprep.subr.mxu0 0.0
    %2789 = vmatpush1.msra.mxu0 0.0
    %2790 = vmatprep.subr.mxu0 0.0
    %2791 = vmatpush1.msra.mxu0 0.0
    %2792 = vmatprep.subr.mxu0 0.0
    %2793 = vmatpush1.msra.mxu0 0.0
    %2794 = vmatprep.subr.mxu0 0.0
    %2795 = vmatpush1.msra.mxu0 0.0
    %2796 = vmatprep.subr.mxu0 0.0
    %2797 = vmatpush1.msra.mxu0 0.0
    %2798 = vmatprep.subr.mxu0 0.0
    %2799 = vmatpush1.msra.mxu0 0.0
    %2800 = vmatprep.subr.mxu0 0.0
    %2801 = vmatpush1.msra.mxu0 0.0
    %2802 = vmatprep.subr.mxu0 0.0
    %2803 = vmatpush1.msra.mxu0 0.0
    %2804 = vmatprep.mubr.f32.mxu0 0.0
    %2805 = vmatmul.mubr.f32.gmra.mrb[0].mxu0 %v2738
    %v2806 = vpop.f32.mrb[0].mxu0
    %v2807 = vadd.f32 %v2734, %v2806
    %v2808 = vpop.f32.mrb[0].mxu0
    %2809 = vdwg.mxu0
    %v2810 = vmax.f32 %v2807, 0.0
    %v2811 = vld [vmem:[%s13] sm:$0xff]
    %v2812 = vld [vmem:[#allocation2] sm:$0x1]
    %v2814 = vlaneseq
    %v2815 = vshrl.u32 %v2814, 7
    %v2816 = vsub.s32 0, %v2815
    %v2817 = vrot.slane %v2812, %v2816
    %vm2819 = vcmask 64512
    %v2821 = vsel %vm2819, %v2810, 0
    %2823 = vmatprep.subr.mxu0 0.0
    %2824 = vmatpush1.msra.mxu0 %v2811
    %2825 = vmatprep.subr.mxu0 0.0
    %2826 = vmatpush1.msra.mxu0 0.0
    %2827 = vmatprep.subr.mxu0 0.0
    %2828 = vmatpush1.msra.mxu0 0.0
    %2829 = vmatprep.subr.mxu0 0.0
    %2830 = vmatpush1.msra.mxu0 0.0
    %2831 = vmatprep.subr.mxu0 0.0
    %2832 = vmatpush1.msra.mxu0 0.0
    %2833 = vmatprep.subr.mxu0 0.0
    %2834 = vmatpush1.msra.mxu0 0.0
    %2835 = vmatprep.subr.mxu0 0.0
    %2836 = vmatpush1.msra.mxu0 0.0
    %2837 = vmatprep.subr.mxu0 0.0
    %2838 = vmatpush1.msra.mxu0 0.0
    %2839 = vmatprep.subr.mxu0 0.0
    %2840 = vmatpush1.msra.mxu0 0.0
    %2841 = vmatprep.subr.mxu0 0.0
    %2842 = vmatpush1.msra.mxu0 0.0
    %2843 = vmatprep.subr.mxu0 0.0
    %2844 = vmatpush1.msra.mxu0 0.0
    %2845 = vmatprep.subr.mxu0 0.0
    %2846 = vmatpush1.msra.mxu0 0.0
    %2847 = vmatprep.subr.mxu0 0.0
    %2848 = vmatpush1.msra.mxu0 0.0
    %2849 = vmatprep.subr.mxu0 0.0
    %2850 = vmatpush1.msra.mxu0 0.0
    %2851 = vmatprep.subr.mxu0 0.0
    %2852 = vmatpush1.msra.mxu0 0.0
    %2853 = vmatprep.subr.mxu0 0.0
    %2854 = vmatpush1.msra.mxu0 0.0
    %2855 = vmatprep.subr.mxu0 0.0
    %2856 = vmatpush1.msra.mxu0 0.0
    %2857 = vmatprep.subr.mxu0 0.0
    %2858 = vmatpush1.msra.mxu0 0.0
    %2859 = vmatprep.subr.mxu0 0.0
    %2860 = vmatpush1.msra.mxu0 0.0
    %2861 = vmatprep.subr.mxu0 0.0
    %2862 = vmatpush1.msra.mxu0 0.0
    %2863 = vmatprep.subr.mxu0 0.0
    %2864 = vmatpush1.msra.mxu0 0.0
    %2865 = vmatprep.subr.mxu0 0.0
    %2866 = vmatpush1.msra.mxu0 0.0
    %2867 = vmatprep.subr.mxu0 0.0
    %2868 = vmatpush1.msra.mxu0 0.0
    %2869 = vmatprep.subr.mxu0 0.0
    %2870 = vmatpush1.msra.mxu0 0.0
    %2871 = vmatprep.subr.mxu0 0.0
    %2872 = vmatpush1.msra.mxu0 0.0
    %2873 = vmatprep.subr.mxu0 0.0
    %2874 = vmatpush1.msra.mxu0 0.0
    %2875 = vmatprep.subr.mxu0 0.0
    %2876 = vmatpush1.msra.mxu0 0.0
    %2877 = vmatprep.subr.mxu0 0.0
    %2878 = vmatpush1.msra.mxu0 0.0
    %2879 = vmatprep.subr.mxu0 0.0
    %2880 = vmatpush1.msra.mxu0 0.0
    %2881 = vmatprep.subr.mxu0 0.0
    %2882 = vmatpush1.msra.mxu0 0.0
    %2883 = vmatprep.subr.mxu0 0.0
    %2884 = vmatpush1.msra.mxu0 0.0
    %2885 = vmatprep.subr.mxu0 0.0
    %2886 = vmatpush1.msra.mxu0 0.0
    %2887 = vmatprep.mubr.f32.mxu0 0.0
    %2888 = vmatmul.mubr.f32.gmra.mrb[0].mxu0 %v2821
    %v2889 = vpop.f32.mrb[0].mxu0
    %v2890 = vadd.f32 %v2817, %v2889
    %v2891 = vpop.f32.mrb[0].mxu0
    %2892 = vdwg.mxu0
    %v2893 = vmul.f32 %v2890, 0.5
    %v2894 = vtanh.pop %v2893
    %v2895 = vadd.f32 %v2894, 1.0
    %v2896 = vmul.f32 %v2895, 0.5
    %vm2897 = vcmask 1024
    %2898 = vst.msk [vmem:[%s15] sm:$0x3] %vm2897, %v2896
    // Predicated region
    $region78: #{tpu_custom_call.1} parent=1 // pred_check
      _
    $region79: #{tpu_custom_call.1} parent=1 // pred_check_branch
      %2900 = sbr.rel (0) target = $region81
    $region80: #{tpu_custom_call.1} parent=1 // pred_region
      _
    $region81: #{tpu_custom_call.1} parent=1 // pred_fallthru
      _
    // Predicated region
    $region82: #{tpu_custom_call.1} parent=1 // pred_check
      _
    $region83: #{tpu_custom_call.1} parent=1 // pred_check_branch
      %2902 = sbr.rel (0) target = $region85
    $region84: #{tpu_custom_call.1} parent=1 // pred_region
      _
    $region85: #{tpu_custom_call.1} parent=1 // pred_fallthru
      _
    %2903 = vsyncpa [#allocation4], 1
    %2904 = vsyncpa [#allocation6], 1
    %2905 = vsyncpa [#allocation9], 1

</llo_original>
